<compile_context>
chip_gen: v6e
topology: v6e:2x2x1
jax: 0.10.0
libtpu: 0.0.40
codegen_flags: <defaults>
</compile_context>

<pallas_src>
import jax
import jax.numpy as jnp
from jax import lax
from jax.experimental import pallas as pl
from jax.experimental.pallas import tpu as pltpu

# ---- module constants (from __init__) --------------------------------------
N_NODES   = 120          # forward hard-codes .view(-1, 120, in_size)
IN_SIZE   = 192          # 64 (text) + 64 (audio) + 64 (vision)
LSTM_H    = 8            # outMMEncoder
NUM_HEADS = 4
GCV_LAST  = 4            # gcv = [192, 32, 4]
GAT_DIM   = NUM_HEADS * GCV_LAST            # 16
OUT_SIZE  = 6            # constructor arg `out_size` (picked for the demo)
CHUNK     = 8            # rows of graph-path work / LSTM steps per loop iter


def _vmem_spec():
    # ~1.3 MB total resident: everything lives in VMEM, single invocation.
    return pl.BlockSpec(memory_space=pltpu.MemorySpace.VMEM)


# =============================================================================
# Fused kernel
# =============================================================================
def _gat_fp_kernel(text_ref, audio_ref, vision_ref,
                   wt_ref, bt_ref, wa_ref, ba_ref, wv_ref, bv_ref,
                   w_ih_ref, b_ih_ref, w_hh_ref, bwdmask_ref, rev_ref,
                   adj_ref, w_gd_ref, b_gd_ref,
                   w_g1_ref, b_g1_ref,
                   w_fin_ref, b_fin_ref,
                   out_ref,
                   stack_sc, gates_sc, lstm_sc, gat_sc):
    f32 = jnp.float32
    H = LSTM_H
    CH = CHUNK

    # ---- modality encoders (bf16 x bf16 -> f32) + torch.hstack -------------
    t_out = jnp.dot(text_ref[...],   wt_ref[...], preferred_element_type=f32) + bt_ref[...]
    a_out = jnp.dot(audio_ref[...],  wa_ref[...], preferred_element_type=f32) + ba_ref[...]
    v_out = jnp.dot(vision_ref[...], wv_ref[...], preferred_element_type=f32) + bv_ref[...]
    stack_ft = jnp.concatenate([t_out, a_out, v_out], axis=1)    # (n, 192) in regs
    stack_sc[...] = stack_ft        # one lane-dense store; ref-sliced by chunks below

    T = stack_ft.shape[0]

    # ---- BiLSTM bulk input projection (fwd+bwd fused, gates [i|f|o|g]) -----
    raw = jnp.dot(stack_ft, w_ih_ref[...], preferred_element_type=f32) + b_ih_ref[...]
    # time-reverse once (anti-diagonal permutation) and select it into the
    # backward-direction columns, so the loop does ONE (1,64) row load / step.
    raw_rev = jnp.dot(rev_ref[...], raw, preferred_element_type=f32)
    m = bwdmask_ref[...]                                  # 1.0 on bwd columns
    gates_sc[...] = raw + m * (raw_rev - raw)

    whh  = w_hh_ref[...]                                  # (16, 64) block-diag
    w_gd = w_gd_ref[...]
    b_gd = b_gd_ref[...]
    w_g1 = w_g1_ref[...]
    b_g1 = b_g1_ref[...]

    # ---- fused loop: BiLSTM recurrence + graph path hidden under it --------
    def chunk_body(k, carry):
        h, c = carry
        base = pl.multiple_of(k * CH, CH)

        # Graph-path chunk (independent of the recurrence; the scheduler
        # interleaves this MXU/VPU work under the latency-bound LSTM steps):
        # GraphConv(norm='both')+decode folded, then 0.5*(h+h1), L1-norm, gat1.
        agg = jnp.dot(adj_ref[pl.ds(base, CH), :], stack_sc[...],
                      preferred_element_type=f32)
        h1 = jnp.dot(agg, w_gd, preferred_element_type=f32) + b_gd
        hm = 0.5 * (stack_sc[pl.ds(base, CH), :] + h1)
        l1 = jnp.sum(jnp.abs(hm), axis=1, keepdims=True)
        hn = hm * pl.reciprocal(jnp.maximum(l1, 1e-12), approx=True)
        gat_sc[pl.ds(base, CH), :] = (
            jnp.dot(hn, w_g1, preferred_element_type=f32) + b_g1)

        # CH fused fwd/bwd LSTM steps: 1 row load, 1 small dot, 3 EUP pushes,
        # 1 row store each (Python-unrolled -> straight-line for the scheduler)
        for j in range(CH):
            t = base + j
            g = gates_sc[pl.ds(t, 1), :] + jnp.dot(h, whh,
                                                   preferred_element_type=f32)
            sig = jax.nn.sigmoid(g[:, 0:6 * H])           # i|f|o, 48 lanes, 1 call
            gg  = jnp.tanh(g[:, 6 * H:8 * H])             # g, 16 lanes, 1 call
            c = sig[:, 2 * H:4 * H] * c + sig[:, 0:2 * H] * gg
            h = sig[:, 4 * H:6 * H] * jnp.tanh(c)
            lstm_sc[pl.ds(t, 1), :] = h                   # [h_fwd_t, h_bwd(T-1-t)]
        return (h, c)

    z16 = jnp.zeros((1, 2 * H), f32)
    lax.fori_loop(0, T // CH, chunk_body, (z16, z16))

    # ---- head: cat([gat_out, newFeature], 1) @ W_fin + b (split matmuls) ---
    lstm_all = lstm_sc[...]
    # un-reverse the backward half once (row permutation via rev matmul)
    lstm_rev = jnp.dot(rev_ref[...], lstm_all, preferred_element_type=f32)
    gat_out = gat_sc[...]
    out = (jnp.dot(gat_out, w_fin_ref[0:GAT_DIM, :], preferred_element_type=f32)
           + jnp.dot(lstm_all[:, 0:H],
                     w_fin_ref[GAT_DIM:GAT_DIM + H, :], preferred_element_type=f32)
           + jnp.dot(lstm_rev[:, H:2 * H],
                     w_fin_ref[GAT_DIM + H:GAT_DIM + 2 * H, :],
                     preferred_element_type=f32)
           + b_fin_ref[...])
    out_ref[...] = out


def _gat_fp_pallas(params, adj, rev, text, audio, vision):
    n = text.shape[0]
    assert n == N_NODES, "reference resets BiLSTM state every 120 rows; only n==120 supported"
    # TODO(synk): v7x two-TensorCore split (fwd chain + half the rows on core 0,
    # bwd chain + other half on core 1 via pl.core_map) not implemented.
    # TODO(synk): manual DMA overlap of text/vision inputs (memory_space=pl.ANY)
    # for v5e not implemented; it is a secondary win once the recurrence shrinks.
    args = (text, audio, vision,
            params['wt'], params['bt'], params['wa'], params['ba'],
            params['wv'], params['bv'],
            params['w_ih'], params['b_ih'], params['w_hh'], params['bwd_mask'],
            rev, adj, params['w_gd'], params['b_gd'],
            params['w_g1s'], params['b_g1'],
            params['w_fin'], params['b_fin'])
    return pl.pallas_call(
        _gat_fp_kernel,
        out_shape=jax.ShapeDtypeStruct((n, OUT_SIZE), jnp.float32),
        in_specs=[_vmem_spec() for _ in args],
        out_specs=_vmem_spec(),
        scratch_shapes=[
            pltpu.VMEM((n, IN_SIZE), jnp.float32),        # stackFT
            pltpu.VMEM((n, 8 * LSTM_H), jnp.float32),     # fused input gates (64)
            pltpu.VMEM((n, 2 * LSTM_H), jnp.float32),     # BiLSTM output (bwd half rev.)
            pltpu.VMEM((n, GAT_DIM), jnp.float32),        # gat1 output
        ],
    )(*args)


gat_fp_forward = jax.jit(_gat_fp_pallas)


# =============================================================================
# Glue: parameters, masks, graph, offline weight folds / permutations
# =============================================================================
def init_params(key):
    ks = jax.random.split(key, 12)

    def lin(k, fan_in, fan_out):
        # weights stored as (in, out) so kernels apply x @ W (== x @ W_torch.T)
        w = (jax.random.normal(k, (fan_in, fan_out), jnp.float32)
             / jnp.sqrt(jnp.float32(fan_in)))
        b = jnp.zeros((1, fan_out), jnp.float32)
        return w, b

    p = {}
    p['wt'], p['bt'] = lin(ks[0], 1024, 64)     # textEncoder
    p['wa'], p['ba'] = lin(ks[1], 512, 64)      # audioEncoder
    p['wv'], p['bv'] = lin(ks[2], 1024, 64)     # visionEncoder
    # bidirectional LSTM, per-direction gate column order [i, f, g, o]
    # (PyTorch b_ih + b_hh folded into one bias per direction)
    p['w_ih_f'] = jax.random.normal(ks[3], (IN_SIZE, 4 * LSTM_H), jnp.float32) * 0.1
    p['w_hh_f'] = jax.random.normal(ks[4], (LSTM_H, 4 * LSTM_H), jnp.float32) * 0.1
    p['b_f'] = jnp.zeros((1, 4 * LSTM_H), jnp.float32)
    p['w_ih_b'] = jax.random.normal(ks[5], (IN_SIZE, 4 * LSTM_H), jnp.float32) * 0.1
    p['w_hh_b'] = jax.random.normal(ks[6], (LSTM_H, 4 * LSTM_H), jnp.float32) * 0.1
    p['b_b'] = jnp.zeros((1, 4 * LSTM_H), jnp.float32)
    # imputationModule (GraphConv 192->192) and decodeModule (Linear 192->192)
    p['w_gc'], p['b_gc'] = lin(ks[7], IN_SIZE, IN_SIZE)
    p['w_dec'], p['b_dec'] = lin(ks[8], IN_SIZE, IN_SIZE)
    # gat1[0] = Linear(192, num_heads * 4)
    p['w_g1'], p['b_g1'] = lin(ks[9], IN_SIZE, GAT_DIM)
    # final linear: Linear(num_heads*4 + 2*outMMEncoder, out_size)
    p['w_fin'], p['b_fin'] = lin(ks[10], GAT_DIM + 2 * LSTM_H, OUT_SIZE)
    return p


def make_masks():
    # maskFilter constants: text cols *3, audio cols *2, vision cols *1
    idx = jnp.arange(IN_SIZE)
    mt = jnp.where(idx < 64, 3.0, 0.0).astype(jnp.float32).reshape(1, IN_SIZE)
    ma = jnp.where((idx >= 64) & (idx < 128), 2.0, 0.0).astype(jnp.float32).reshape(1, IN_SIZE)
    mv = jnp.where(idx >= 128, 1.0, 0.0).astype(jnp.float32).reshape(1, IN_SIZE)
    return mt, ma, mv


def _split_gates(w):
    """Split per-direction [i, f, g, o] column blocks, return (i, f, o, g)."""
    H = LSTM_H
    return w[:, 0:H], w[:, H:2 * H], w[:, 3 * H:4 * H], w[:, 2 * H:3 * H]


def prepare_params(p, masks):
    """One-time offline folds / permutations (exact in exact arithmetic)."""
    H = LSTM_H
    q = {}
    # encoder layer in bf16 (halves HBM->VMEM bytes, native MXU rate); f32 bias
    q['wt'] = p['wt'].astype(jnp.bfloat16); q['bt'] = p['bt']
    q['wa'] = p['wa'].astype(jnp.bfloat16); q['ba'] = p['ba']
    q['wv'] = p['wv'].astype(jnp.bfloat16); q['bv'] = p['bv']

    # GraphConv weight + decode Linear fold
    q['w_gd'] = p['w_gc'] @ p['w_dec']
    q['b_gd'] = p['b_gc'] @ p['w_dec'] + p['b_dec']

    # maskFilter (disjoint constant column scales {3,2,1}) folded into gat1
    mt, ma, mv = masks
    m_sum = (mt + ma + mv).reshape(IN_SIZE, 1)
    q['w_g1s'] = m_sum * p['w_g1']
    q['b_g1'] = p['b_g1']

    # ---- fused BiLSTM weights, column layout (64 cols): --------------------
    #   [ i_f i_b | f_f f_b | o_f o_b | g_f g_b ]  (8 cols each)
    i_f, f_f, o_f, g_f = _split_gates(p['w_ih_f'])
    i_b, f_b, o_b, g_b = _split_gates(p['w_ih_b'])
    q['w_ih'] = jnp.concatenate([i_f, i_b, f_f, f_b, o_f, o_b, g_f, g_b], axis=1)
    bi_f, bf_f, bo_f, bg_f = _split_gates(p['b_f'])
    bi_b, bf_b, bo_b, bg_b = _split_gates(p['b_b'])
    q['b_ih'] = jnp.concatenate([bi_f, bi_b, bf_f, bf_b, bo_f, bo_b, bg_f, bg_b], axis=1)
    # block-diagonal recurrent weight: rows 0:8 = h_fwd -> fwd cols only,
    # rows 8:16 = h_bwd -> bwd cols only
    hi_f, hf_f, ho_f, hg_f = _split_gates(p['w_hh_f'])
    hi_b, hf_b, ho_b, hg_b = _split_gates(p['w_hh_b'])
    z = jnp.zeros((H, H), jnp.float32)
    top = jnp.concatenate([hi_f, z, hf_f, z, ho_f, z, hg_f, z], axis=1)
    bot = jnp.concatenate([z, hi_b, z, hf_b, z, ho_b, z, hg_b], axis=1)
    q['w_hh'] = jnp.concatenate([top, bot], axis=0)
    # mask selecting backward-direction columns (8:16, 24:32, 40:48, 56:64)
    col = jnp.arange(8 * H)
    q['bwd_mask'] = (((col // H) % 2) == 1).astype(jnp.float32).reshape(1, 8 * H)

    q['w_fin'] = p['w_fin']; q['b_fin'] = p['b_fin']
    return q


def make_norm_adj(n, window=2):
    # synthetic dialogue graph: symmetric window graph with self-loops,
    # then D^-1/2 A D^-1/2 (== DGL GraphConv norm='both' normalization)
    idx = jnp.arange(n)
    a = (jnp.abs(idx[:, None] - idx[None, :]) <= window).astype(jnp.float32)
    deg = a.sum(axis=1)
    dinv = 1.0 / jnp.sqrt(deg)
    return a * dinv[:, None] * dinv[None, :]


def make_rev(n):
    # anti-diagonal permutation matrix: (rev @ x) row-reverses x
    idx = jnp.arange(n)
    return (idx[:, None] + idx[None, :] == n - 1).astype(jnp.float32)


# TODO(synk): args.usingGAT=True (DGL GATv2Conv stack) and args.crossModal=True
# (MultiHeadGATCrossModal) branches are not implemented; the Linear / non-cross
# configuration of the reference is implemented instead.
# NOTE: the reference also encodes the *original* features (oText/oAudio/oVision),
# but that pass only populates self.odata for mseLoss() and does not affect the
# returned logits, so it is omitted (dead-code removal per perf review).

if __name__ == "__main__":
    key = jax.random.PRNGKey(0)
    k_par, k_in = jax.random.split(key)
    params = prepare_params(init_params(k_par), make_masks())
    adj = make_norm_adj(N_NODES)
    rev = make_rev(N_NODES)

    kt, ka, kv = jax.random.split(k_in, 3)
    # encoder inputs stored in bf16 in HBM (first-layer cast, per perf review)
    text   = jax.random.normal(kt, (N_NODES, 1024), jnp.float32).astype(jnp.bfloat16)
    audio  = jax.random.normal(ka, (N_NODES, 512),  jnp.float32).astype(jnp.bfloat16)
    vision = jax.random.normal(kv, (N_NODES, 1024), jnp.float32).astype(jnp.bfloat16)

    out = gat_fp_forward(params, adj, rev, text, audio, vision)
    jax.block_until_ready(out)
    assert out.shape == (N_NODES, OUT_SIZE)
    assert bool(jnp.all(jnp.isfinite(out)))
    print("KERNEL_OK")
</pallas_src>

<mosaic_0001>
module attributes {stable_mosaic.version = 11 : i64} {
  func.func @_gat_fp_kernel(%arg0: memref<120x1024xbf16, #tpu.memory_space<vmem>>, %arg1: memref<120x512xbf16, #tpu.memory_space<vmem>>, %arg2: memref<120x1024xbf16, #tpu.memory_space<vmem>>, %arg3: memref<1024x64xbf16, #tpu.memory_space<vmem>>, %arg4: memref<1x64xf32, #tpu.memory_space<vmem>>, %arg5: memref<512x64xbf16, #tpu.memory_space<vmem>>, %arg6: memref<1x64xf32, #tpu.memory_space<vmem>>, %arg7: memref<1024x64xbf16, #tpu.memory_space<vmem>>, %arg8: memref<1x64xf32, #tpu.memory_space<vmem>>, %arg9: memref<192x64xf32, #tpu.memory_space<vmem>>, %arg10: memref<1x64xf32, #tpu.memory_space<vmem>>, %arg11: memref<16x64xf32, #tpu.memory_space<vmem>>, %arg12: memref<1x64xf32, #tpu.memory_space<vmem>>, %arg13: memref<120x120xf32, #tpu.memory_space<vmem>>, %arg14: memref<120x120xf32, #tpu.memory_space<vmem>>, %arg15: memref<192x192xf32, #tpu.memory_space<vmem>>, %arg16: memref<1x192xf32, #tpu.memory_space<vmem>>, %arg17: memref<192x16xf32, #tpu.memory_space<vmem>>, %arg18: memref<1x16xf32, #tpu.memory_space<vmem>>, %arg19: memref<32x6xf32, #tpu.memory_space<vmem>>, %arg20: memref<1x6xf32, #tpu.memory_space<vmem>>, %arg21: memref<120x6xf32, #tpu.memory_space<vmem>>, %arg22: memref<120x192xf32, #tpu.memory_space<vmem>>, %arg23: memref<120x64xf32, #tpu.memory_space<vmem>>, %arg24: memref<120x16xf32, #tpu.memory_space<vmem>>, %arg25: memref<120x16xf32, #tpu.memory_space<vmem>>) attributes {dimension_semantics = [], scalar_prefetch = 0 : i64, scratch_operands = 4 : i64, tpu.core_type = #tpu.core_type<tc>} {
    %c0 = arith.constant 0 : index
    %c0_0 = arith.constant 0 : index
    %0 = vector.load %arg0[%c0, %c0_0] : memref<120x1024xbf16, #tpu.memory_space<vmem>>, vector<120x1024xbf16>
    %c0_1 = arith.constant 0 : index
    %c0_2 = arith.constant 0 : index
    %1 = vector.load %arg3[%c0_1, %c0_2] : memref<1024x64xbf16, #tpu.memory_space<vmem>>, vector<1024x64xbf16>
    %cst = arith.constant dense<0.000000e+00> : vector<120x64xf32>
    %2 = tpu.matmul %0, %1, %cst {dimension_numbers = #tpu.dot_dimension_numbers<[1], [0], [0], [1], [0, 0, 1, 1], [], []>} : vector<120x1024xbf16>, vector<1024x64xbf16>, vector<120x64xf32> -> vector<120x64xf32>
    %c0_3 = arith.constant 0 : index
    %c0_4 = arith.constant 0 : index
    %3 = vector.load %arg4[%c0_3, %c0_4] : memref<1x64xf32, #tpu.memory_space<vmem>>, vector<1x64xf32>
    %4 = vector.broadcast %3 : vector<1x64xf32> to vector<120x64xf32>
    %5 = arith.addf %2, %4 : vector<120x64xf32>
    %c0_5 = arith.constant 0 : index
    %c0_6 = arith.constant 0 : index
    %6 = vector.load %arg1[%c0_5, %c0_6] : memref<120x512xbf16, #tpu.memory_space<vmem>>, vector<120x512xbf16>
    %c0_7 = arith.constant 0 : index
    %c0_8 = arith.constant 0 : index
    %7 = vector.load %arg5[%c0_7, %c0_8] : memref<512x64xbf16, #tpu.memory_space<vmem>>, vector<512x64xbf16>
    %cst_9 = arith.constant dense<0.000000e+00> : vector<120x64xf32>
    %8 = tpu.matmul %6, %7, %cst_9 {dimension_numbers = #tpu.dot_dimension_numbers<[1], [0], [0], [1], [0, 0, 1, 1], [], []>} : vector<120x512xbf16>, vector<512x64xbf16>, vector<120x64xf32> -> vector<120x64xf32>
    %c0_10 = arith.constant 0 : index
    %c0_11 = arith.constant 0 : index
    %9 = vector.load %arg6[%c0_10, %c0_11] : memref<1x64xf32, #tpu.memory_space<vmem>>, vector<1x64xf32>
    %10 = vector.broadcast %9 : vector<1x64xf32> to vector<120x64xf32>
    %11 = arith.addf %8, %10 : vector<120x64xf32>
    %c0_12 = arith.constant 0 : index
    %c0_13 = arith.constant 0 : index
    %12 = vector.load %arg2[%c0_12, %c0_13] : memref<120x1024xbf16, #tpu.memory_space<vmem>>, vector<120x1024xbf16>
    %c0_14 = arith.constant 0 : index
    %c0_15 = arith.constant 0 : index
    %13 = vector.load %arg7[%c0_14, %c0_15] : memref<1024x64xbf16, #tpu.memory_space<vmem>>, vector<1024x64xbf16>
    %cst_16 = arith.constant dense<0.000000e+00> : vector<120x64xf32>
    %14 = tpu.matmul %12, %13, %cst_16 {dimension_numbers = #tpu.dot_dimension_numbers<[1], [0], [0], [1], [0, 0, 1, 1], [], []>} : vector<120x1024xbf16>, vector<1024x64xbf16>, vector<120x64xf32> -> vector<120x64xf32>
    %c0_17 = arith.constant 0 : index
    %c0_18 = arith.constant 0 : index
    %15 = vector.load %arg8[%c0_17, %c0_18] : memref<1x64xf32, #tpu.memory_space<vmem>>, vector<1x64xf32>
    %16 = vector.broadcast %15 : vector<1x64xf32> to vector<120x64xf32>
    %17 = arith.addf %14, %16 : vector<120x64xf32>
    %18 = tpu.concatenate %5, %11, %17 in 1 : vector<120x64xf32>, vector<120x64xf32>, vector<120x64xf32> -> vector<120x192xf32>
    %c0_19 = arith.constant 0 : index
    %c0_20 = arith.constant 0 : index
    %19 = vector.load %arg22[%c0_19, %c0_20] : memref<120x192xf32, #tpu.memory_space<vmem>>, vector<120x192xf32>
    tpu.vector_store %arg22[%c0_19, %c0_20], %18 {strides = array<i32>} : memref<120x192xf32, #tpu.memory_space<vmem>>, vector<120x192xf32>,
    %c0_21 = arith.constant 0 : index
    %c0_22 = arith.constant 0 : index
    %20 = vector.load %arg9[%c0_21, %c0_22] : memref<192x64xf32, #tpu.memory_space<vmem>>, vector<192x64xf32>
    %cst_23 = arith.constant dense<0.000000e+00> : vector<120x64xf32>
    %21 = tpu.matmul %18, %20, %cst_23 {dimension_numbers = #tpu.dot_dimension_numbers<[1], [0], [0], [1], [0, 0, 1, 1], [], []>} : vector<120x192xf32>, vector<192x64xf32>, vector<120x64xf32> -> vector<120x64xf32>
    %c0_24 = arith.constant 0 : index
    %c0_25 = arith.constant 0 : index
    %22 = vector.load %arg10[%c0_24, %c0_25] : memref<1x64xf32, #tpu.memory_space<vmem>>, vector<1x64xf32>
    %23 = vector.broadcast %22 : vector<1x64xf32> to vector<120x64xf32>
    %24 = arith.addf %21, %23 : vector<120x64xf32>
    %c0_26 = arith.constant 0 : index
    %c0_27 = arith.constant 0 : index
    %25 = vector.load %arg13[%c0_26, %c0_27] : memref<120x120xf32, #tpu.memory_space<vmem>>, vector<120x120xf32>
    %cst_28 = arith.constant dense<0.000000e+00> : vector<120x64xf32>
    %26 = tpu.matmul %25, %24, %cst_28 {dimension_numbers = #tpu.dot_dimension_numbers<[1], [0], [0], [1], [0, 0, 1, 1], [], []>} : vector<120x120xf32>, vector<120x64xf32>, vector<120x64xf32> -> vector<120x64xf32>
    %c0_29 = arith.constant 0 : index
    %c0_30 = arith.constant 0 : index
    %27 = vector.load %arg12[%c0_29, %c0_30] : memref<1x64xf32, #tpu.memory_space<vmem>>, vector<1x64xf32>
    %28 = arith.subf %26, %24 : vector<120x64xf32>
    %29 = vector.broadcast %27 : vector<1x64xf32> to vector<120x64xf32>
    %30 = arith.mulf %29, %28 : vector<120x64xf32>
    %31 = arith.addf %24, %30 : vector<120x64xf32>
    %c0_31 = arith.constant 0 : index
    %c0_32 = arith.constant 0 : index
    %32 = vector.load %arg23[%c0_31, %c0_32] : memref<120x64xf32, #tpu.memory_space<vmem>>, vector<120x64xf32>
    tpu.vector_store %arg23[%c0_31, %c0_32], %31 {strides = array<i32>} : memref<120x64xf32, #tpu.memory_space<vmem>>, vector<120x64xf32>,
    %c0_33 = arith.constant 0 : index
    %c0_34 = arith.constant 0 : index
    %33 = vector.load %arg11[%c0_33, %c0_34] : memref<16x64xf32, #tpu.memory_space<vmem>>, vector<16x64xf32>
    %c0_35 = arith.constant 0 : index
    %c0_36 = arith.constant 0 : index
    %34 = vector.load %arg15[%c0_35, %c0_36] : memref<192x192xf32, #tpu.memory_space<vmem>>, vector<192x192xf32>
    %c0_37 = arith.constant 0 : index
    %c0_38 = arith.constant 0 : index
    %35 = vector.load %arg16[%c0_37, %c0_38] : memref<1x192xf32, #tpu.memory_space<vmem>>, vector<1x192xf32>
    %c0_39 = arith.constant 0 : index
    %c0_40 = arith.constant 0 : index
    %36 = vector.load %arg17[%c0_39, %c0_40] : memref<192x16xf32, #tpu.memory_space<vmem>>, vector<192x16xf32>
    %c0_41 = arith.constant 0 : index
    %c0_42 = arith.constant 0 : index
    %37 = vector.load %arg18[%c0_41, %c0_42] : memref<1x16xf32, #tpu.memory_space<vmem>>, vector<1x16xf32>
    %cst_43 = arith.constant 0.000000e+00 : f32
    %38 = vector.broadcast %cst_43 : f32 to vector<1x16xf32>
    %c0_i32 = arith.constant 0 : i32
    %c15_i32 = arith.constant 15 : i32
    %39 = arith.addi %c0_i32, %c15_i32 : i32
    %c1_i32 = arith.constant 1 : i32
    %40:2 = scf.for %arg26 = %c0_i32 to %39 step %c1_i32 iter_args(%arg27 = %38, %arg28 = %38) -> (vector<1x16xf32>, vector<1x16xf32>)  : i32 {
      %c8_i32 = arith.constant 8 : i32
      %59 = arith.muli %arg26, %c8_i32 : i32
      %60 = tpu.assume_multiple %59, 8 : i32
      %61 = arith.index_cast %60 : i32 to index
      %c0_63 = arith.constant 0 : index
      %62 = vector.load %arg14[%61, %c0_63] : memref<120x120xf32, #tpu.memory_space<vmem>>, vector<8x120xf32>
      %c0_64 = arith.constant 0 : index
      %c0_65 = arith.constant 0 : index
      %63 = vector.load %arg22[%c0_64, %c0_65] : memref<120x192xf32, #tpu.memory_space<vmem>>, vector<120x192xf32>
      %cst_66 = arith.constant dense<0.000000e+00> : vector<8x192xf32>
      %64 = tpu.matmul %62, %63, %cst_66 {dimension_numbers = #tpu.dot_dimension_numbers<[1], [0], [0], [1], [0, 0, 1, 1], [], []>} : vector<8x120xf32>, vector<120x192xf32>, vector<8x192xf32> -> vector<8x192xf32>
      %cst_67 = arith.constant dense<0.000000e+00> : vector<8x192xf32>
      %65 = tpu.matmul %64, %34, %cst_67 {dimension_numbers = #tpu.dot_dimension_numbers<[1], [0], [0], [1], [0, 0, 1, 1], [], []>} : vector<8x192xf32>, vector<192x192xf32>, vector<8x192xf32> -> vector<8x192xf32>
      %66 = vector.broadcast %35 : vector<1x192xf32> to vector<8x192xf32>
      %67 = arith.addf %65, %66 : vector<8x192xf32>
      %68 = arith.index_cast %60 : i32 to index
      %c0_68 = arith.constant 0 : index
      %69 = vector.load %arg22[%68, %c0_68] : memref<120x192xf32, #tpu.memory_space<vmem>>, vector<8x192xf32>
      %70 = arith.addf %69, %67 : vector<8x192xf32>
      %cst_69 = arith.constant 5.000000e-01 : f32
      %71 = vector.broadcast %cst_69 : f32 to vector<8x192xf32>
      %72 = arith.mulf %71, %70 : vector<8x192xf32>
      %73 = math.absf %72 : vector<8x192xf32>
      %cst_70 = arith.constant dense<0.000000e+00> : vector<8xf32>
      %74 = vector.multi_reduction <add>, %73, %cst_70 [1] : vector<8x192xf32> to vector<8xf32>
      %75 = vector.shape_cast %74 : vector<8xf32> to vector<8x1xf32>
      %cst_71 = arith.constant 9.99999996E-13 : f32
      %76 = vector.broadcast %cst_71 : f32 to vector<8x1xf32>
      %77 = arith.maximumf %75, %76 : vector<8x1xf32>
      %78 = tpu.reciprocal %77 {approx = true} : vector<8x1xf32> -> vector<8x1xf32>
      %79 = vector.broadcast %78 : vector<8x1xf32> to vector<8x192xf32>
      %80 = arith.mulf %72, %79 : vector<8x192xf32>
      %cst_72 = arith.constant dense<0.000000e+00> : vector<8x16xf32>
      %81 = tpu.matmul %80, %36, %cst_72 {dimension_numbers = #tpu.dot_dimension_numbers<[1], [0], [0], [1], [0, 0, 1, 1], [], []>} : vector<8x192xf32>, vector<192x16xf32>, vector<8x16xf32> -> vector<8x16xf32>
      %82 = vector.broadcast %37 : vector<1x16xf32> to vector<8x16xf32>
      %83 = arith.addf %81, %82 : vector<8x16xf32>
      %84 = arith.index_cast %60 : i32 to index
      %c0_73 = arith.constant 0 : index
      %85 = vector.load %arg25[%84, %c0_73] : memref<120x16xf32, #tpu.memory_space<vmem>>, vector<8x16xf32>
      tpu.vector_store %arg25[%84, %c0_73], %83 {strides = array<i32>} : memref<120x16xf32, #tpu.memory_space<vmem>>, vector<8x16xf32>,
      %c0_i32_74 = arith.constant 0 : i32
      %86 = arith.addi %60, %c0_i32_74 : i32
      %87 = arith.index_cast %86 : i32 to index
      %c0_75 = arith.constant 0 : index
      %88 = vector.load %arg23[%87, %c0_75] : memref<120x64xf32, #tpu.memory_space<vmem>>, vector<1x64xf32>
      %cst_76 = arith.constant dense<0.000000e+00> : vector<1x64xf32>
      %89 = tpu.matmul %arg27, %33, %cst_76 {dimension_numbers = #tpu.dot_dimension_numbers<[1], [0], [0], [1], [0, 0, 1, 1], [], []>} : vector<1x16xf32>, vector<16x64xf32>, vector<1x64xf32> -> vector<1x64xf32>
      %90 = arith.addf %88, %89 : vector<1x64xf32>
      %91 = vector.extract_strided_slice %90 {offsets = [0, 0], sizes = [1, 48], strides = [1, 1]} : vector<1x64xf32> to vector<1x48xf32>
      %92 = arith.negf %91 : vector<1x48xf32>
      %93 = math.exp %92 : vector<1x48xf32>
      %cst_77 = arith.constant 1.000000e+00 : f32
      %94 = vector.broadcast %cst_77 : f32 to vector<1x48xf32>
      %95 = arith.addf %94, %93 : vector<1x48xf32>
      %96 = arith.divf %94, %95 : vector<1x48xf32>
      %97 = vector.extract_strided_slice %90 {offsets = [0, 48], sizes = [1, 16], strides = [1, 1]} : vector<1x64xf32> to vector<1x16xf32>
      %98 = math.tanh %97 : vector<1x16xf32>
      %99 = vector.extract_strided_slice %96 {offsets = [0, 16], sizes = [1, 16], strides = [1, 1]} : vector<1x48xf32> to vector<1x16xf32>
      %100 = arith.mulf %99, %arg28 : vector<1x16xf32>
      %101 = vector.extract_strided_slice %96 {offsets = [0, 0], sizes = [1, 16], strides = [1, 1]} : vector<1x48xf32> to vector<1x16xf32>
      %102 = arith.mulf %101, %98 : vector<1x16xf32>
      %103 = arith.addf %100, %102 : vector<1x16xf32>
      %104 = vector.extract_strided_slice %96 {offsets = [0, 32], sizes = [1, 16], strides = [1, 1]} : vector<1x48xf32> to vector<1x16xf32>
      %105 = math.tanh %103 : vector<1x16xf32>
      %106 = arith.mulf %104, %105 : vector<1x16xf32>
      %107 = arith.index_cast %86 : i32 to index
      %c0_78 = arith.constant 0 : index
      %108 = vector.load %arg24[%107, %c0_78] : memref<120x16xf32, #tpu.memory_space<vmem>>, vector<1x16xf32>
      tpu.vector_store %arg24[%107, %c0_78], %106 {strides = array<i32>} : memref<120x16xf32, #tpu.memory_space<vmem>>, vector<1x16xf32>,
      %c1_i32_79 = arith.constant 1 : i32
      %109 = arith.addi %60, %c1_i32_79 : i32
      %110 = arith.index_cast %109 : i32 to index
      %c0_80 = arith.constant 0 : index
      %111 = vector.load %arg23[%110, %c0_80] : memref<120x64xf32, #tpu.memory_space<vmem>>, vector<1x64xf32>
      %cst_81 = arith.constant dense<0.000000e+00> : vector<1x64xf32>
      %112 = tpu.matmul %106, %33, %cst_81 {dimension_numbers = #tpu.dot_dimension_numbers<[1], [0], [0], [1], [0, 0, 1, 1], [], []>} : vector<1x16xf32>, vector<16x64xf32>, vector<1x64xf32> -> vector<1x64xf32>
      %113 = arith.addf %111, %112 : vector<1x64xf32>
      %114 = vector.extract_strided_slice %113 {offsets = [0, 0], sizes = [1, 48], strides = [1, 1]} : vector<1x64xf32> to vector<1x48xf32>
      %115 = arith.negf %114 : vector<1x48xf32>
      %116 = math.exp %115 : vector<1x48xf32>
      %cst_82 = arith.constant 1.000000e+00 : f32
      %117 = vector.broadcast %cst_82 : f32 to vector<1x48xf32>
      %118 = arith.addf %117, %116 : vector<1x48xf32>
      %119 = arith.divf %117, %118 : vector<1x48xf32>
      %120 = vector.extract_strided_slice %113 {offsets = [0, 48], sizes = [1, 16], strides = [1, 1]} : vector<1x64xf32> to vector<1x16xf32>
      %121 = math.tanh %120 : vector<1x16xf32>
      %122 = vector.extract_strided_slice %119 {offsets = [0, 16], sizes = [1, 16], strides = [1, 1]} : vector<1x48xf32> to vector<1x16xf32>
      %123 = arith.mulf %122, %103 : vector<1x16xf32>
      %124 = vector.extract_strided_slice %119 {offsets = [0, 0], sizes = [1, 16], strides = [1, 1]} : vector<1x48xf32> to vector<1x16xf32>
      %125 = arith.mulf %124, %121 : vector<1x16xf32>
      %126 = arith.addf %123, %125 : vector<1x16xf32>
      %127 = vector.extract_strided_slice %119 {offsets = [0, 32], sizes = [1, 16], strides = [1, 1]} : vector<1x48xf32> to vector<1x16xf32>
      %128 = math.tanh %126 : vector<1x16xf32>
      %129 = arith.mulf %127, %128 : vector<1x16xf32>
      %130 = arith.index_cast %109 : i32 to index
      %c0_83 = arith.constant 0 : index
      %131 = vector.load %arg24[%130, %c0_83] : memref<120x16xf32, #tpu.memory_space<vmem>>, vector<1x16xf32>
      tpu.vector_store %arg24[%130, %c0_83], %129 {strides = array<i32>} : memref<120x16xf32, #tpu.memory_space<vmem>>, vector<1x16xf32>,
      %c2_i32 = arith.constant 2 : i32
      %132 = arith.addi %60, %c2_i32 : i32
      %133 = arith.index_cast %132 : i32 to index
      %c0_84 = arith.constant 0 : index
      %134 = vector.load %arg23[%133, %c0_84] : memref<120x64xf32, #tpu.memory_space<vmem>>, vector<1x64xf32>
      %cst_85 = arith.constant dense<0.000000e+00> : vector<1x64xf32>
      %135 = tpu.matmul %129, %33, %cst_85 {dimension_numbers = #tpu.dot_dimension_numbers<[1], [0], [0], [1], [0, 0, 1, 1], [], []>} : vector<1x16xf32>, vector<16x64xf32>, vector<1x64xf32> -> vector<1x64xf32>
      %136 = arith.addf %134, %135 : vector<1x64xf32>
      %137 = vector.extract_strided_slice %136 {offsets = [0, 0], sizes = [1, 48], strides = [1, 1]} : vector<1x64xf32> to vector<1x48xf32>
      %138 = arith.negf %137 : vector<1x48xf32>
      %139 = math.exp %138 : vector<1x48xf32>
      %cst_86 = arith.constant 1.000000e+00 : f32
      %140 = vector.broadcast %cst_86 : f32 to vector<1x48xf32>
      %141 = arith.addf %140, %139 : vector<1x48xf32>
      %142 = arith.divf %140, %141 : vector<1x48xf32>
      %143 = vector.extract_strided_slice %136 {offsets = [0, 48], sizes = [1, 16], strides = [1, 1]} : vector<1x64xf32> to vector<1x16xf32>
      %144 = math.tanh %143 : vector<1x16xf32>
      %145 = vector.extract_strided_slice %142 {offsets = [0, 16], sizes = [1, 16], strides = [1, 1]} : vector<1x48xf32> to vector<1x16xf32>
      %146 = arith.mulf %145, %126 : vector<1x16xf32>
      %147 = vector.extract_strided_slice %142 {offsets = [0, 0], sizes = [1, 16], strides = [1, 1]} : vector<1x48xf32> to vector<1x16xf32>
      %148 = arith.mulf %147, %144 : vector<1x16xf32>
      %149 = arith.addf %146, %148 : vector<1x16xf32>
      %150 = vector.extract_strided_slice %142 {offsets = [0, 32], sizes = [1, 16], strides = [1, 1]} : vector<1x48xf32> to vector<1x16xf32>
      %151 = math.tanh %149 : vector<1x16xf32>
      %152 = arith.mulf %150, %151 : vector<1x16xf32>
      %153 = arith.index_cast %132 : i32 to index
      %c0_87 = arith.constant 0 : index
      %154 = vector.load %arg24[%153, %c0_87] : memref<120x16xf32, #tpu.memory_space<vmem>>, vector<1x16xf32>
      tpu.vector_store %arg24[%153, %c0_87], %152 {strides = array<i32>} : memref<120x16xf32, #tpu.memory_space<vmem>>, vector<1x16xf32>,
      %c3_i32 = arith.constant 3 : i32
      %155 = arith.addi %60, %c3_i32 : i32
      %156 = arith.index_cast %155 : i32 to index
      %c0_88 = arith.constant 0 : index
      %157 = vector.load %arg23[%156, %c0_88] : memref<120x64xf32, #tpu.memory_space<vmem>>, vector<1x64xf32>
      %cst_89 = arith.constant dense<0.000000e+00> : vector<1x64xf32>
      %158 = tpu.matmul %152, %33, %cst_89 {dimension_numbers = #tpu.dot_dimension_numbers<[1], [0], [0], [1], [0, 0, 1, 1], [], []>} : vector<1x16xf32>, vector<16x64xf32>, vector<1x64xf32> -> vector<1x64xf32>
      %159 = arith.addf %157, %158 : vector<1x64xf32>
      %160 = vector.extract_strided_slice %159 {offsets = [0, 0], sizes = [1, 48], strides = [1, 1]} : vector<1x64xf32> to vector<1x48xf32>
      %161 = arith.negf %160 : vector<1x48xf32>
      %162 = math.exp %161 : vector<1x48xf32>
      %cst_90 = arith.constant 1.000000e+00 : f32
      %163 = vector.broadcast %cst_90 : f32 to vector<1x48xf32>
      %164 = arith.addf %163, %162 : vector<1x48xf32>
      %165 = arith.divf %163, %164 : vector<1x48xf32>
      %166 = vector.extract_strided_slice %159 {offsets = [0, 48], sizes = [1, 16], strides = [1, 1]} : vector<1x64xf32> to vector<1x16xf32>
      %167 = math.tanh %166 : vector<1x16xf32>
      %168 = vector.extract_strided_slice %165 {offsets = [0, 16], sizes = [1, 16], strides = [1, 1]} : vector<1x48xf32> to vector<1x16xf32>
      %169 = arith.mulf %168, %149 : vector<1x16xf32>
      %170 = vector.extract_strided_slice %165 {offsets = [0, 0], sizes = [1, 16], strides = [1, 1]} : vector<1x48xf32> to vector<1x16xf32>
      %171 = arith.mulf %170, %167 : vector<1x16xf32>
      %172 = arith.addf %169, %171 : vector<1x16xf32>
      %173 = vector.extract_strided_slice %165 {offsets = [0, 32], sizes = [1, 16], strides = [1, 1]} : vector<1x48xf32> to vector<1x16xf32>
      %174 = math.tanh %172 : vector<1x16xf32>
      %175 = arith.mulf %173, %174 : vector<1x16xf32>
      %176 = arith.index_cast %155 : i32 to index
      %c0_91 = arith.constant 0 : index
      %177 = vector.load %arg24[%176, %c0_91] : memref<120x16xf32, #tpu.memory_space<vmem>>, vector<1x16xf32>
      tpu.vector_store %arg24[%176, %c0_91], %175 {strides = array<i32>} : memref<120x16xf32, #tpu.memory_space<vmem>>, vector<1x16xf32>,
      %c4_i32 = arith.constant 4 : i32
      %178 = arith.addi %60, %c4_i32 : i32
      %179 = arith.index_cast %178 : i32 to index
      %c0_92 = arith.constant 0 : index
      %180 = vector.load %arg23[%179, %c0_92] : memref<120x64xf32, #tpu.memory_space<vmem>>, vector<1x64xf32>
      %cst_93 = arith.constant dense<0.000000e+00> : vector<1x64xf32>
      %181 = tpu.matmul %175, %33, %cst_93 {dimension_numbers = #tpu.dot_dimension_numbers<[1], [0], [0], [1], [0, 0, 1, 1], [], []>} : vector<1x16xf32>, vector<16x64xf32>, vector<1x64xf32> -> vector<1x64xf32>
      %182 = arith.addf %180, %181 : vector<1x64xf32>
      %183 = vector.extract_strided_slice %182 {offsets = [0, 0], sizes = [1, 48], strides = [1, 1]} : vector<1x64xf32> to vector<1x48xf32>
      %184 = arith.negf %183 : vector<1x48xf32>
      %185 = math.exp %184 : vector<1x48xf32>
      %cst_94 = arith.constant 1.000000e+00 : f32
      %186 = vector.broadcast %cst_94 : f32 to vector<1x48xf32>
      %187 = arith.addf %186, %185 : vector<1x48xf32>
      %188 = arith.divf %186, %187 : vector<1x48xf32>
      %189 = vector.extract_strided_slice %182 {offsets = [0, 48], sizes = [1, 16], strides = [1, 1]} : vector<1x64xf32> to vector<1x16xf32>
      %190 = math.tanh %189 : vector<1x16xf32>
      %191 = vector.extract_strided_slice %188 {offsets = [0, 16], sizes = [1, 16], strides = [1, 1]} : vector<1x48xf32> to vector<1x16xf32>
      %192 = arith.mulf %191, %172 : vector<1x16xf32>
      %193 = vector.extract_strided_slice %188 {offsets = [0, 0], sizes = [1, 16], strides = [1, 1]} : vector<1x48xf32> to vector<1x16xf32>
      %194 = arith.mulf %193, %190 : vector<1x16xf32>
      %195 = arith.addf %192, %194 : vector<1x16xf32>
      %196 = vector.extract_strided_slice %188 {offsets = [0, 32], sizes = [1, 16], strides = [1, 1]} : vector<1x48xf32> to vector<1x16xf32>
      %197 = math.tanh %195 : vector<1x16xf32>
      %198 = arith.mulf %196, %197 : vector<1x16xf32>
      %199 = arith.index_cast %178 : i32 to index
      %c0_95 = arith.constant 0 : index
      %200 = vector.load %arg24[%199, %c0_95] : memref<120x16xf32, #tpu.memory_space<vmem>>, vector<1x16xf32>
      tpu.vector_store %arg24[%199, %c0_95], %198 {strides = array<i32>} : memref<120x16xf32, #tpu.memory_space<vmem>>, vector<1x16xf32>,
      %c5_i32 = arith.constant 5 : i32
      %201 = arith.addi %60, %c5_i32 : i32
      %202 = arith.index_cast %201 : i32 to index
      %c0_96 = arith.constant 0 : index
      %203 = vector.load %arg23[%202, %c0_96] : memref<120x64xf32, #tpu.memory_space<vmem>>, vector<1x64xf32>
      %cst_97 = arith.constant dense<0.000000e+00> : vector<1x64xf32>
      %204 = tpu.matmul %198, %33, %cst_97 {dimension_numbers = #tpu.dot_dimension_numbers<[1], [0], [0], [1], [0, 0, 1, 1], [], []>} : vector<1x16xf32>, vector<16x64xf32>, vector<1x64xf32> -> vector<1x64xf32>
      %205 = arith.addf %203, %204 : vector<1x64xf32>
      %206 = vector.extract_strided_slice %205 {offsets = [0, 0], sizes = [1, 48], strides = [1, 1]} : vector<1x64xf32> to vector<1x48xf32>
      %207 = arith.negf %206 : vector<1x48xf32>
      %208 = math.exp %207 : vector<1x48xf32>
      %cst_98 = arith.constant 1.000000e+00 : f32
      %209 = vector.broadcast %cst_98 : f32 to vector<1x48xf32>
      %210 = arith.addf %209, %208 : vector<1x48xf32>
      %211 = arith.divf %209, %210 : vector<1x48xf32>
      %212 = vector.extract_strided_slice %205 {offsets = [0, 48], sizes = [1, 16], strides = [1, 1]} : vector<1x64xf32> to vector<1x16xf32>
      %213 = math.tanh %212 : vector<1x16xf32>
      %214 = vector.extract_strided_slice %211 {offsets = [0, 16], sizes = [1, 16], strides = [1, 1]} : vector<1x48xf32> to vector<1x16xf32>
      %215 = arith.mulf %214, %195 : vector<1x16xf32>
      %216 = vector.extract_strided_slice %211 {offsets = [0, 0], sizes = [1, 16], strides = [1, 1]} : vector<1x48xf32> to vector<1x16xf32>
      %217 = arith.mulf %216, %213 : vector<1x16xf32>
      %218 = arith.addf %215, %217 : vector<1x16xf32>
      %219 = vector.extract_strided_slice %211 {offsets = [0, 32], sizes = [1, 16], strides = [1, 1]} : vector<1x48xf32> to vector<1x16xf32>
      %220 = math.tanh %218 : vector<1x16xf32>
      %221 = arith.mulf %219, %220 : vector<1x16xf32>
      %222 = arith.index_cast %201 : i32 to index
      %c0_99 = arith.constant 0 : index
      %223 = vector.load %arg24[%222, %c0_99] : memref<120x16xf32, #tpu.memory_space<vmem>>, vector<1x16xf32>
      tpu.vector_store %arg24[%222, %c0_99], %221 {strides = array<i32>} : memref<120x16xf32, #tpu.memory_space<vmem>>, vector<1x16xf32>,
      %c6_i32 = arith.constant 6 : i32
      %224 = arith.addi %60, %c6_i32 : i32
      %225 = arith.index_cast %224 : i32 to index
      %c0_100 = arith.constant 0 : index
      %226 = vector.load %arg23[%225, %c0_100] : memref<120x64xf32, #tpu.memory_space<vmem>>, vector<1x64xf32>
      %cst_101 = arith.constant dense<0.000000e+00> : vector<1x64xf32>
      %227 = tpu.matmul %221, %33, %cst_101 {dimension_numbers = #tpu.dot_dimension_numbers<[1], [0], [0], [1], [0, 0, 1, 1], [], []>} : vector<1x16xf32>, vector<16x64xf32>, vector<1x64xf32> -> vector<1x64xf32>
      %228 = arith.addf %226, %227 : vector<1x64xf32>
      %229 = vector.extract_strided_slice %228 {offsets = [0, 0], sizes = [1, 48], strides = [1, 1]} : vector<1x64xf32> to vector<1x48xf32>
      %230 = arith.negf %229 : vector<1x48xf32>
      %231 = math.exp %230 : vector<1x48xf32>
      %cst_102 = arith.constant 1.000000e+00 : f32
      %232 = vector.broadcast %cst_102 : f32 to vector<1x48xf32>
      %233 = arith.addf %232, %231 : vector<1x48xf32>
      %234 = arith.divf %232, %233 : vector<1x48xf32>
      %235 = vector.extract_strided_slice %228 {offsets = [0, 48], sizes = [1, 16], strides = [1, 1]} : vector<1x64xf32> to vector<1x16xf32>
      %236 = math.tanh %235 : vector<1x16xf32>
      %237 = vector.extract_strided_slice %234 {offsets = [0, 16], sizes = [1, 16], strides = [1, 1]} : vector<1x48xf32> to vector<1x16xf32>
      %238 = arith.mulf %237, %218 : vector<1x16xf32>
      %239 = vector.extract_strided_slice %234 {offsets = [0, 0], sizes = [1, 16], strides = [1, 1]} : vector<1x48xf32> to vector<1x16xf32>
      %240 = arith.mulf %239, %236 : vector<1x16xf32>
      %241 = arith.addf %238, %240 : vector<1x16xf32>
      %242 = vector.extract_strided_slice %234 {offsets = [0, 32], sizes = [1, 16], strides = [1, 1]} : vector<1x48xf32> to vector<1x16xf32>
      %243 = math.tanh %241 : vector<1x16xf32>
      %244 = arith.mulf %242, %243 : vector<1x16xf32>
      %245 = arith.index_cast %224 : i32 to index
      %c0_103 = arith.constant 0 : index
      %246 = vector.load %arg24[%245, %c0_103] : memref<120x16xf32, #tpu.memory_space<vmem>>, vector<1x16xf32>
      tpu.vector_store %arg24[%245, %c0_103], %244 {strides = array<i32>} : memref<120x16xf32, #tpu.memory_space<vmem>>, vector<1x16xf32>,
      %c7_i32 = arith.constant 7 : i32
      %247 = arith.addi %60, %c7_i32 : i32
      %248 = arith.index_cast %247 : i32 to index
      %c0_104 = arith.constant 0 : index
      %249 = vector.load %arg23[%248, %c0_104] : memref<120x64xf32, #tpu.memory_space<vmem>>, vector<1x64xf32>
      %cst_105 = arith.constant dense<0.000000e+00> : vector<1x64xf32>
      %250 = tpu.matmul %244, %33, %cst_105 {dimension_numbers = #tpu.dot_dimension_numbers<[1], [0], [0], [1], [0, 0, 1, 1], [], []>} : vector<1x16xf32>, vector<16x64xf32>, vector<1x64xf32> -> vector<1x64xf32>
      %251 = arith.addf %249, %250 : vector<1x64xf32>
      %252 = vector.extract_strided_slice %251 {offsets = [0, 0], sizes = [1, 48], strides = [1, 1]} : vector<1x64xf32> to vector<1x48xf32>
      %253 = arith.negf %252 : vector<1x48xf32>
      %254 = math.exp %253 : vector<1x48xf32>
      %cst_106 = arith.constant 1.000000e+00 : f32
      %255 = vector.broadcast %cst_106 : f32 to vector<1x48xf32>
      %256 = arith.addf %255, %254 : vector<1x48xf32>
      %257 = arith.divf %255, %256 : vector<1x48xf32>
      %258 = vector.extract_strided_slice %251 {offsets = [0, 48], sizes = [1, 16], strides = [1, 1]} : vector<1x64xf32> to vector<1x16xf32>
      %259 = math.tanh %258 : vector<1x16xf32>
      %260 = vector.extract_strided_slice %257 {offsets = [0, 16], sizes = [1, 16], strides = [1, 1]} : vector<1x48xf32> to vector<1x16xf32>
      %261 = arith.mulf %260, %241 : vector<1x16xf32>
      %262 = vector.extract_strided_slice %257 {offsets = [0, 0], sizes = [1, 16], strides = [1, 1]} : vector<1x48xf32> to vector<1x16xf32>
      %263 = arith.mulf %262, %259 : vector<1x16xf32>
      %264 = arith.addf %261, %263 : vector<1x16xf32>
      %265 = vector.extract_strided_slice %257 {offsets = [0, 32], sizes = [1, 16], strides = [1, 1]} : vector<1x48xf32> to vector<1x16xf32>
      %266 = math.tanh %264 : vector<1x16xf32>
      %267 = arith.mulf %265, %266 : vector<1x16xf32>
      %268 = arith.index_cast %247 : i32 to index
      %c0_107 = arith.constant 0 : index
      %269 = vector.load %arg24[%268, %c0_107] : memref<120x16xf32, #tpu.memory_space<vmem>>, vector<1x16xf32>
      tpu.vector_store %arg24[%268, %c0_107], %267 {strides = array<i32>} : memref<120x16xf32, #tpu.memory_space<vmem>>, vector<1x16xf32>,
      scf.yield %267, %264 : vector<1x16xf32>, vector<1x16xf32>
    }
    %c15_i32_44 = arith.constant 15 : i32
    %c0_45 = arith.constant 0 : index
    %c0_46 = arith.constant 0 : index
    %41 = vector.load %arg24[%c0_45, %c0_46] : memref<120x16xf32, #tpu.memory_space<vmem>>, vector<120x16xf32>
    %c0_47 = arith.constant 0 : index
    %c0_48 = arith.constant 0 : index
    %42 = vector.load %arg13[%c0_47, %c0_48] : memref<120x120xf32, #tpu.memory_space<vmem>>, vector<120x120xf32>
    %cst_49 = arith.constant dense<0.000000e+00> : vector<120x16xf32>
    %43 = tpu.matmul %42, %41, %cst_49 {dimension_numbers = #tpu.dot_dimension_numbers<[1], [0], [0], [1], [0, 0, 1, 1], [], []>} : vector<120x120xf32>, vector<120x16xf32>, vector<120x16xf32> -> vector<120x16xf32>
    %c0_50 = arith.constant 0 : index
    %c0_51 = arith.constant 0 : index
    %44 = vector.load %arg25[%c0_50, %c0_51] : memref<120x16xf32, #tpu.memory_space<vmem>>, vector<120x16xf32>
    %c0_52 = arith.constant 0 : index
    %c0_53 = arith.constant 0 : index
    %45 = vector.load %arg19[%c0_52, %c0_53] : memref<32x6xf32, #tpu.memory_space<vmem>>, vector<16x6xf32>
    %cst_54 = arith.constant dense<0.000000e+00> : vector<120x6xf32>
    %46 = tpu.matmul %44, %45, %cst_54 {dimension_numbers = #tpu.dot_dimension_numbers<[1], [0], [0], [1], [0, 0, 1, 1], [], []>} : vector<120x16xf32>, vector<16x6xf32>, vector<120x6xf32> -> vector<120x6xf32>
    %47 = vector.extract_strided_slice %41 {offsets = [0, 0], sizes = [120, 8], strides = [1, 1]} : vector<120x16xf32> to vector<120x8xf32>
    %c16 = arith.constant 16 : index
    %c0_55 = arith.constant 0 : index
    %48 = vector.load %arg19[%c16, %c0_55] : memref<32x6xf32, #tpu.memory_space<vmem>>, vector<8x6xf32>
    %cst_56 = arith.constant dense<0.000000e+00> : vector<120x6xf32>
    %49 = tpu.matmul %47, %48, %cst_56 {dimension_numbers = #tpu.dot_dimension_numbers<[1], [0], [0], [1], [0, 0, 1, 1], [], []>} : vector<120x8xf32>, vector<8x6xf32>, vector<120x6xf32> -> vector<120x6xf32>
    %50 = arith.addf %46, %49 : vector<120x6xf32>
    %51 = vector.extract_strided_slice %43 {offsets = [0, 8], sizes = [120, 8], strides = [1, 1]} : vector<120x16xf32> to vector<120x8xf32>
    %c24 = arith.constant 24 : index
    %c0_57 = arith.constant 0 : index
    %52 = vector.load %arg19[%c24, %c0_57] : memref<32x6xf32, #tpu.memory_space<vmem>>, vector<8x6xf32>
    %cst_58 = arith.constant dense<0.000000e+00> : vector<120x6xf32>
    %53 = tpu.matmul %51, %52, %cst_58 {dimension_numbers = #tpu.dot_dimension_numbers<[1], [0], [0], [1], [0, 0, 1, 1], [], []>} : vector<120x8xf32>, vector<8x6xf32>, vector<120x6xf32> -> vector<120x6xf32>
    %54 = arith.addf %50, %53 : vector<120x6xf32>
    %c0_59 = arith.constant 0 : index
    %c0_60 = arith.constant 0 : index
    %55 = vector.load %arg20[%c0_59, %c0_60] : memref<1x6xf32, #tpu.memory_space<vmem>>, vector<1x6xf32>
    %56 = vector.broadcast %55 : vector<1x6xf32> to vector<120x6xf32>
    %57 = arith.addf %54, %56 : vector<120x6xf32>
    %c0_61 = arith.constant 0 : index
    %c0_62 = arith.constant 0 : index
    %58 = vector.load %arg21[%c0_61, %c0_62] : memref<120x6xf32, #tpu.memory_space<vmem>>, vector<120x6xf32>
    tpu.vector_store %arg21[%c0_61, %c0_62], %57 {strides = array<i32>} : memref<120x6xf32, #tpu.memory_space<vmem>>, vector<120x6xf32>,
    return
  }
}

</mosaic_0001>

<llo_original>
// kernel: _gat_fp_pallas.1
$region0: #{_gat_fp_pallas.1}
  #allocation0 [shape = 'u32[]', space=smem, size = 0x4, offset = 0x4, fixed_abs, tag = 'smem constant byte address 0x4 - core index']
  #allocation1 [shape = 'u32[144,128]{1,0:T(1,128)}', space=vmem, size = 0x12000, scoped, tag = 'internal scratch']
  #allocation2 [shape = 'f32[120,192]{1,0:T(8,128)}', space=vmem, size = 0x1e000, scoped, tag = 'scratch operand']
  #allocation3 [shape = 'f32[120,64]{1,0:T(8,128)}', space=vmem, size = 0xf000, scoped, tag = 'scratch operand']
  #allocation4 [shape = 'f32[120,16]{1,0:T(8,128)}', space=vmem, size = 0xf000, scoped, tag = 'scratch operand']
  #allocation5 [shape = 'f32[120,16]{1,0:T(8,128)}', space=vmem, size = 0xf000, scoped, tag = 'scratch operand']
  %s0 = inlined_call_operand.vmem [shape: bf16[120,1024], index: 0, kind: input, shape index: {}]
  %s1 = inlined_call_operand.vmem [shape: bf16[120,512], index: 1, kind: input, shape index: {}]
  %s2 = inlined_call_operand.vmem [shape: bf16[120,1024], index: 2, kind: input, shape index: {}]
  %s3 = inlined_call_operand.vmem [shape: bf16[1024,64], index: 3, kind: input, shape index: {}]
  %s4 = inlined_call_operand.hbm [shape: f32[1,64], index: 4, kind: input, shape index: {}]
  %s5 = inlined_call_operand.vmem [shape: bf16[512,64], index: 5, kind: input, shape index: {}]
  %s6 = inlined_call_operand.hbm [shape: f32[1,64], index: 6, kind: input, shape index: {}]
  %s7 = inlined_call_operand.vmem [shape: bf16[1024,64], index: 7, kind: input, shape index: {}]
  %s8 = inlined_call_operand.hbm [shape: f32[1,64], index: 8, kind: input, shape index: {}]
  %s9 = inlined_call_operand.vmem [shape: f32[192,64], index: 9, kind: input, shape index: {}]
  %s10 = inlined_call_operand.hbm [shape: f32[1,64], index: 10, kind: input, shape index: {}]
  %s11 = inlined_call_operand.vmem [shape: f32[16,64], index: 11, kind: input, shape index: {}]
  %s12 = inlined_call_operand.hbm [shape: f32[1,64], index: 12, kind: input, shape index: {}]
  %s13 = inlined_call_operand.vmem [shape: f32[120,120], index: 13, kind: input, shape index: {}]
  %s14 = inlined_call_operand.hbm [shape: f32[120,120], index: 14, kind: input, shape index: {}]
  %s15 = inlined_call_operand.vmem [shape: f32[192,192], index: 15, kind: input, shape index: {}]
  %s16 = inlined_call_operand.hbm [shape: f32[1,192], index: 16, kind: input, shape index: {}]
  %s17 = inlined_call_operand.vmem [shape: f32[192,16], index: 17, kind: input, shape index: {}]
  %s18 = inlined_call_operand.hbm [shape: f32[1,16], index: 18, kind: input, shape index: {}]
  %s19 = inlined_call_operand.vmem [shape: f32[32,6], index: 19, kind: input, shape index: {}]
  %s20 = inlined_call_operand.hbm [shape: f32[1,6], index: 20, kind: input, shape index: {}]
  %s21 = inlined_call_operand.vmem [shape: f32[120,6], index: 21, kind: output, shape index: {}]
  %s22 = sld [smem:[#allocation0]]
  $region137: #{_gat_fp_pallas.1} parent=0
    _
  %s24 = ssub.s32 1, %s22
  %s25 = scalar_select 0, %s24, %s22
  $region1: #{_gat_fp_pallas.1} parent=0
    #allocation6 [shape = 'u8[512]{0}', space=vmem, size = 0x400, scoped, tag = 'input window, operand 4, single buffered']
    #allocation7 [shape = 's32[1]{0}', space=sflag, size = 0x4, scoped, tag = 'scoped memory for _gat_fp_pallas.1']
    #allocation8 [shape = 'u8[512]{0}', space=vmem, size = 0x400, scoped, tag = 'input window, operand 6, single buffered']
    #allocation9 [shape = 's32[1]{0}', space=sflag, size = 0x4, scoped, tag = 'scoped memory for _gat_fp_pallas.1']
    #allocation10 [shape = 'u8[512]{0}', space=vmem, size = 0x400, scoped, tag = 'input window, operand 8, single buffered']
    #allocation11 [shape = 'u8[512]{0}', space=vmem, size = 0x400, scoped, tag = 'input window, operand 10, single buffered']
    #allocation12 [shape = 's32[1]{0}', space=sflag, size = 0x4, scoped, tag = 'scoped memory for _gat_fp_pallas.1']
    #allocation13 [shape = 'u8[512]{0}', space=vmem, size = 0x400, scoped, tag = 'input window, operand 12, single buffered']
    #allocation14 [shape = 'u8[61440]{0}', space=vmem, size = 0xf000, scoped, tag = 'input window, operand 14, single buffered']
    #allocation15 [shape = 's32[1]{0}', space=sflag, size = 0x4, scoped, tag = 'scoped memory for _gat_fp_pallas.1']
    #allocation16 [shape = 'u8[1024]{0}', space=vmem, size = 0x400, scoped, tag = 'input window, operand 16, single buffered']
    #allocation17 [shape = 'u8[512]{0}', space=vmem, size = 0x400, scoped, tag = 'input window, operand 18, single buffered']
    #allocation18 [shape = 's32[1]{0}', space=sflag, size = 0x4, scoped, tag = 'scoped memory for _gat_fp_pallas.1']
    #allocation19 [shape = 'u8[512]{0}', space=vmem, size = 0x400, scoped, tag = 'input window, operand 20, single buffered']
    %26 = vsyncpa [#allocation7], 0
    %27 = vsyncpa [#allocation9], 0
    %28 = vsyncpa [#allocation12], 0
    %29 = vsyncpa [#allocation15], 0
    %30 = vsyncpa [#allocation18], 0
    // Predicated region
    $region2: #{_gat_fp_pallas.1} parent=1 // pred_check
      _
    $region3: #{_gat_fp_pallas.1} parent=1 // pred_check_branch
      %32 = sbr.rel (0) target = $region5
    $region4: #{_gat_fp_pallas.1} parent=1 // pred_region
      _
    $region5: #{_gat_fp_pallas.1} parent=1 // pred_fallthru
      _
    // Predicated region
    $region6: #{_gat_fp_pallas.1} parent=1 // pred_check
      _
    $region7: #{_gat_fp_pallas.1} parent=1 // pred_check_branch
      %34 = sbr.rel (0) target = $region9
    $region8: #{_gat_fp_pallas.1} parent=1 // pred_region
      _
    $region9: #{_gat_fp_pallas.1} parent=1 // pred_fallthru
      _
    // Predicated region
    $region10: #{_gat_fp_pallas.1} parent=1 // pred_check
      _
    $region11: #{_gat_fp_pallas.1} parent=1 // pred_check_branch
      %36 = sbr.rel (0) target = $region13
    $region12: #{_gat_fp_pallas.1} parent=1 // pred_region
      _
    $region13: #{_gat_fp_pallas.1} parent=1 // pred_fallthru
      _
    // Predicated region
    $region14: #{_gat_fp_pallas.1} parent=1 // pred_check
      _
    $region15: #{_gat_fp_pallas.1} parent=1 // pred_check_branch
      %38 = sbr.rel (0) target = $region17
    $region16: #{_gat_fp_pallas.1} parent=1 // pred_region
      _
    $region17: #{_gat_fp_pallas.1} parent=1 // pred_fallthru
      _
    // Predicated region
    $region18: #{_gat_fp_pallas.1} parent=1 // pred_check
      _
    $region19: #{_gat_fp_pallas.1} parent=1 // pred_check_branch
      %40 = sbr.rel (0) target = $region21
    $region20: #{_gat_fp_pallas.1} parent=1 // pred_region
      %s42 = ssub.s32 16, 16
      %43 = vsyncadd [#allocation7], %s42
      %s45 = sshll.u32 [#allocation6], 4
      %s46 = int_to_ptr.vmem [resolvable:$true] %s45
      %48 = dma.hbm_to_vmem [thread:$0]  %s4, 16, %s46, [#allocation7]
    $region21: #{_gat_fp_pallas.1} parent=1 // pred_fallthru
      _
    // Predicated region
    $region22: #{_gat_fp_pallas.1} parent=1 // pred_check
      _
    $region23: #{_gat_fp_pallas.1} parent=1 // pred_check_branch
      %50 = sbr.rel (0) target = $region25
    $region24: #{_gat_fp_pallas.1} parent=1 // pred_region
      _
    $region25: #{_gat_fp_pallas.1} parent=1 // pred_fallthru
      _
    // Predicated region
    $region26: #{_gat_fp_pallas.1} parent=1 // pred_check
      _
    $region27: #{_gat_fp_pallas.1} parent=1 // pred_check_branch
      %52 = sbr.rel (0) target = $region29
    $region28: #{_gat_fp_pallas.1} parent=1 // pred_region
      %s54 = ssub.s32 16, 16
      %55 = vsyncadd [#allocation9], %s54
      %s57 = sshll.u32 [#allocation8], 4
      %s58 = int_to_ptr.vmem [resolvable:$true] %s57
      %60 = dma.hbm_to_vmem [thread:$0]  %s6, 16, %s58, [#allocation9]
    $region29: #{_gat_fp_pallas.1} parent=1 // pred_fallthru
      _
    // Predicated region
    $region30: #{_gat_fp_pallas.1} parent=1 // pred_check
      _
    $region31: #{_gat_fp_pallas.1} parent=1 // pred_check_branch
      %62 = sbr.rel (0) target = $region33
    $region32: #{_gat_fp_pallas.1} parent=1 // pred_region
      _
    $region33: #{_gat_fp_pallas.1} parent=1 // pred_fallthru
      _
    // Predicated region
    $region34: #{_gat_fp_pallas.1} parent=1 // pred_check
      _
    $region35: #{_gat_fp_pallas.1} parent=1 // pred_check_branch
      %64 = sbr.rel (0) target = $region37
    $region36: #{_gat_fp_pallas.1} parent=1 // pred_region
      %s66 = ssub.s32 16, 16
      %67 = vsyncadd [#allocation9], %s66
      %s69 = sshll.u32 [#allocation10], 4
      %s70 = int_to_ptr.vmem [resolvable:$true] %s69
      %72 = dma.hbm_to_vmem [thread:$0]  %s8, 16, %s70, [#allocation9]
    $region37: #{_gat_fp_pallas.1} parent=1 // pred_fallthru
      _
    // Predicated region
    $region38: #{_gat_fp_pallas.1} parent=1 // pred_check
      _
    $region39: #{_gat_fp_pallas.1} parent=1 // pred_check_branch
      %74 = sbr.rel (0) target = $region41
    $region40: #{_gat_fp_pallas.1} parent=1 // pred_region
      _
    $region41: #{_gat_fp_pallas.1} parent=1 // pred_fallthru
      _
    // Predicated region
    $region42: #{_gat_fp_pallas.1} parent=1 // pred_check
      _
    $region43: #{_gat_fp_pallas.1} parent=1 // pred_check_branch
      %76 = sbr.rel (0) target = $region45
    $region44: #{_gat_fp_pallas.1} parent=1 // pred_region
      %s78 = ssub.s32 16, 16
      %79 = vsyncadd [#allocation12], %s78
      %s81 = sshll.u32 [#allocation11], 4
      %s82 = int_to_ptr.vmem [resolvable:$true] %s81
      %84 = dma.hbm_to_vmem [thread:$0]  %s10, 16, %s82, [#allocation12]
    $region45: #{_gat_fp_pallas.1} parent=1 // pred_fallthru
      _
    // Predicated region
    $region46: #{_gat_fp_pallas.1} parent=1 // pred_check
      _
    $region47: #{_gat_fp_pallas.1} parent=1 // pred_check_branch
      %86 = sbr.rel (0) target = $region49
    $region48: #{_gat_fp_pallas.1} parent=1 // pred_region
      _
    $region49: #{_gat_fp_pallas.1} parent=1 // pred_fallthru
      _
    // Predicated region
    $region50: #{_gat_fp_pallas.1} parent=1 // pred_check
      _
    $region51: #{_gat_fp_pallas.1} parent=1 // pred_check_branch
      %88 = sbr.rel (0) target = $region53
    $region52: #{_gat_fp_pallas.1} parent=1 // pred_region
      %s90 = ssub.s32 16, 16
      %91 = vsyncadd [#allocation12], %s90
      %s93 = sshll.u32 [#allocation13], 4
      %s94 = int_to_ptr.vmem [resolvable:$true] %s93
      %96 = dma.hbm_to_vmem [thread:$0]  %s12, 16, %s94, [#allocation12]
    $region53: #{_gat_fp_pallas.1} parent=1 // pred_fallthru
      _
    // Predicated region
    $region54: #{_gat_fp_pallas.1} parent=1 // pred_check
      _
    $region55: #{_gat_fp_pallas.1} parent=1 // pred_check_branch
      %98 = sbr.rel (0) target = $region57
    $region56: #{_gat_fp_pallas.1} parent=1 // pred_region
      _
    $region57: #{_gat_fp_pallas.1} parent=1 // pred_fallthru
      _
    // Predicated region
    $region58: #{_gat_fp_pallas.1} parent=1 // pred_check
      _
    $region59: #{_gat_fp_pallas.1} parent=1 // pred_check_branch
      %100 = sbr.rel (0) target = $region61
    $region60: #{_gat_fp_pallas.1} parent=1 // pred_region
      %s102 = ssub.s32 1920, 1920
      %103 = vsyncadd [#allocation15], %s102
      %s104 = sshll.u32 [#allocation14], 4
      %s105 = int_to_ptr.vmem [resolvable:$true] %s104
      %110 = dma.hbm_to_vmem [thread:$0]  %s14, 1920, %s105, [#allocation15], 128, 128, 8
    $region61: #{_gat_fp_pallas.1} parent=1 // pred_fallthru
      _
    // Predicated region
    $region62: #{_gat_fp_pallas.1} parent=1 // pred_check
      _
    $region63: #{_gat_fp_pallas.1} parent=1 // pred_check_branch
      %112 = sbr.rel (0) target = $region65
    $region64: #{_gat_fp_pallas.1} parent=1 // pred_region
      _
    $region65: #{_gat_fp_pallas.1} parent=1 // pred_fallthru
      _
    // Predicated region
    $region66: #{_gat_fp_pallas.1} parent=1 // pred_check
      _
    $region67: #{_gat_fp_pallas.1} parent=1 // pred_check_branch
      %114 = sbr.rel (0) target = $region69
    $region68: #{_gat_fp_pallas.1} parent=1 // pred_region
      %s116 = ssub.s32 32, 32
      %117 = vsyncadd [#allocation15], %s116
      %s119 = sshll.u32 [#allocation16], 4
      %s120 = int_to_ptr.vmem [resolvable:$true] %s119
      %122 = dma.hbm_to_vmem [thread:$0]  %s16, 32, %s120, [#allocation15]
    $region69: #{_gat_fp_pallas.1} parent=1 // pred_fallthru
      _
    // Predicated region
    $region70: #{_gat_fp_pallas.1} parent=1 // pred_check
      _
    $region71: #{_gat_fp_pallas.1} parent=1 // pred_check_branch
      %124 = sbr.rel (0) target = $region73
    $region72: #{_gat_fp_pallas.1} parent=1 // pred_region
      _
    $region73: #{_gat_fp_pallas.1} parent=1 // pred_fallthru
      _
    // Predicated region
    $region74: #{_gat_fp_pallas.1} parent=1 // pred_check
      _
    $region75: #{_gat_fp_pallas.1} parent=1 // pred_check_branch
      %126 = sbr.rel (0) target = $region77
    $region76: #{_gat_fp_pallas.1} parent=1 // pred_region
      %s128 = ssub.s32 16, 16
      %129 = vsyncadd [#allocation18], %s128
      %s131 = sshll.u32 [#allocation17], 4
      %s132 = int_to_ptr.vmem [resolvable:$true] %s131
      %134 = dma.hbm_to_vmem [thread:$0]  %s18, 16, %s132, [#allocation18]
    $region77: #{_gat_fp_pallas.1} parent=1 // pred_fallthru
      _
    // Predicated region
    $region78: #{_gat_fp_pallas.1} parent=1 // pred_check
      _
    $region79: #{_gat_fp_pallas.1} parent=1 // pred_check_branch
      %136 = sbr.rel (0) target = $region81
    $region80: #{_gat_fp_pallas.1} parent=1 // pred_region
      _
    $region81: #{_gat_fp_pallas.1} parent=1 // pred_fallthru
      _
    // Predicated region
    $region82: #{_gat_fp_pallas.1} parent=1 // pred_check
      _
    $region83: #{_gat_fp_pallas.1} parent=1 // pred_check_branch
      %138 = sbr.rel (0) target = $region85
    $region84: #{_gat_fp_pallas.1} parent=1 // pred_region
      %s140 = ssub.s32 16, 16
      %141 = vsyncadd [#allocation18], %s140
      %s143 = sshll.u32 [#allocation19], 4
      %s144 = int_to_ptr.vmem [resolvable:$true] %s143
      %146 = dma.hbm_to_vmem [thread:$0]  %s20, 16, %s144, [#allocation18]
    $region85: #{_gat_fp_pallas.1} parent=1 // pred_fallthru
      _
    // Predicated region
    $region86: #{_gat_fp_pallas.1} parent=1 // pred_check
      _
    $region87: #{_gat_fp_pallas.1} parent=1 // pred_check_branch
      %148 = sbr.rel (0) target = $region89
    $region88: #{_gat_fp_pallas.1} parent=1 // pred_region
      %149 = dma.done [#allocation7], 16
    $region89: #{_gat_fp_pallas.1} parent=1 // pred_fallthru
      _
    // Predicated region
    $region90: #{_gat_fp_pallas.1} parent=1 // pred_check
      _
    $region91: #{_gat_fp_pallas.1} parent=1 // pred_check_branch
      %151 = sbr.rel (0) target = $region93
    $region92: #{_gat_fp_pallas.1} parent=1 // pred_region
      %152 = dma.done [#allocation9], 16
    $region93: #{_gat_fp_pallas.1} parent=1 // pred_fallthru
      _
    // Predicated region
    $region94: #{_gat_fp_pallas.1} parent=1 // pred_check
      _
    $region95: #{_gat_fp_pallas.1} parent=1 // pred_check_branch
      %154 = sbr.rel (0) target = $region97
    $region96: #{_gat_fp_pallas.1} parent=1 // pred_region
      %155 = dma.done [#allocation9], 16
    $region97: #{_gat_fp_pallas.1} parent=1 // pred_fallthru
      _
    // Predicated region
    $region98: #{_gat_fp_pallas.1} parent=1 // pred_check
      _
    $region99: #{_gat_fp_pallas.1} parent=1 // pred_check_branch
      %157 = sbr.rel (0) target = $region101
    $region100: #{_gat_fp_pallas.1} parent=1 // pred_region
      %158 = dma.done [#allocation12], 16
    $region101: #{_gat_fp_pallas.1} parent=1 // pred_fallthru
      _
    // Predicated region
    $region102: #{_gat_fp_pallas.1} parent=1 // pred_check
      _
    $region103: #{_gat_fp_pallas.1} parent=1 // pred_check_branch
      %160 = sbr.rel (0) target = $region105
    $region104: #{_gat_fp_pallas.1} parent=1 // pred_region
      %161 = dma.done [#allocation12], 16
    $region105: #{_gat_fp_pallas.1} parent=1 // pred_fallthru
      _
    // Predicated region
    $region106: #{_gat_fp_pallas.1} parent=1 // pred_check
      _
    $region107: #{_gat_fp_pallas.1} parent=1 // pred_check_branch
      %163 = sbr.rel (0) target = $region109
    $region108: #{_gat_fp_pallas.1} parent=1 // pred_region
      %164 = dma.done [#allocation15], 1920
    $region109: #{_gat_fp_pallas.1} parent=1 // pred_fallthru
      _
    // Predicated region
    $region110: #{_gat_fp_pallas.1} parent=1 // pred_check
      _
    $region111: #{_gat_fp_pallas.1} parent=1 // pred_check_branch
      %166 = sbr.rel (0) target = $region113
    $region112: #{_gat_fp_pallas.1} parent=1 // pred_region
      %167 = dma.done [#allocation15], 32
    $region113: #{_gat_fp_pallas.1} parent=1 // pred_fallthru
      _
    // Predicated region
    $region114: #{_gat_fp_pallas.1} parent=1 // pred_check
      _
    $region115: #{_gat_fp_pallas.1} parent=1 // pred_check_branch
      %169 = sbr.rel (0) target = $region117
    $region116: #{_gat_fp_pallas.1} parent=1 // pred_region
      %170 = dma.done [#allocation18], 16
    $region117: #{_gat_fp_pallas.1} parent=1 // pred_fallthru
      _
    // Predicated region
    $region118: #{_gat_fp_pallas.1} parent=1 // pred_check
      _
    $region119: #{_gat_fp_pallas.1} parent=1 // pred_check_branch
      %172 = sbr.rel (0) target = $region121
    $region120: #{_gat_fp_pallas.1} parent=1 // pred_region
      %173 = dma.done [#allocation18], 16
    $region121: #{_gat_fp_pallas.1} parent=1 // pred_fallthru
      _
    %v175 = vld [vmem:[%s0] sm:$0xff]
    %v176 = vld [vmem:[%s0 + $0x8] sm:$0xff]
    %v177 = vld [vmem:[%s0 + $0x10] sm:$0xff]
    %v178 = vld [vmem:[%s0 + $0x18] sm:$0xff]
    %v179 = vld [vmem:[%s0 + $0x20] sm:$0xff]
    %v180 = vld [vmem:[%s0 + $0x28] sm:$0xff]
    %v181 = vld [vmem:[%s0 + $0x30] sm:$0xff]
    %v182 = vld [vmem:[%s0 + $0x38] sm:$0xff]
    %v183 = vld [vmem:[%s0 + $0x40] sm:$0xff]
    %v184 = vld [vmem:[%s0 + $0x48] sm:$0xff]
    %v185 = vld [vmem:[%s0 + $0x50] sm:$0xff]
    %v186 = vld [vmem:[%s0 + $0x58] sm:$0xff]
    %v187 = vld [vmem:[%s0 + $0x60] sm:$0xff]
    %v188 = vld [vmem:[%s0 + $0x68] sm:$0xff]
    %v189 = vld [vmem:[%s0 + $0x70] sm:$0xff]
    %v190 = vld [vmem:[%s0 + $0x78] sm:$0xff]
    %v191 = vld [vmem:[%s0 + $0x80] sm:$0xff]
    %v192 = vld [vmem:[%s0 + $0x88] sm:$0xff]
    %v193 = vld [vmem:[%s0 + $0x90] sm:$0xff]
    %v194 = vld [vmem:[%s0 + $0x98] sm:$0xff]
    %v195 = vld [vmem:[%s0 + $0xa0] sm:$0xff]
    %v196 = vld [vmem:[%s0 + $0xa8] sm:$0xff]
    %v197 = vld [vmem:[%s0 + $0xb0] sm:$0xff]
    %v198 = vld [vmem:[%s0 + $0xb8] sm:$0xff]
    %v199 = vld [vmem:[%s0 + $0xc0] sm:$0xff]
    %v200 = vld [vmem:[%s0 + $0xc8] sm:$0xff]
    %v201 = vld [vmem:[%s0 + $0xd0] sm:$0xff]
    %v202 = vld [vmem:[%s0 + $0xd8] sm:$0xff]
    %v203 = vld [vmem:[%s0 + $0xe0] sm:$0xff]
    %v204 = vld [vmem:[%s0 + $0xe8] sm:$0xff]
    %v205 = vld [vmem:[%s0 + $0xf0] sm:$0xff]
    %v206 = vld [vmem:[%s0 + $0xf8] sm:$0xff]
    %v207 = vld [vmem:[%s0 + $0x100] sm:$0xff]
    %v208 = vld [vmem:[%s0 + $0x108] sm:$0xff]
    %v209 = vld [vmem:[%s0 + $0x110] sm:$0xff]
    %v210 = vld [vmem:[%s0 + $0x118] sm:$0xff]
    %v211 = vld [vmem:[%s0 + $0x120] sm:$0xff]
    %v212 = vld [vmem:[%s0 + $0x128] sm:$0xff]
    %v213 = vld [vmem:[%s0 + $0x130] sm:$0xff]
    %v214 = vld [vmem:[%s0 + $0x138] sm:$0xff]
    %v215 = vld [vmem:[%s0 + $0x140] sm:$0xff]
    %v216 = vld [vmem:[%s0 + $0x148] sm:$0xff]
    %v217 = vld [vmem:[%s0 + $0x150] sm:$0xff]
    %v218 = vld [vmem:[%s0 + $0x158] sm:$0xff]
    %v219 = vld [vmem:[%s0 + $0x160] sm:$0xff]
    %v220 = vld [vmem:[%s0 + $0x168] sm:$0xff]
    %v221 = vld [vmem:[%s0 + $0x170] sm:$0xff]
    %v222 = vld [vmem:[%s0 + $0x178] sm:$0xff]
    %v223 = vld [vmem:[%s0 + $0x180] sm:$0xff]
    %v224 = vld [vmem:[%s0 + $0x188] sm:$0xff]
    %v225 = vld [vmem:[%s0 + $0x190] sm:$0xff]
    %v226 = vld [vmem:[%s0 + $0x198] sm:$0xff]
    %v227 = vld [vmem:[%s0 + $0x1a0] sm:$0xff]
    %v228 = vld [vmem:[%s0 + $0x1a8] sm:$0xff]
    %v229 = vld [vmem:[%s0 + $0x1b0] sm:$0xff]
    %v230 = vld [vmem:[%s0 + $0x1b8] sm:$0xff]
    %v231 = vld [vmem:[%s0 + $0x1c0] sm:$0xff]
    %v232 = vld [vmem:[%s0 + $0x1c8] sm:$0xff]
    %v233 = vld [vmem:[%s0 + $0x1d0] sm:$0xff]
    %v234 = vld [vmem:[%s0 + $0x1d8] sm:$0xff]
    %v235 = vld [vmem:[%s3] sm:$0xf]
    %v236 = vld [vmem:[%s3 + $0x4] sm:$0xf]
    %v237 = vld [vmem:[%s3 + $0x8] sm:$0xf]
    %v238 = vld [vmem:[%s3 + $0xc] sm:$0xf]
    %v239 = vld [vmem:[%s3 + $0x10] sm:$0xf]
    %v240 = vld [vmem:[%s3 + $0x14] sm:$0xf]
    %v241 = vld [vmem:[%s3 + $0x18] sm:$0xf]
    %v242 = vld [vmem:[%s3 + $0x1c] sm:$0xf]
    %v243 = vld [vmem:[%s3 + $0x20] sm:$0xf]
    %v244 = vld [vmem:[%s3 + $0x24] sm:$0xf]
    %v245 = vld [vmem:[%s3 + $0x28] sm:$0xf]
    %v246 = vld [vmem:[%s3 + $0x2c] sm:$0xf]
    %v247 = vld [vmem:[%s3 + $0x30] sm:$0xf]
    %v248 = vld [vmem:[%s3 + $0x34] sm:$0xf]
    %v249 = vld [vmem:[%s3 + $0x38] sm:$0xf]
    %v250 = vld [vmem:[%s3 + $0x3c] sm:$0xf]
    %v251 = vld [vmem:[%s3 + $0x40] sm:$0xf]
    %v252 = vld [vmem:[%s3 + $0x44] sm:$0xf]
    %v253 = vld [vmem:[%s3 + $0x48] sm:$0xf]
    %v254 = vld [vmem:[%s3 + $0x4c] sm:$0xf]
    %v255 = vld [vmem:[%s3 + $0x50] sm:$0xf]
    %v256 = vld [vmem:[%s3 + $0x54] sm:$0xf]
    %v257 = vld [vmem:[%s3 + $0x58] sm:$0xf]
    %v258 = vld [vmem:[%s3 + $0x5c] sm:$0xf]
    %v259 = vld [vmem:[%s3 + $0x60] sm:$0xf]
    %v260 = vld [vmem:[%s3 + $0x64] sm:$0xf]
    %v261 = vld [vmem:[%s3 + $0x68] sm:$0xf]
    %v262 = vld [vmem:[%s3 + $0x6c] sm:$0xf]
    %v263 = vld [vmem:[%s3 + $0x70] sm:$0xf]
    %v264 = vld [vmem:[%s3 + $0x74] sm:$0xf]
    %v265 = vld [vmem:[%s3 + $0x78] sm:$0xf]
    %v266 = vld [vmem:[%s3 + $0x7c] sm:$0xf]
    %v267 = vld [vmem:[%s3 + $0x80] sm:$0xf]
    %v268 = vld [vmem:[%s3 + $0x84] sm:$0xf]
    %v269 = vld [vmem:[%s3 + $0x88] sm:$0xf]
    %v270 = vld [vmem:[%s3 + $0x8c] sm:$0xf]
    %v271 = vld [vmem:[%s3 + $0x90] sm:$0xf]
    %v272 = vld [vmem:[%s3 + $0x94] sm:$0xf]
    %v273 = vld [vmem:[%s3 + $0x98] sm:$0xf]
    %v274 = vld [vmem:[%s3 + $0x9c] sm:$0xf]
    %v275 = vld [vmem:[%s3 + $0xa0] sm:$0xf]
    %v276 = vld [vmem:[%s3 + $0xa4] sm:$0xf]
    %v277 = vld [vmem:[%s3 + $0xa8] sm:$0xf]
    %v278 = vld [vmem:[%s3 + $0xac] sm:$0xf]
    %v279 = vld [vmem:[%s3 + $0xb0] sm:$0xf]
    %v280 = vld [vmem:[%s3 + $0xb4] sm:$0xf]
    %v281 = vld [vmem:[%s3 + $0xb8] sm:$0xf]
    %v282 = vld [vmem:[%s3 + $0xbc] sm:$0xf]
    %v283 = vld [vmem:[%s3 + $0xc0] sm:$0xf]
    %v284 = vld [vmem:[%s3 + $0xc4] sm:$0xf]
    %v285 = vld [vmem:[%s3 + $0xc8] sm:$0xf]
    %v286 = vld [vmem:[%s3 + $0xcc] sm:$0xf]
    %v287 = vld [vmem:[%s3 + $0xd0] sm:$0xf]
    %v288 = vld [vmem:[%s3 + $0xd4] sm:$0xf]
    %v289 = vld [vmem:[%s3 + $0xd8] sm:$0xf]
    %v290 = vld [vmem:[%s3 + $0xdc] sm:$0xf]
    %v291 = vld [vmem:[%s3 + $0xe0] sm:$0xf]
    %v292 = vld [vmem:[%s3 + $0xe4] sm:$0xf]
    %v293 = vld [vmem:[%s3 + $0xe8] sm:$0xf]
    %v294 = vld [vmem:[%s3 + $0xec] sm:$0xf]
    %v295 = vld [vmem:[%s3 + $0xf0] sm:$0xf]
    %v296 = vld [vmem:[%s3 + $0xf4] sm:$0xf]
    %v297 = vld [vmem:[%s3 + $0xf8] sm:$0xf]
    %v298 = vld [vmem:[%s3 + $0xfc] sm:$0xf]
    %v299 = vld [vmem:[%s3 + $0x100] sm:$0xf]
    %v300 = vld [vmem:[%s3 + $0x104] sm:$0xf]
    %v301 = vld [vmem:[%s3 + $0x108] sm:$0xf]
    %v302 = vld [vmem:[%s3 + $0x10c] sm:$0xf]
    %v303 = vld [vmem:[%s3 + $0x110] sm:$0xf]
    %v304 = vld [vmem:[%s3 + $0x114] sm:$0xf]
    %v305 = vld [vmem:[%s3 + $0x118] sm:$0xf]
    %v306 = vld [vmem:[%s3 + $0x11c] sm:$0xf]
    %v307 = vld [vmem:[%s3 + $0x120] sm:$0xf]
    %v308 = vld [vmem:[%s3 + $0x124] sm:$0xf]
    %v309 = vld [vmem:[%s3 + $0x128] sm:$0xf]
    %v310 = vld [vmem:[%s3 + $0x12c] sm:$0xf]
    %v311 = vld [vmem:[%s3 + $0x130] sm:$0xf]
    %v312 = vld [vmem:[%s3 + $0x134] sm:$0xf]
    %v313 = vld [vmem:[%s3 + $0x138] sm:$0xf]
    %v314 = vld [vmem:[%s3 + $0x13c] sm:$0xf]
    %v315 = vld [vmem:[%s3 + $0x140] sm:$0xf]
    %v316 = vld [vmem:[%s3 + $0x144] sm:$0xf]
    %v317 = vld [vmem:[%s3 + $0x148] sm:$0xf]
    %v318 = vld [vmem:[%s3 + $0x14c] sm:$0xf]
    %v319 = vld [vmem:[%s3 + $0x150] sm:$0xf]
    %v320 = vld [vmem:[%s3 + $0x154] sm:$0xf]
    %v321 = vld [vmem:[%s3 + $0x158] sm:$0xf]
    %v322 = vld [vmem:[%s3 + $0x15c] sm:$0xf]
    %v323 = vld [vmem:[%s3 + $0x160] sm:$0xf]
    %v324 = vld [vmem:[%s3 + $0x164] sm:$0xf]
    %v325 = vld [vmem:[%s3 + $0x168] sm:$0xf]
    %v326 = vld [vmem:[%s3 + $0x16c] sm:$0xf]
    %v327 = vld [vmem:[%s3 + $0x170] sm:$0xf]
    %v328 = vld [vmem:[%s3 + $0x174] sm:$0xf]
    %v329 = vld [vmem:[%s3 + $0x178] sm:$0xf]
    %v330 = vld [vmem:[%s3 + $0x17c] sm:$0xf]
    %v331 = vld [vmem:[%s3 + $0x180] sm:$0xf]
    %v332 = vld [vmem:[%s3 + $0x184] sm:$0xf]
    %v333 = vld [vmem:[%s3 + $0x188] sm:$0xf]
    %v334 = vld [vmem:[%s3 + $0x18c] sm:$0xf]
    %v335 = vld [vmem:[%s3 + $0x190] sm:$0xf]
    %v336 = vld [vmem:[%s3 + $0x194] sm:$0xf]
    %v337 = vld [vmem:[%s3 + $0x198] sm:$0xf]
    %v338 = vld [vmem:[%s3 + $0x19c] sm:$0xf]
    %v339 = vld [vmem:[%s3 + $0x1a0] sm:$0xf]
    %v340 = vld [vmem:[%s3 + $0x1a4] sm:$0xf]
    %v341 = vld [vmem:[%s3 + $0x1a8] sm:$0xf]
    %v342 = vld [vmem:[%s3 + $0x1ac] sm:$0xf]
    %v343 = vld [vmem:[%s3 + $0x1b0] sm:$0xf]
    %v344 = vld [vmem:[%s3 + $0x1b4] sm:$0xf]
    %v345 = vld [vmem:[%s3 + $0x1b8] sm:$0xf]
    %v346 = vld [vmem:[%s3 + $0x1bc] sm:$0xf]
    %v347 = vld [vmem:[%s3 + $0x1c0] sm:$0xf]
    %v348 = vld [vmem:[%s3 + $0x1c4] sm:$0xf]
    %v349 = vld [vmem:[%s3 + $0x1c8] sm:$0xf]
    %v350 = vld [vmem:[%s3 + $0x1cc] sm:$0xf]
    %v351 = vld [vmem:[%s3 + $0x1d0] sm:$0xf]
    %v352 = vld [vmem:[%s3 + $0x1d4] sm:$0xf]
    %v353 = vld [vmem:[%s3 + $0x1d8] sm:$0xf]
    %v354 = vld [vmem:[%s3 + $0x1dc] sm:$0xf]
    %v355 = vld [vmem:[%s3 + $0x1e0] sm:$0xf]
    %v356 = vld [vmem:[%s3 + $0x1e4] sm:$0xf]
    %v357 = vld [vmem:[%s3 + $0x1e8] sm:$0xf]
    %v358 = vld [vmem:[%s3 + $0x1ec] sm:$0xf]
    %v359 = vld [vmem:[%s3 + $0x1f0] sm:$0xf]
    %v360 = vld [vmem:[%s3 + $0x1f4] sm:$0xf]
    %v361 = vld [vmem:[%s3 + $0x1f8] sm:$0xf]
    %v362 = vld [vmem:[%s3 + $0x1fc] sm:$0xf]
    %v363 = vld [vmem:[#allocation6] sm:$0x1]
    %v365 = vlaneseq
    %v366 = vshrl.u32 %v365, 7
    %v367 = vsub.s32 0, %v366
    %v368 = vrot.slane %v363, %v367
    %v430 = vunpack.c.l.b16 %v175
    %v431 = vunpack.c.h.b16 %v175
    %v432 = vunpack.c.l.b16 %v176
    %v433 = vunpack.c.h.b16 %v176
    %v434 = vunpack.c.l.b16 %v177
    %v435 = vunpack.c.h.b16 %v177
    %v436 = vunpack.c.l.b16 %v178
    %v437 = vunpack.c.h.b16 %v178
    %v438 = vunpack.c.l.b16 %v179
    %v439 = vunpack.c.h.b16 %v179
    %v440 = vunpack.c.l.b16 %v180
    %v441 = vunpack.c.h.b16 %v180
    %v442 = vunpack.c.l.b16 %v181
    %v443 = vunpack.c.h.b16 %v181
    %v444 = vunpack.c.l.b16 %v182
    %v445 = vunpack.c.h.b16 %v182
    %v446 = vunpack.c.l.b16 %v183
    %v447 = vunpack.c.h.b16 %v183
    %v448 = vunpack.c.l.b16 %v184
    %v449 = vunpack.c.h.b16 %v184
    %v450 = vunpack.c.l.b16 %v185
    %v451 = vunpack.c.h.b16 %v185
    %v452 = vunpack.c.l.b16 %v186
    %v453 = vunpack.c.h.b16 %v186
    %v454 = vunpack.c.l.b16 %v187
    %v455 = vunpack.c.h.b16 %v187
    %v456 = vunpack.c.l.b16 %v188
    %v457 = vunpack.c.h.b16 %v188
    %v458 = vunpack.c.l.b16 %v189
    %v459 = vunpack.c.h.b16 %v189
    %v460 = vunpack.c.l.b16 %v190
    %v461 = vunpack.c.h.b16 %v190
    %v462 = vunpack.c.l.b16 %v191
    %v463 = vunpack.c.h.b16 %v191
    %v464 = vunpack.c.l.b16 %v192
    %v465 = vunpack.c.h.b16 %v192
    %v466 = vunpack.c.l.b16 %v193
    %v467 = vunpack.c.h.b16 %v193
    %v468 = vunpack.c.l.b16 %v194
    %v469 = vunpack.c.h.b16 %v194
    %v470 = vunpack.c.l.b16 %v195
    %v471 = vunpack.c.h.b16 %v195
    %v472 = vunpack.c.l.b16 %v196
    %v473 = vunpack.c.h.b16 %v196
    %v474 = vunpack.c.l.b16 %v197
    %v475 = vunpack.c.h.b16 %v197
    %v476 = vunpack.c.l.b16 %v198
    %v477 = vunpack.c.h.b16 %v198
    %v478 = vunpack.c.l.b16 %v199
    %v479 = vunpack.c.h.b16 %v199
    %v480 = vunpack.c.l.b16 %v200
    %v481 = vunpack.c.h.b16 %v200
    %v482 = vunpack.c.l.b16 %v201
    %v483 = vunpack.c.h.b16 %v201
    %v484 = vunpack.c.l.b16 %v202
    %v485 = vunpack.c.h.b16 %v202
    %v486 = vunpack.c.l.b16 %v203
    %v487 = vunpack.c.h.b16 %v203
    %v488 = vunpack.c.l.b16 %v204
    %v489 = vunpack.c.h.b16 %v204
    %v490 = vunpack.c.l.b16 %v205
    %v491 = vunpack.c.h.b16 %v205
    %v492 = vunpack.c.l.b16 %v206
    %v493 = vunpack.c.h.b16 %v206
    %v494 = vunpack.c.l.b16 %v207
    %v495 = vunpack.c.h.b16 %v207
    %v496 = vunpack.c.l.b16 %v208
    %v497 = vunpack.c.h.b16 %v208
    %v498 = vunpack.c.l.b16 %v209
    %v499 = vunpack.c.h.b16 %v209
    %v500 = vunpack.c.l.b16 %v210
    %v501 = vunpack.c.h.b16 %v210
    %v502 = vunpack.c.l.b16 %v211
    %v503 = vunpack.c.h.b16 %v211
    %v504 = vunpack.c.l.b16 %v212
    %v505 = vunpack.c.h.b16 %v212
    %v506 = vunpack.c.l.b16 %v213
    %v507 = vunpack.c.h.b16 %v213
    %v508 = vunpack.c.l.b16 %v214
    %v509 = vunpack.c.h.b16 %v214
    %v510 = vunpack.c.l.b16 %v215
    %v511 = vunpack.c.h.b16 %v215
    %v512 = vunpack.c.l.b16 %v216
    %v513 = vunpack.c.h.b16 %v216
    %v514 = vunpack.c.l.b16 %v217
    %v515 = vunpack.c.h.b16 %v217
    %v516 = vunpack.c.l.b16 %v218
    %v517 = vunpack.c.h.b16 %v218
    %v518 = vunpack.c.l.b16 %v219
    %v519 = vunpack.c.h.b16 %v219
    %v520 = vunpack.c.l.b16 %v220
    %v521 = vunpack.c.h.b16 %v220
    %v522 = vunpack.c.l.b16 %v221
    %v523 = vunpack.c.h.b16 %v221
    %v524 = vunpack.c.l.b16 %v222
    %v525 = vunpack.c.h.b16 %v222
    %v526 = vunpack.c.l.b16 %v223
    %v527 = vunpack.c.h.b16 %v223
    %v528 = vunpack.c.l.b16 %v224
    %v529 = vunpack.c.h.b16 %v224
    %v530 = vunpack.c.l.b16 %v225
    %v531 = vunpack.c.h.b16 %v225
    %v532 = vunpack.c.l.b16 %v226
    %v533 = vunpack.c.h.b16 %v226
    %v534 = vunpack.c.l.b16 %v227
    %v535 = vunpack.c.h.b16 %v227
    %v536 = vunpack.c.l.b16 %v228
    %v537 = vunpack.c.h.b16 %v228
    %v538 = vunpack.c.l.b16 %v229
    %v539 = vunpack.c.h.b16 %v229
    %v540 = vunpack.c.l.b16 %v230
    %v541 = vunpack.c.h.b16 %v230
    %v542 = vunpack.c.l.b16 %v231
    %v543 = vunpack.c.h.b16 %v231
    %v544 = vunpack.c.l.b16 %v232
    %v545 = vunpack.c.h.b16 %v232
    %v546 = vunpack.c.l.b16 %v233
    %v547 = vunpack.c.h.b16 %v233
    %v548 = vunpack.c.l.b16 %v234
    %v549 = vunpack.c.h.b16 %v234
    %v550 = vpack.c.b16 %v438, %v430
    %v551 = vpack.c.b16 %v439, %v431
    %v552 = vpack.c.b16 %v440, %v432
    %v553 = vpack.c.b16 %v441, %v433
    %v554 = vpack.c.b16 %v442, %v434
    %v555 = vpack.c.b16 %v443, %v435
    %v556 = vpack.c.b16 %v444, %v436
    %v557 = vpack.c.b16 %v445, %v437
    %v558 = vpack.c.b16 %v454, %v446
    %v559 = vpack.c.b16 %v455, %v447
    %v560 = vpack.c.b16 %v456, %v448
    %v561 = vpack.c.b16 %v457, %v449
    %v562 = vpack.c.b16 %v458, %v450
    %v563 = vpack.c.b16 %v459, %v451
    %v564 = vpack.c.b16 %v460, %v452
    %v565 = vpack.c.b16 %v461, %v453
    %v566 = vpack.c.b16 %v470, %v462
    %v567 = vpack.c.b16 %v471, %v463
    %v568 = vpack.c.b16 %v472, %v464
    %v569 = vpack.c.b16 %v473, %v465
    %v570 = vpack.c.b16 %v474, %v466
    %v571 = vpack.c.b16 %v475, %v467
    %v572 = vpack.c.b16 %v476, %v468
    %v573 = vpack.c.b16 %v477, %v469
    %v574 = vpack.c.b16 %v486, %v478
    %v575 = vpack.c.b16 %v487, %v479
    %v576 = vpack.c.b16 %v488, %v480
    %v577 = vpack.c.b16 %v489, %v481
    %v578 = vpack.c.b16 %v490, %v482
    %v579 = vpack.c.b16 %v491, %v483
    %v580 = vpack.c.b16 %v492, %v484
    %v581 = vpack.c.b16 %v493, %v485
    %v582 = vpack.c.b16 %v502, %v494
    %v583 = vpack.c.b16 %v503, %v495
    %v584 = vpack.c.b16 %v504, %v496
    %v585 = vpack.c.b16 %v505, %v497
    %v586 = vpack.c.b16 %v506, %v498
    %v587 = vpack.c.b16 %v507, %v499
    %v588 = vpack.c.b16 %v508, %v500
    %v589 = vpack.c.b16 %v509, %v501
    %v590 = vpack.c.b16 %v518, %v510
    %v591 = vpack.c.b16 %v519, %v511
    %v592 = vpack.c.b16 %v520, %v512
    %v593 = vpack.c.b16 %v521, %v513
    %v594 = vpack.c.b16 %v522, %v514
    %v595 = vpack.c.b16 %v523, %v515
    %v596 = vpack.c.b16 %v524, %v516
    %v597 = vpack.c.b16 %v525, %v517
    %v598 = vpack.c.b16 %v534, %v526
    %v599 = vpack.c.b16 %v535, %v527
    %v600 = vpack.c.b16 %v536, %v528
    %v601 = vpack.c.b16 %v537, %v529
    %v602 = vpack.c.b16 %v538, %v530
    %v603 = vpack.c.b16 %v539, %v531
    %v604 = vpack.c.b16 %v540, %v532
    %v605 = vpack.c.b16 %v541, %v533
    %v606 = vpack.c.b16 %v542, %v542
    %v607 = vpack.c.b16 %v543, %v543
    %v608 = vpack.c.b16 %v544, %v544
    %v609 = vpack.c.b16 %v545, %v545
    %v610 = vpack.c.b16 %v546, %v546
    %v611 = vpack.c.b16 %v547, %v547
    %v612 = vpack.c.b16 %v548, %v548
    %v613 = vpack.c.b16 %v549, %v549
    %v806 = vunpack.c.l.b16 %v235
    %v807 = vunpack.c.l.b16 %v236
    %v808 = vunpack.c.l.b16 %v237
    %v809 = vunpack.c.l.b16 %v238
    %v810 = vunpack.c.l.b16 %v239
    %v811 = vunpack.c.l.b16 %v240
    %v812 = vunpack.c.l.b16 %v241
    %v813 = vunpack.c.l.b16 %v242
    %v814 = vunpack.c.l.b16 %v243
    %v815 = vunpack.c.l.b16 %v244
    %v816 = vunpack.c.l.b16 %v245
    %v817 = vunpack.c.l.b16 %v246
    %v818 = vunpack.c.l.b16 %v247
    %v819 = vunpack.c.l.b16 %v248
    %v820 = vunpack.c.l.b16 %v249
    %v821 = vunpack.c.l.b16 %v250
    %v822 = vunpack.c.l.b16 %v251
    %v823 = vunpack.c.l.b16 %v252
    %v824 = vunpack.c.l.b16 %v253
    %v825 = vunpack.c.l.b16 %v254
    %v826 = vunpack.c.l.b16 %v255
    %v827 = vunpack.c.l.b16 %v256
    %v828 = vunpack.c.l.b16 %v257
    %v829 = vunpack.c.l.b16 %v258
    %v830 = vunpack.c.l.b16 %v259
    %v831 = vunpack.c.l.b16 %v260
    %v832 = vunpack.c.l.b16 %v261
    %v833 = vunpack.c.l.b16 %v262
    %v834 = vunpack.c.l.b16 %v263
    %v835 = vunpack.c.l.b16 %v264
    %v836 = vunpack.c.l.b16 %v265
    %v837 = vunpack.c.l.b16 %v266
    %v838 = vunpack.c.l.b16 %v267
    %v839 = vunpack.c.l.b16 %v268
    %v840 = vunpack.c.l.b16 %v269
    %v841 = vunpack.c.l.b16 %v270
    %v842 = vunpack.c.l.b16 %v271
    %v843 = vunpack.c.l.b16 %v272
    %v844 = vunpack.c.l.b16 %v273
    %v845 = vunpack.c.l.b16 %v274
    %v846 = vunpack.c.l.b16 %v275
    %v847 = vunpack.c.l.b16 %v276
    %v848 = vunpack.c.l.b16 %v277
    %v849 = vunpack.c.l.b16 %v278
    %v850 = vunpack.c.l.b16 %v279
    %v851 = vunpack.c.l.b16 %v280
    %v852 = vunpack.c.l.b16 %v281
    %v853 = vunpack.c.l.b16 %v282
    %v854 = vunpack.c.l.b16 %v283
    %v855 = vunpack.c.l.b16 %v284
    %v856 = vunpack.c.l.b16 %v285
    %v857 = vunpack.c.l.b16 %v286
    %v858 = vunpack.c.l.b16 %v287
    %v859 = vunpack.c.l.b16 %v288
    %v860 = vunpack.c.l.b16 %v289
    %v861 = vunpack.c.l.b16 %v290
    %v862 = vunpack.c.l.b16 %v291
    %v863 = vunpack.c.l.b16 %v292
    %v864 = vunpack.c.l.b16 %v293
    %v865 = vunpack.c.l.b16 %v294
    %v866 = vunpack.c.l.b16 %v295
    %v867 = vunpack.c.l.b16 %v296
    %v868 = vunpack.c.l.b16 %v297
    %v869 = vunpack.c.l.b16 %v298
    %v870 = vunpack.c.l.b16 %v299
    %v871 = vunpack.c.l.b16 %v300
    %v872 = vunpack.c.l.b16 %v301
    %v873 = vunpack.c.l.b16 %v302
    %v874 = vunpack.c.l.b16 %v303
    %v875 = vunpack.c.l.b16 %v304
    %v876 = vunpack.c.l.b16 %v305
    %v877 = vunpack.c.l.b16 %v306
    %v878 = vunpack.c.l.b16 %v307
    %v879 = vunpack.c.l.b16 %v308
    %v880 = vunpack.c.l.b16 %v309
    %v881 = vunpack.c.l.b16 %v310
    %v882 = vunpack.c.l.b16 %v311
    %v883 = vunpack.c.l.b16 %v312
    %v884 = vunpack.c.l.b16 %v313
    %v885 = vunpack.c.l.b16 %v314
    %v886 = vunpack.c.l.b16 %v315
    %v887 = vunpack.c.l.b16 %v316
    %v888 = vunpack.c.l.b16 %v317
    %v889 = vunpack.c.l.b16 %v318
    %v890 = vunpack.c.l.b16 %v319
    %v891 = vunpack.c.l.b16 %v320
    %v892 = vunpack.c.l.b16 %v321
    %v893 = vunpack.c.l.b16 %v322
    %v894 = vunpack.c.l.b16 %v323
    %v895 = vunpack.c.l.b16 %v324
    %v896 = vunpack.c.l.b16 %v325
    %v897 = vunpack.c.l.b16 %v326
    %v898 = vunpack.c.l.b16 %v327
    %v899 = vunpack.c.l.b16 %v328
    %v900 = vunpack.c.l.b16 %v329
    %v901 = vunpack.c.l.b16 %v330
    %v902 = vunpack.c.l.b16 %v331
    %v903 = vunpack.c.l.b16 %v332
    %v904 = vunpack.c.l.b16 %v333
    %v905 = vunpack.c.l.b16 %v334
    %v906 = vunpack.c.l.b16 %v335
    %v907 = vunpack.c.l.b16 %v336
    %v908 = vunpack.c.l.b16 %v337
    %v909 = vunpack.c.l.b16 %v338
    %v910 = vunpack.c.l.b16 %v339
    %v911 = vunpack.c.l.b16 %v340
    %v912 = vunpack.c.l.b16 %v341
    %v913 = vunpack.c.l.b16 %v342
    %v914 = vunpack.c.l.b16 %v343
    %v915 = vunpack.c.l.b16 %v344
    %v916 = vunpack.c.l.b16 %v345
    %v917 = vunpack.c.l.b16 %v346
    %v918 = vunpack.c.l.b16 %v347
    %v919 = vunpack.c.l.b16 %v348
    %v920 = vunpack.c.l.b16 %v349
    %v921 = vunpack.c.l.b16 %v350
    %v922 = vunpack.c.l.b16 %v351
    %v923 = vunpack.c.l.b16 %v352
    %v924 = vunpack.c.l.b16 %v353
    %v925 = vunpack.c.l.b16 %v354
    %v926 = vunpack.c.l.b16 %v355
    %v927 = vunpack.c.l.b16 %v356
    %v928 = vunpack.c.l.b16 %v357
    %v929 = vunpack.c.l.b16 %v358
    %v930 = vunpack.c.l.b16 %v359
    %v931 = vunpack.c.l.b16 %v360
    %v932 = vunpack.c.l.b16 %v361
    %v933 = vunpack.c.l.b16 %v362
    %v934 = vpack.c.b16 %v807, %v806
    %v935 = vpack.c.b16 %v809, %v808
    %v936 = vpack.c.b16 %v811, %v810
    %v937 = vpack.c.b16 %v813, %v812
    %v938 = vpack.c.b16 %v815, %v814
    %v939 = vpack.c.b16 %v817, %v816
    %v940 = vpack.c.b16 %v819, %v818
    %v941 = vpack.c.b16 %v821, %v820
    %v942 = vpack.c.b16 %v823, %v822
    %v943 = vpack.c.b16 %v825, %v824
    %v944 = vpack.c.b16 %v827, %v826
    %v945 = vpack.c.b16 %v829, %v828
    %v946 = vpack.c.b16 %v831, %v830
    %v947 = vpack.c.b16 %v833, %v832
    %v948 = vpack.c.b16 %v835, %v834
    %v949 = vpack.c.b16 %v837, %v836
    %v950 = vpack.c.b16 %v839, %v838
    %v951 = vpack.c.b16 %v841, %v840
    %v952 = vpack.c.b16 %v843, %v842
    %v953 = vpack.c.b16 %v845, %v844
    %v954 = vpack.c.b16 %v847, %v846
    %v955 = vpack.c.b16 %v849, %v848
    %v956 = vpack.c.b16 %v851, %v850
    %v957 = vpack.c.b16 %v853, %v852
    %v958 = vpack.c.b16 %v855, %v854
    %v959 = vpack.c.b16 %v857, %v856
    %v960 = vpack.c.b16 %v859, %v858
    %v961 = vpack.c.b16 %v861, %v860
    %v962 = vpack.c.b16 %v863, %v862
    %v963 = vpack.c.b16 %v865, %v864
    %v964 = vpack.c.b16 %v867, %v866
    %v965 = vpack.c.b16 %v869, %v868
    %v966 = vpack.c.b16 %v871, %v870
    %v967 = vpack.c.b16 %v873, %v872
    %v968 = vpack.c.b16 %v875, %v874
    %v969 = vpack.c.b16 %v877, %v876
    %v970 = vpack.c.b16 %v879, %v878
    %v971 = vpack.c.b16 %v881, %v880
    %v972 = vpack.c.b16 %v883, %v882
    %v973 = vpack.c.b16 %v885, %v884
    %v974 = vpack.c.b16 %v887, %v886
    %v975 = vpack.c.b16 %v889, %v888
    %v976 = vpack.c.b16 %v891, %v890
    %v977 = vpack.c.b16 %v893, %v892
    %v978 = vpack.c.b16 %v895, %v894
    %v979 = vpack.c.b16 %v897, %v896
    %v980 = vpack.c.b16 %v899, %v898
    %v981 = vpack.c.b16 %v901, %v900
    %v982 = vpack.c.b16 %v903, %v902
    %v983 = vpack.c.b16 %v905, %v904
    %v984 = vpack.c.b16 %v907, %v906
    %v985 = vpack.c.b16 %v909, %v908
    %v986 = vpack.c.b16 %v911, %v910
    %v987 = vpack.c.b16 %v913, %v912
    %v988 = vpack.c.b16 %v915, %v914
    %v989 = vpack.c.b16 %v917, %v916
    %v990 = vpack.c.b16 %v919, %v918
    %v991 = vpack.c.b16 %v921, %v920
    %v992 = vpack.c.b16 %v923, %v922
    %v993 = vpack.c.b16 %v925, %v924
    %v994 = vpack.c.b16 %v927, %v926
    %v995 = vpack.c.b16 %v929, %v928
    %v996 = vpack.c.b16 %v931, %v930
    %v997 = vpack.c.b16 %v933, %v932
    %1062 = vmatprep.subr.bf16.mxu0 0
    %1063 = vmatpush1.bf16.msra.mxu0 %v941
    %1064 = vmatprep.subr.bf16.mxu0 0
    %1065 = vmatpush1.bf16.msra.mxu0 %v940
    %1066 = vmatprep.subr.bf16.mxu0 0
    %1067 = vmatpush1.bf16.msra.mxu0 %v939
    %1068 = vmatprep.subr.bf16.mxu0 0
    %1069 = vmatpush1.bf16.msra.mxu0 %v938
    %1070 = vmatprep.subr.bf16.mxu0 0
    %1071 = vmatpush1.bf16.msra.mxu0 %v937
    %1072 = vmatprep.subr.bf16.mxu0 0
    %1073 = vmatpush1.bf16.msra.mxu0 %v936
    %1074 = vmatprep.subr.bf16.mxu0 0
    %1075 = vmatpush1.bf16.msra.mxu0 %v935
    %1076 = vmatprep.subr.bf16.mxu0 0
    %1077 = vmatpush1.bf16.msra.mxu0 %v934
    %1078 = vmatprep.subr.bf16.mxu0 0
    %1079 = vmatpush2.bf16.msra.mxu0 %v949
    %1080 = vmatprep.subr.bf16.mxu0 0
    %1081 = vmatpush2.bf16.msra.mxu0 %v948
    %1082 = vmatprep.subr.bf16.mxu0 0
    %1083 = vmatpush2.bf16.msra.mxu0 %v947
    %1084 = vmatprep.subr.bf16.mxu0 0
    %1085 = vmatpush2.bf16.msra.mxu0 %v946
    %1086 = vmatprep.subr.bf16.mxu0 0
    %1087 = vmatpush2.bf16.msra.mxu0 %v945
    %1088 = vmatprep.subr.bf16.mxu0 0
    %1089 = vmatpush2.bf16.msra.mxu0 %v944
    %1090 = vmatprep.subr.bf16.mxu0 0
    %1091 = vmatpush2.bf16.msra.mxu0 %v943
    %1092 = vmatprep.subr.bf16.mxu0 0
    %1093 = vmatpush2.bf16.msra.mxu0 %v942
    %1094 = vmatprep.mubr.bf16.mxu0 %v551
    %1095 = vmatmul.mubr.bf16.gmra.mxu0 %v550
    %v1096 = vpop.f32.mrf.mxu0
    %v1097 = vadd.f32 %v368, %v1096
    %v1098 = vpop.f32.mrf.mxu0
    %v1099 = vpop.f32.mrf.mxu0
    %v1100 = vadd.f32 %v368, %v1099
    %v1101 = vpop.f32.mrf.mxu0
    %1102 = vmatprep.mubr.bf16.mxu0 %v559
    %1103 = vmatmul.mubr.bf16.gmra.mxu0 %v558
    %v1104 = vpop.f32.mrf.mxu0
    %v1105 = vadd.f32 %v368, %v1104
    %v1106 = vpop.f32.mrf.mxu0
    %v1107 = vpop.f32.mrf.mxu0
    %v1108 = vadd.f32 %v368, %v1107
    %v1109 = vpop.f32.mrf.mxu0
    %1110 = vmatprep.mubr.bf16.mxu0 %v567
    %1111 = vmatmul.mubr.bf16.gmra.mxu0 %v566
    %v1112 = vpop.f32.mrf.mxu0
    %v1113 = vadd.f32 %v368, %v1112
    %v1114 = vpop.f32.mrf.mxu0
    %v1115 = vpop.f32.mrf.mxu0
    %v1116 = vadd.f32 %v368, %v1115
    %v1117 = vpop.f32.mrf.mxu0
    %1118 = vmatprep.mubr.bf16.mxu0 %v575
    %1119 = vmatmul.mubr.bf16.gmra.mxu0 %v574
    %v1120 = vpop.f32.mrf.mxu0
    %v1121 = vadd.f32 %v368, %v1120
    %v1122 = vpop.f32.mrf.mxu0
    %v1123 = vpop.f32.mrf.mxu0
    %v1124 = vadd.f32 %v368, %v1123
    %v1125 = vpop.f32.mrf.mxu0
    %1126 = vmatprep.mubr.bf16.mxu0 %v583
    %1127 = vmatmul.mubr.bf16.gmra.mxu0 %v582
    %v1128 = vpop.f32.mrf.mxu0
    %v1129 = vadd.f32 %v368, %v1128
    %v1130 = vpop.f32.mrf.mxu0
    %v1131 = vpop.f32.mrf.mxu0
    %v1132 = vadd.f32 %v368, %v1131
    %v1133 = vpop.f32.mrf.mxu0
    %1134 = vmatprep.mubr.bf16.mxu0 %v591
    %1135 = vmatmul.mubr.bf16.gmra.mxu0 %v590
    %v1136 = vpop.f32.mrf.mxu0
    %v1137 = vadd.f32 %v368, %v1136
    %v1138 = vpop.f32.mrf.mxu0
    %v1139 = vpop.f32.mrf.mxu0
    %v1140 = vadd.f32 %v368, %v1139
    %v1141 = vpop.f32.mrf.mxu0
    %1142 = vmatprep.mubr.bf16.mxu0 %v599
    %1143 = vmatmul.mubr.bf16.gmra.mxu0 %v598
    %v1144 = vpop.f32.mrf.mxu0
    %v1145 = vadd.f32 %v368, %v1144
    %v1146 = vpop.f32.mrf.mxu0
    %v1147 = vpop.f32.mrf.mxu0
    %v1148 = vadd.f32 %v368, %v1147
    %v1149 = vpop.f32.mrf.mxu0
    %1150 = vmatprep.mubr.bf16.mxu0 %v607
    %1151 = vmatmul.mubr.bf16.gmra.mxu0 %v606
    %v1152 = vpop.f32.mrf.mxu0
    %v1153 = vadd.f32 %v368, %v1152
    %v1154 = vpop.f32.mrf.mxu0
    %v1155 = vpop.f32.mrf.mxu0
    %v1156 = vpop.f32.mrf.mxu0
    %1157 = vdwg.mxu0
    %1158 = vmatprep.subr.bf16.mxu0 0
    %1159 = vmatpush1.bf16.msra.mxu0 %v957
    %1160 = vmatprep.subr.bf16.mxu0 0
    %1161 = vmatpush1.bf16.msra.mxu0 %v956
    %1162 = vmatprep.subr.bf16.mxu0 0
    %1163 = vmatpush1.bf16.msra.mxu0 %v955
    %1164 = vmatprep.subr.bf16.mxu0 0
    %1165 = vmatpush1.bf16.msra.mxu0 %v954
    %1166 = vmatprep.subr.bf16.mxu0 0
    %1167 = vmatpush1.bf16.msra.mxu0 %v953
    %1168 = vmatprep.subr.bf16.mxu0 0
    %1169 = vmatpush1.bf16.msra.mxu0 %v952
    %1170 = vmatprep.subr.bf16.mxu0 0
    %1171 = vmatpush1.bf16.msra.mxu0 %v951
    %1172 = vmatprep.subr.bf16.mxu0 0
    %1173 = vmatpush1.bf16.msra.mxu0 %v950
    %1174 = vmatprep.subr.bf16.mxu0 0
    %1175 = vmatpush2.bf16.msra.mxu0 %v965
    %1176 = vmatprep.subr.bf16.mxu0 0
    %1177 = vmatpush2.bf16.msra.mxu0 %v964
    %1178 = vmatprep.subr.bf16.mxu0 0
    %1179 = vmatpush2.bf16.msra.mxu0 %v963
    %1180 = vmatprep.subr.bf16.mxu0 0
    %1181 = vmatpush2.bf16.msra.mxu0 %v962
    %1182 = vmatprep.subr.bf16.mxu0 0
    %1183 = vmatpush2.bf16.msra.mxu0 %v961
    %1184 = vmatprep.subr.bf16.mxu0 0
    %1185 = vmatpush2.bf16.msra.mxu0 %v960
    %1186 = vmatprep.subr.bf16.mxu0 0
    %1187 = vmatpush2.bf16.msra.mxu0 %v959
    %1188 = vmatprep.subr.bf16.mxu0 0
    %1189 = vmatpush2.bf16.msra.mxu0 %v958
    %1190 = vmatprep.mubr.bf16.mxu0 %v553
    %1191 = vmatmul.mubr.bf16.gmra.mxu0 %v552
    %v1192 = vpop.f32.mrf.mxu0
    %v1193 = vadd.f32 %v1097, %v1192
    %v1194 = vpop.f32.mrf.mxu0
    %v1195 = vpop.f32.mrf.mxu0
    %v1196 = vadd.f32 %v1100, %v1195
    %v1197 = vpop.f32.mrf.mxu0
    %1198 = vmatprep.mubr.bf16.mxu0 %v561
    %1199 = vmatmul.mubr.bf16.gmra.mxu0 %v560
    %v1200 = vpop.f32.mrf.mxu0
    %v1201 = vadd.f32 %v1105, %v1200
    %v1202 = vpop.f32.mrf.mxu0
    %v1203 = vpop.f32.mrf.mxu0
    %v1204 = vadd.f32 %v1108, %v1203
    %v1205 = vpop.f32.mrf.mxu0
    %1206 = vmatprep.mubr.bf16.mxu0 %v569
    %1207 = vmatmul.mubr.bf16.gmra.mxu0 %v568
    %v1208 = vpop.f32.mrf.mxu0
    %v1209 = vadd.f32 %v1113, %v1208
    %v1210 = vpop.f32.mrf.mxu0
    %v1211 = vpop.f32.mrf.mxu0
    %v1212 = vadd.f32 %v1116, %v1211
    %v1213 = vpop.f32.mrf.mxu0
    %1214 = vmatprep.mubr.bf16.mxu0 %v577
    %1215 = vmatmul.mubr.bf16.gmra.mxu0 %v576
    %v1216 = vpop.f32.mrf.mxu0
    %v1217 = vadd.f32 %v1121, %v1216
    %v1218 = vpop.f32.mrf.mxu0
    %v1219 = vpop.f32.mrf.mxu0
    %v1220 = vadd.f32 %v1124, %v1219
    %v1221 = vpop.f32.mrf.mxu0
    %1222 = vmatprep.mubr.bf16.mxu0 %v585
    %1223 = vmatmul.mubr.bf16.gmra.mxu0 %v584
    %v1224 = vpop.f32.mrf.mxu0
    %v1225 = vadd.f32 %v1129, %v1224
    %v1226 = vpop.f32.mrf.mxu0
    %v1227 = vpop.f32.mrf.mxu0
    %v1228 = vadd.f32 %v1132, %v1227
    %v1229 = vpop.f32.mrf.mxu0
    %1230 = vmatprep.mubr.bf16.mxu0 %v593
    %1231 = vmatmul.mubr.bf16.gmra.mxu0 %v592
    %v1232 = vpop.f32.mrf.mxu0
    %v1233 = vadd.f32 %v1137, %v1232
    %v1234 = vpop.f32.mrf.mxu0
    %v1235 = vpop.f32.mrf.mxu0
    %v1236 = vadd.f32 %v1140, %v1235
    %v1237 = vpop.f32.mrf.mxu0
    %1238 = vmatprep.mubr.bf16.mxu0 %v601
    %1239 = vmatmul.mubr.bf16.gmra.mxu0 %v600
    %v1240 = vpop.f32.mrf.mxu0
    %v1241 = vadd.f32 %v1145, %v1240
    %v1242 = vpop.f32.mrf.mxu0
    %v1243 = vpop.f32.mrf.mxu0
    %v1244 = vadd.f32 %v1148, %v1243
    %v1245 = vpop.f32.mrf.mxu0
    %1246 = vmatprep.mubr.bf16.mxu0 %v609
    %1247 = vmatmul.mubr.bf16.gmra.mxu0 %v608
    %v1248 = vpop.f32.mrf.mxu0
    %v1249 = vadd.f32 %v1153, %v1248
    %v1250 = vpop.f32.mrf.mxu0
    %v1251 = vpop.f32.mrf.mxu0
    %v1252 = vpop.f32.mrf.mxu0
    %1253 = vdwg.mxu0
    %1254 = vmatprep.subr.bf16.mxu0 0
    %1255 = vmatpush1.bf16.msra.mxu0 %v973
    %1256 = vmatprep.subr.bf16.mxu0 0
    %1257 = vmatpush1.bf16.msra.mxu0 %v972
    %1258 = vmatprep.subr.bf16.mxu0 0
    %1259 = vmatpush1.bf16.msra.mxu0 %v971
    %1260 = vmatprep.subr.bf16.mxu0 0
    %1261 = vmatpush1.bf16.msra.mxu0 %v970
    %1262 = vmatprep.subr.bf16.mxu0 0
    %1263 = vmatpush1.bf16.msra.mxu0 %v969
    %1264 = vmatprep.subr.bf16.mxu0 0
    %1265 = vmatpush1.bf16.msra.mxu0 %v968
    %1266 = vmatprep.subr.bf16.mxu0 0
    %1267 = vmatpush1.bf16.msra.mxu0 %v967
    %1268 = vmatprep.subr.bf16.mxu0 0
    %1269 = vmatpush1.bf16.msra.mxu0 %v966
    %1270 = vmatprep.subr.bf16.mxu0 0
    %1271 = vmatpush2.bf16.msra.mxu0 %v981
    %1272 = vmatprep.subr.bf16.mxu0 0
    %1273 = vmatpush2.bf16.msra.mxu0 %v980
    %1274 = vmatprep.subr.bf16.mxu0 0
    %1275 = vmatpush2.bf16.msra.mxu0 %v979
    %1276 = vmatprep.subr.bf16.mxu0 0
    %1277 = vmatpush2.bf16.msra.mxu0 %v978
    %1278 = vmatprep.subr.bf16.mxu0 0
    %1279 = vmatpush2.bf16.msra.mxu0 %v977
    %1280 = vmatprep.subr.bf16.mxu0 0
    %1281 = vmatpush2.bf16.msra.mxu0 %v976
    %1282 = vmatprep.subr.bf16.mxu0 0
    %1283 = vmatpush2.bf16.msra.mxu0 %v975
    %1284 = vmatprep.subr.bf16.mxu0 0
    %1285 = vmatpush2.bf16.msra.mxu0 %v974
    %1286 = vmatprep.mubr.bf16.mxu0 %v555
    %1287 = vmatmul.mubr.bf16.gmra.mxu0 %v554
    %v1288 = vpop.f32.mrf.mxu0
    %v1289 = vadd.f32 %v1193, %v1288
    %v1290 = vpop.f32.mrf.mxu0
    %v1291 = vpop.f32.mrf.mxu0
    %v1292 = vadd.f32 %v1196, %v1291
    %v1293 = vpop.f32.mrf.mxu0
    %1294 = vmatprep.mubr.bf16.mxu0 %v563
    %1295 = vmatmul.mubr.bf16.gmra.mxu0 %v562
    %v1296 = vpop.f32.mrf.mxu0
    %v1297 = vadd.f32 %v1201, %v1296
    %v1298 = vpop.f32.mrf.mxu0
    %v1299 = vpop.f32.mrf.mxu0
    %v1300 = vadd.f32 %v1204, %v1299
    %v1301 = vpop.f32.mrf.mxu0
    %1302 = vmatprep.mubr.bf16.mxu0 %v571
    %1303 = vmatmul.mubr.bf16.gmra.mxu0 %v570
    %v1304 = vpop.f32.mrf.mxu0
    %v1305 = vadd.f32 %v1209, %v1304
    %v1306 = vpop.f32.mrf.mxu0
    %v1307 = vpop.f32.mrf.mxu0
    %v1308 = vadd.f32 %v1212, %v1307
    %v1309 = vpop.f32.mrf.mxu0
    %1310 = vmatprep.mubr.bf16.mxu0 %v579
    %1311 = vmatmul.mubr.bf16.gmra.mxu0 %v578
    %v1312 = vpop.f32.mrf.mxu0
    %v1313 = vadd.f32 %v1217, %v1312
    %v1314 = vpop.f32.mrf.mxu0
    %v1315 = vpop.f32.mrf.mxu0
    %v1316 = vadd.f32 %v1220, %v1315
    %v1317 = vpop.f32.mrf.mxu0
    %1318 = vmatprep.mubr.bf16.mxu0 %v587
    %1319 = vmatmul.mubr.bf16.gmra.mxu0 %v586
    %v1320 = vpop.f32.mrf.mxu0
    %v1321 = vadd.f32 %v1225, %v1320
    %v1322 = vpop.f32.mrf.mxu0
    %v1323 = vpop.f32.mrf.mxu0
    %v1324 = vadd.f32 %v1228, %v1323
    %v1325 = vpop.f32.mrf.mxu0
    %1326 = vmatprep.mubr.bf16.mxu0 %v595
    %1327 = vmatmul.mubr.bf16.gmra.mxu0 %v594
    %v1328 = vpop.f32.mrf.mxu0
    %v1329 = vadd.f32 %v1233, %v1328
    %v1330 = vpop.f32.mrf.mxu0
    %v1331 = vpop.f32.mrf.mxu0
    %v1332 = vadd.f32 %v1236, %v1331
    %v1333 = vpop.f32.mrf.mxu0
    %1334 = vmatprep.mubr.bf16.mxu0 %v603
    %1335 = vmatmul.mubr.bf16.gmra.mxu0 %v602
    %v1336 = vpop.f32.mrf.mxu0
    %v1337 = vadd.f32 %v1241, %v1336
    %v1338 = vpop.f32.mrf.mxu0
    %v1339 = vpop.f32.mrf.mxu0
    %v1340 = vadd.f32 %v1244, %v1339
    %v1341 = vpop.f32.mrf.mxu0
    %1342 = vmatprep.mubr.bf16.mxu0 %v611
    %1343 = vmatmul.mubr.bf16.gmra.mxu0 %v610
    %v1344 = vpop.f32.mrf.mxu0
    %v1345 = vadd.f32 %v1249, %v1344
    %v1346 = vpop.f32.mrf.mxu0
    %v1347 = vpop.f32.mrf.mxu0
    %v1348 = vpop.f32.mrf.mxu0
    %1349 = vdwg.mxu0
    %1350 = vmatprep.subr.bf16.mxu0 0
    %1351 = vmatpush1.bf16.msra.mxu0 %v989
    %1352 = vmatprep.subr.bf16.mxu0 0
    %1353 = vmatpush1.bf16.msra.mxu0 %v988
    %1354 = vmatprep.subr.bf16.mxu0 0
    %1355 = vmatpush1.bf16.msra.mxu0 %v987
    %1356 = vmatprep.subr.bf16.mxu0 0
    %1357 = vmatpush1.bf16.msra.mxu0 %v986
    %1358 = vmatprep.subr.bf16.mxu0 0
    %1359 = vmatpush1.bf16.msra.mxu0 %v985
    %1360 = vmatprep.subr.bf16.mxu0 0
    %1361 = vmatpush1.bf16.msra.mxu0 %v984
    %1362 = vmatprep.subr.bf16.mxu0 0
    %1363 = vmatpush1.bf16.msra.mxu0 %v983
    %1364 = vmatprep.subr.bf16.mxu0 0
    %1365 = vmatpush1.bf16.msra.mxu0 %v982
    %1366 = vmatprep.subr.bf16.mxu0 0
    %1367 = vmatpush2.bf16.msra.mxu0 %v997
    %1368 = vmatprep.subr.bf16.mxu0 0
    %1369 = vmatpush2.bf16.msra.mxu0 %v996
    %1370 = vmatprep.subr.bf16.mxu0 0
    %1371 = vmatpush2.bf16.msra.mxu0 %v995
    %1372 = vmatprep.subr.bf16.mxu0 0
    %1373 = vmatpush2.bf16.msra.mxu0 %v994
    %1374 = vmatprep.subr.bf16.mxu0 0
    %1375 = vmatpush2.bf16.msra.mxu0 %v993
    %1376 = vmatprep.subr.bf16.mxu0 0
    %1377 = vmatpush2.bf16.msra.mxu0 %v992
    %1378 = vmatprep.subr.bf16.mxu0 0
    %1379 = vmatpush2.bf16.msra.mxu0 %v991
    %1380 = vmatprep.subr.bf16.mxu0 0
    %1381 = vmatpush2.bf16.msra.mxu0 %v990
    %1382 = vmatprep.mubr.bf16.mxu0 %v557
    %1383 = vmatmul.mubr.bf16.gmra.mxu0 %v556
    %v1384 = vpop.f32.mrf.mxu0
    %v1385 = vadd.f32 %v1289, %v1384
    %v1386 = vpop.f32.mrf.mxu0
    %v1387 = vpop.f32.mrf.mxu0
    %v1388 = vadd.f32 %v1292, %v1387
    %v1389 = vpop.f32.mrf.mxu0
    %1390 = vmatprep.mubr.bf16.mxu0 %v565
    %1391 = vmatmul.mubr.bf16.gmra.mxu0 %v564
    %v1392 = vpop.f32.mrf.mxu0
    %v1393 = vadd.f32 %v1297, %v1392
    %v1394 = vpop.f32.mrf.mxu0
    %v1395 = vpop.f32.mrf.mxu0
    %v1396 = vadd.f32 %v1300, %v1395
    %v1397 = vpop.f32.mrf.mxu0
    %1398 = vmatprep.mubr.bf16.mxu0 %v573
    %1399 = vmatmul.mubr.bf16.gmra.mxu0 %v572
    %v1400 = vpop.f32.mrf.mxu0
    %v1401 = vadd.f32 %v1305, %v1400
    %v1402 = vpop.f32.mrf.mxu0
    %v1403 = vpop.f32.mrf.mxu0
    %v1404 = vadd.f32 %v1308, %v1403
    %v1405 = vpop.f32.mrf.mxu0
    %1406 = vmatprep.mubr.bf16.mxu0 %v581
    %1407 = vmatmul.mubr.bf16.gmra.mxu0 %v580
    %v1408 = vpop.f32.mrf.mxu0
    %v1409 = vadd.f32 %v1313, %v1408
    %v1410 = vpop.f32.mrf.mxu0
    %v1411 = vpop.f32.mrf.mxu0
    %v1412 = vadd.f32 %v1316, %v1411
    %v1413 = vpop.f32.mrf.mxu0
    %1414 = vmatprep.mubr.bf16.mxu0 %v589
    %1415 = vmatmul.mubr.bf16.gmra.mxu0 %v588
    %v1416 = vpop.f32.mrf.mxu0
    %v1417 = vadd.f32 %v1321, %v1416
    %v1418 = vpop.f32.mrf.mxu0
    %v1419 = vpop.f32.mrf.mxu0
    %v1420 = vadd.f32 %v1324, %v1419
    %v1421 = vpop.f32.mrf.mxu0
    %1422 = vmatprep.mubr.bf16.mxu0 %v597
    %1423 = vmatmul.mubr.bf16.gmra.mxu0 %v596
    %v1424 = vpop.f32.mrf.mxu0
    %v1425 = vadd.f32 %v1329, %v1424
    %v1426 = vpop.f32.mrf.mxu0
    %v1427 = vpop.f32.mrf.mxu0
    %v1428 = vadd.f32 %v1332, %v1427
    %v1429 = vpop.f32.mrf.mxu0
    %1430 = vmatprep.mubr.bf16.mxu0 %v605
    %1431 = vmatmul.mubr.bf16.gmra.mxu0 %v604
    %v1432 = vpop.f32.mrf.mxu0
    %v1433 = vadd.f32 %v1337, %v1432
    %v1434 = vpop.f32.mrf.mxu0
    %v1435 = vpop.f32.mrf.mxu0
    %v1436 = vadd.f32 %v1340, %v1435
    %v1437 = vpop.f32.mrf.mxu0
    %1438 = vmatprep.mubr.bf16.mxu0 %v613
    %1439 = vmatmul.mubr.bf16.gmra.mxu0 %v612
    %v1440 = vpop.f32.mrf.mxu0
    %v1441 = vadd.f32 %v1345, %v1440
    %v1442 = vpop.f32.mrf.mxu0
    %v1443 = vpop.f32.mrf.mxu0
    %v1444 = vpop.f32.mrf.mxu0
    %1445 = vdwg.mxu0
    %v1446 = vld [vmem:[%s1] sm:$0xff]
    %v1447 = vld [vmem:[%s1 + $0x8] sm:$0xff]
    %v1448 = vld [vmem:[%s1 + $0x10] sm:$0xff]
    %v1449 = vld [vmem:[%s1 + $0x18] sm:$0xff]
    %v1450 = vld [vmem:[%s1 + $0x20] sm:$0xff]
    %v1451 = vld [vmem:[%s1 + $0x28] sm:$0xff]
    %v1452 = vld [vmem:[%s1 + $0x30] sm:$0xff]
    %v1453 = vld [vmem:[%s1 + $0x38] sm:$0xff]
    %v1454 = vld [vmem:[%s1 + $0x40] sm:$0xff]
    %v1455 = vld [vmem:[%s1 + $0x48] sm:$0xff]
    %v1456 = vld [vmem:[%s1 + $0x50] sm:$0xff]
    %v1457 = vld [vmem:[%s1 + $0x58] sm:$0xff]
    %v1458 = vld [vmem:[%s1 + $0x60] sm:$0xff]
    %v1459 = vld [vmem:[%s1 + $0x68] sm:$0xff]
    %v1460 = vld [vmem:[%s1 + $0x70] sm:$0xff]
    %v1461 = vld [vmem:[%s1 + $0x78] sm:$0xff]
    %v1462 = vld [vmem:[%s1 + $0x80] sm:$0xff]
    %v1463 = vld [vmem:[%s1 + $0x88] sm:$0xff]
    %v1464 = vld [vmem:[%s1 + $0x90] sm:$0xff]
    %v1465 = vld [vmem:[%s1 + $0x98] sm:$0xff]
    %v1466 = vld [vmem:[%s1 + $0xa0] sm:$0xff]
    %v1467 = vld [vmem:[%s1 + $0xa8] sm:$0xff]
    %v1468 = vld [vmem:[%s1 + $0xb0] sm:$0xff]
    %v1469 = vld [vmem:[%s1 + $0xb8] sm:$0xff]
    %v1470 = vld [vmem:[%s1 + $0xc0] sm:$0xff]
    %v1471 = vld [vmem:[%s1 + $0xc8] sm:$0xff]
    %v1472 = vld [vmem:[%s1 + $0xd0] sm:$0xff]
    %v1473 = vld [vmem:[%s1 + $0xd8] sm:$0xff]
    %v1474 = vld [vmem:[%s1 + $0xe0] sm:$0xff]
    %v1475 = vld [vmem:[%s1 + $0xe8] sm:$0xff]
    %v1476 = vld [vmem:[%s5] sm:$0xf]
    %v1477 = vld [vmem:[%s5 + $0x4] sm:$0xf]
    %v1478 = vld [vmem:[%s5 + $0x8] sm:$0xf]
    %v1479 = vld [vmem:[%s5 + $0xc] sm:$0xf]
    %v1480 = vld [vmem:[%s5 + $0x10] sm:$0xf]
    %v1481 = vld [vmem:[%s5 + $0x14] sm:$0xf]
    %v1482 = vld [vmem:[%s5 + $0x18] sm:$0xf]
    %v1483 = vld [vmem:[%s5 + $0x1c] sm:$0xf]
    %v1484 = vld [vmem:[%s5 + $0x20] sm:$0xf]
    %v1485 = vld [vmem:[%s5 + $0x24] sm:$0xf]
    %v1486 = vld [vmem:[%s5 + $0x28] sm:$0xf]
    %v1487 = vld [vmem:[%s5 + $0x2c] sm:$0xf]
    %v1488 = vld [vmem:[%s5 + $0x30] sm:$0xf]
    %v1489 = vld [vmem:[%s5 + $0x34] sm:$0xf]
    %v1490 = vld [vmem:[%s5 + $0x38] sm:$0xf]
    %v1491 = vld [vmem:[%s5 + $0x3c] sm:$0xf]
    %v1492 = vld [vmem:[%s5 + $0x40] sm:$0xf]
    %v1493 = vld [vmem:[%s5 + $0x44] sm:$0xf]
    %v1494 = vld [vmem:[%s5 + $0x48] sm:$0xf]
    %v1495 = vld [vmem:[%s5 + $0x4c] sm:$0xf]
    %v1496 = vld [vmem:[%s5 + $0x50] sm:$0xf]
    %v1497 = vld [vmem:[%s5 + $0x54] sm:$0xf]
    %v1498 = vld [vmem:[%s5 + $0x58] sm:$0xf]
    %v1499 = vld [vmem:[%s5 + $0x5c] sm:$0xf]
    %v1500 = vld [vmem:[%s5 + $0x60] sm:$0xf]
    %v1501 = vld [vmem:[%s5 + $0x64] sm:$0xf]
    %v1502 = vld [vmem:[%s5 + $0x68] sm:$0xf]
    %v1503 = vld [vmem:[%s5 + $0x6c] sm:$0xf]
    %v1504 = vld [vmem:[%s5 + $0x70] sm:$0xf]
    %v1505 = vld [vmem:[%s5 + $0x74] sm:$0xf]
    %v1506 = vld [vmem:[%s5 + $0x78] sm:$0xf]
    %v1507 = vld [vmem:[%s5 + $0x7c] sm:$0xf]
    %v1508 = vld [vmem:[%s5 + $0x80] sm:$0xf]
    %v1509 = vld [vmem:[%s5 + $0x84] sm:$0xf]
    %v1510 = vld [vmem:[%s5 + $0x88] sm:$0xf]
    %v1511 = vld [vmem:[%s5 + $0x8c] sm:$0xf]
    %v1512 = vld [vmem:[%s5 + $0x90] sm:$0xf]
    %v1513 = vld [vmem:[%s5 + $0x94] sm:$0xf]
    %v1514 = vld [vmem:[%s5 + $0x98] sm:$0xf]
    %v1515 = vld [vmem:[%s5 + $0x9c] sm:$0xf]
    %v1516 = vld [vmem:[%s5 + $0xa0] sm:$0xf]
    %v1517 = vld [vmem:[%s5 + $0xa4] sm:$0xf]
    %v1518 = vld [vmem:[%s5 + $0xa8] sm:$0xf]
    %v1519 = vld [vmem:[%s5 + $0xac] sm:$0xf]
    %v1520 = vld [vmem:[%s5 + $0xb0] sm:$0xf]
    %v1521 = vld [vmem:[%s5 + $0xb4] sm:$0xf]
    %v1522 = vld [vmem:[%s5 + $0xb8] sm:$0xf]
    %v1523 = vld [vmem:[%s5 + $0xbc] sm:$0xf]
    %v1524 = vld [vmem:[%s5 + $0xc0] sm:$0xf]
    %v1525 = vld [vmem:[%s5 + $0xc4] sm:$0xf]
    %v1526 = vld [vmem:[%s5 + $0xc8] sm:$0xf]
    %v1527 = vld [vmem:[%s5 + $0xcc] sm:$0xf]
    %v1528 = vld [vmem:[%s5 + $0xd0] sm:$0xf]
    %v1529 = vld [vmem:[%s5 + $0xd4] sm:$0xf]
    %v1530 = vld [vmem:[%s5 + $0xd8] sm:$0xf]
    %v1531 = vld [vmem:[%s5 + $0xdc] sm:$0xf]
    %v1532 = vld [vmem:[%s5 + $0xe0] sm:$0xf]
    %v1533 = vld [vmem:[%s5 + $0xe4] sm:$0xf]
    %v1534 = vld [vmem:[%s5 + $0xe8] sm:$0xf]
    %v1535 = vld [vmem:[%s5 + $0xec] sm:$0xf]
    %v1536 = vld [vmem:[%s5 + $0xf0] sm:$0xf]
    %v1537 = vld [vmem:[%s5 + $0xf4] sm:$0xf]
    %v1538 = vld [vmem:[%s5 + $0xf8] sm:$0xf]
    %v1539 = vld [vmem:[%s5 + $0xfc] sm:$0xf]
    %v1540 = vld [vmem:[#allocation8] sm:$0x1]
    %v1542 = vlaneseq
    %v1543 = vshrl.u32 %v1542, 7
    %v1544 = vsub.s32 0, %v1543
    %v1545 = vrot.slane %v1540, %v1544
    %v1577 = vunpack.c.l.b16 %v1446
    %v1578 = vunpack.c.h.b16 %v1446
    %v1579 = vunpack.c.l.b16 %v1447
    %v1580 = vunpack.c.h.b16 %v1447
    %v1581 = vunpack.c.l.b16 %v1448
    %v1582 = vunpack.c.h.b16 %v1448
    %v1583 = vunpack.c.l.b16 %v1449
    %v1584 = vunpack.c.h.b16 %v1449
    %v1585 = vunpack.c.l.b16 %v1450
    %v1586 = vunpack.c.h.b16 %v1450
    %v1587 = vunpack.c.l.b16 %v1451
    %v1588 = vunpack.c.h.b16 %v1451
    %v1589 = vunpack.c.l.b16 %v1452
    %v1590 = vunpack.c.h.b16 %v1452
    %v1591 = vunpack.c.l.b16 %v1453
    %v1592 = vunpack.c.h.b16 %v1453
    %v1593 = vunpack.c.l.b16 %v1454
    %v1594 = vunpack.c.h.b16 %v1454
    %v1595 = vunpack.c.l.b16 %v1455
    %v1596 = vunpack.c.h.b16 %v1455
    %v1597 = vunpack.c.l.b16 %v1456
    %v1598 = vunpack.c.h.b16 %v1456
    %v1599 = vunpack.c.l.b16 %v1457
    %v1600 = vunpack.c.h.b16 %v1457
    %v1601 = vunpack.c.l.b16 %v1458
    %v1602 = vunpack.c.h.b16 %v1458
    %v1603 = vunpack.c.l.b16 %v1459
    %v1604 = vunpack.c.h.b16 %v1459
    %v1605 = vunpack.c.l.b16 %v1460
    %v1606 = vunpack.c.h.b16 %v1460
    %v1607 = vunpack.c.l.b16 %v1461
    %v1608 = vunpack.c.h.b16 %v1461
    %v1609 = vunpack.c.l.b16 %v1462
    %v1610 = vunpack.c.h.b16 %v1462
    %v1611 = vunpack.c.l.b16 %v1463
    %v1612 = vunpack.c.h.b16 %v1463
    %v1613 = vunpack.c.l.b16 %v1464
    %v1614 = vunpack.c.h.b16 %v1464
    %v1615 = vunpack.c.l.b16 %v1465
    %v1616 = vunpack.c.h.b16 %v1465
    %v1617 = vunpack.c.l.b16 %v1466
    %v1618 = vunpack.c.h.b16 %v1466
    %v1619 = vunpack.c.l.b16 %v1467
    %v1620 = vunpack.c.h.b16 %v1467
    %v1621 = vunpack.c.l.b16 %v1468
    %v1622 = vunpack.c.h.b16 %v1468
    %v1623 = vunpack.c.l.b16 %v1469
    %v1624 = vunpack.c.h.b16 %v1469
    %v1625 = vunpack.c.l.b16 %v1470
    %v1626 = vunpack.c.h.b16 %v1470
    %v1627 = vunpack.c.l.b16 %v1471
    %v1628 = vunpack.c.h.b16 %v1471
    %v1629 = vunpack.c.l.b16 %v1472
    %v1630 = vunpack.c.h.b16 %v1472
    %v1631 = vunpack.c.l.b16 %v1473
    %v1632 = vunpack.c.h.b16 %v1473
    %v1633 = vunpack.c.l.b16 %v1474
    %v1634 = vunpack.c.h.b16 %v1474
    %v1635 = vunpack.c.l.b16 %v1475
    %v1636 = vunpack.c.h.b16 %v1475
    %v1637 = vpack.c.b16 %v1581, %v1577
    %v1638 = vpack.c.b16 %v1582, %v1578
    %v1639 = vpack.c.b16 %v1583, %v1579
    %v1640 = vpack.c.b16 %v1584, %v1580
    %v1641 = vpack.c.b16 %v1589, %v1585
    %v1642 = vpack.c.b16 %v1590, %v1586
    %v1643 = vpack.c.b16 %v1591, %v1587
    %v1644 = vpack.c.b16 %v1592, %v1588
    %v1645 = vpack.c.b16 %v1597, %v1593
    %v1646 = vpack.c.b16 %v1598, %v1594
    %v1647 = vpack.c.b16 %v1599, %v1595
    %v1648 = vpack.c.b16 %v1600, %v1596
    %v1649 = vpack.c.b16 %v1605, %v1601
    %v1650 = vpack.c.b16 %v1606, %v1602
    %v1651 = vpack.c.b16 %v1607, %v1603
    %v1652 = vpack.c.b16 %v1608, %v1604
    %v1653 = vpack.c.b16 %v1613, %v1609
    %v1654 = vpack.c.b16 %v1614, %v1610
    %v1655 = vpack.c.b16 %v1615, %v1611
    %v1656 = vpack.c.b16 %v1616, %v1612
    %v1657 = vpack.c.b16 %v1621, %v1617
    %v1658 = vpack.c.b16 %v1622, %v1618
    %v1659 = vpack.c.b16 %v1623, %v1619
    %v1660 = vpack.c.b16 %v1624, %v1620
    %v1661 = vpack.c.b16 %v1629, %v1625
    %v1662 = vpack.c.b16 %v1630, %v1626
    %v1663 = vpack.c.b16 %v1631, %v1627
    %v1664 = vpack.c.b16 %v1632, %v1628
    %v1665 = vpack.c.b16 %v1633, %v1633
    %v1666 = vpack.c.b16 %v1634, %v1634
    %v1667 = vpack.c.b16 %v1635, %v1635
    %v1668 = vpack.c.b16 %v1636, %v1636
    %v1765 = vunpack.c.l.b16 %v1476
    %v1766 = vunpack.c.l.b16 %v1477
    %v1767 = vunpack.c.l.b16 %v1478
    %v1768 = vunpack.c.l.b16 %v1479
    %v1769 = vunpack.c.l.b16 %v1480
    %v1770 = vunpack.c.l.b16 %v1481
    %v1771 = vunpack.c.l.b16 %v1482
    %v1772 = vunpack.c.l.b16 %v1483
    %v1773 = vunpack.c.l.b16 %v1484
    %v1774 = vunpack.c.l.b16 %v1485
    %v1775 = vunpack.c.l.b16 %v1486
    %v1776 = vunpack.c.l.b16 %v1487
    %v1777 = vunpack.c.l.b16 %v1488
    %v1778 = vunpack.c.l.b16 %v1489
    %v1779 = vunpack.c.l.b16 %v1490
    %v1780 = vunpack.c.l.b16 %v1491
    %v1781 = vunpack.c.l.b16 %v1492
    %v1782 = vunpack.c.l.b16 %v1493
    %v1783 = vunpack.c.l.b16 %v1494
    %v1784 = vunpack.c.l.b16 %v1495
    %v1785 = vunpack.c.l.b16 %v1496
    %v1786 = vunpack.c.l.b16 %v1497
    %v1787 = vunpack.c.l.b16 %v1498
    %v1788 = vunpack.c.l.b16 %v1499
    %v1789 = vunpack.c.l.b16 %v1500
    %v1790 = vunpack.c.l.b16 %v1501
    %v1791 = vunpack.c.l.b16 %v1502
    %v1792 = vunpack.c.l.b16 %v1503
    %v1793 = vunpack.c.l.b16 %v1504
    %v1794 = vunpack.c.l.b16 %v1505
    %v1795 = vunpack.c.l.b16 %v1506
    %v1796 = vunpack.c.l.b16 %v1507
    %v1797 = vunpack.c.l.b16 %v1508
    %v1798 = vunpack.c.l.b16 %v1509
    %v1799 = vunpack.c.l.b16 %v1510
    %v1800 = vunpack.c.l.b16 %v1511
    %v1801 = vunpack.c.l.b16 %v1512
    %v1802 = vunpack.c.l.b16 %v1513
    %v1803 = vunpack.c.l.b16 %v1514
    %v1804 = vunpack.c.l.b16 %v1515
    %v1805 = vunpack.c.l.b16 %v1516
    %v1806 = vunpack.c.l.b16 %v1517
    %v1807 = vunpack.c.l.b16 %v1518
    %v1808 = vunpack.c.l.b16 %v1519
    %v1809 = vunpack.c.l.b16 %v1520
    %v1810 = vunpack.c.l.b16 %v1521
    %v1811 = vunpack.c.l.b16 %v1522
    %v1812 = vunpack.c.l.b16 %v1523
    %v1813 = vunpack.c.l.b16 %v1524
    %v1814 = vunpack.c.l.b16 %v1525
    %v1815 = vunpack.c.l.b16 %v1526
    %v1816 = vunpack.c.l.b16 %v1527
    %v1817 = vunpack.c.l.b16 %v1528
    %v1818 = vunpack.c.l.b16 %v1529
    %v1819 = vunpack.c.l.b16 %v1530
    %v1820 = vunpack.c.l.b16 %v1531
    %v1821 = vunpack.c.l.b16 %v1532
    %v1822 = vunpack.c.l.b16 %v1533
    %v1823 = vunpack.c.l.b16 %v1534
    %v1824 = vunpack.c.l.b16 %v1535
    %v1825 = vunpack.c.l.b16 %v1536
    %v1826 = vunpack.c.l.b16 %v1537
    %v1827 = vunpack.c.l.b16 %v1538
    %v1828 = vunpack.c.l.b16 %v1539
    %v1829 = vpack.c.b16 %v1766, %v1765
    %v1830 = vpack.c.b16 %v1768, %v1767
    %v1831 = vpack.c.b16 %v1770, %v1769
    %v1832 = vpack.c.b16 %v1772, %v1771
    %v1833 = vpack.c.b16 %v1774, %v1773
    %v1834 = vpack.c.b16 %v1776, %v1775
    %v1835 = vpack.c.b16 %v1778, %v1777
    %v1836 = vpack.c.b16 %v1780, %v1779
    %v1837 = vpack.c.b16 %v1782, %v1781
    %v1838 = vpack.c.b16 %v1784, %v1783
    %v1839 = vpack.c.b16 %v1786, %v1785
    %v1840 = vpack.c.b16 %v1788, %v1787
    %v1841 = vpack.c.b16 %v1790, %v1789
    %v1842 = vpack.c.b16 %v1792, %v1791
    %v1843 = vpack.c.b16 %v1794, %v1793
    %v1844 = vpack.c.b16 %v1796, %v1795
    %v1845 = vpack.c.b16 %v1798, %v1797
    %v1846 = vpack.c.b16 %v1800, %v1799
    %v1847 = vpack.c.b16 %v1802, %v1801
    %v1848 = vpack.c.b16 %v1804, %v1803
    %v1849 = vpack.c.b16 %v1806, %v1805
    %v1850 = vpack.c.b16 %v1808, %v1807
    %v1851 = vpack.c.b16 %v1810, %v1809
    %v1852 = vpack.c.b16 %v1812, %v1811
    %v1853 = vpack.c.b16 %v1814, %v1813
    %v1854 = vpack.c.b16 %v1816, %v1815
    %v1855 = vpack.c.b16 %v1818, %v1817
    %v1856 = vpack.c.b16 %v1820, %v1819
    %v1857 = vpack.c.b16 %v1822, %v1821
    %v1858 = vpack.c.b16 %v1824, %v1823
    %v1859 = vpack.c.b16 %v1826, %v1825
    %v1860 = vpack.c.b16 %v1828, %v1827
    %1893 = vmatprep.subr.bf16.mxu0 0
    %1894 = vmatpush1.bf16.msra.mxu0 %v1836
    %1895 = vmatprep.subr.bf16.mxu0 0
    %1896 = vmatpush1.bf16.msra.mxu0 %v1835
    %1897 = vmatprep.subr.bf16.mxu0 0
    %1898 = vmatpush1.bf16.msra.mxu0 %v1834
    %1899 = vmatprep.subr.bf16.mxu0 0
    %1900 = vmatpush1.bf16.msra.mxu0 %v1833
    %1901 = vmatprep.subr.bf16.mxu0 0
    %1902 = vmatpush1.bf16.msra.mxu0 %v1832
    %1903 = vmatprep.subr.bf16.mxu0 0
    %1904 = vmatpush1.bf16.msra.mxu0 %v1831
    %1905 = vmatprep.subr.bf16.mxu0 0
    %1906 = vmatpush1.bf16.msra.mxu0 %v1830
    %1907 = vmatprep.subr.bf16.mxu0 0
    %1908 = vmatpush1.bf16.msra.mxu0 %v1829
    %1909 = vmatprep.subr.bf16.mxu0 0
    %1910 = vmatpush2.bf16.msra.mxu0 %v1844
    %1911 = vmatprep.subr.bf16.mxu0 0
    %1912 = vmatpush2.bf16.msra.mxu0 %v1843
    %1913 = vmatprep.subr.bf16.mxu0 0
    %1914 = vmatpush2.bf16.msra.mxu0 %v1842
    %1915 = vmatprep.subr.bf16.mxu0 0
    %1916 = vmatpush2.bf16.msra.mxu0 %v1841
    %1917 = vmatprep.subr.bf16.mxu0 0
    %1918 = vmatpush2.bf16.msra.mxu0 %v1840
    %1919 = vmatprep.subr.bf16.mxu0 0
    %1920 = vmatpush2.bf16.msra.mxu0 %v1839
    %1921 = vmatprep.subr.bf16.mxu0 0
    %1922 = vmatpush2.bf16.msra.mxu0 %v1838
    %1923 = vmatprep.subr.bf16.mxu0 0
    %1924 = vmatpush2.bf16.msra.mxu0 %v1837
    %1925 = vmatprep.mubr.bf16.mxu0 %v1638
    %1926 = vmatmul.mubr.bf16.gmra.mxu0 %v1637
    %v1927 = vpop.f32.mrf.mxu0
    %v1928 = vadd.f32 %v1545, %v1927
    %v1929 = vpop.f32.mrf.mxu0
    %v1930 = vpop.f32.mrf.mxu0
    %v1931 = vadd.f32 %v1545, %v1930
    %v1932 = vpop.f32.mrf.mxu0
    %1933 = vmatprep.mubr.bf16.mxu0 %v1642
    %1934 = vmatmul.mubr.bf16.gmra.mxu0 %v1641
    %v1935 = vpop.f32.mrf.mxu0
    %v1936 = vadd.f32 %v1545, %v1935
    %v1937 = vpop.f32.mrf.mxu0
    %v1938 = vpop.f32.mrf.mxu0
    %v1939 = vadd.f32 %v1545, %v1938
    %v1940 = vpop.f32.mrf.mxu0
    %1941 = vmatprep.mubr.bf16.mxu0 %v1646
    %1942 = vmatmul.mubr.bf16.gmra.mxu0 %v1645
    %v1943 = vpop.f32.mrf.mxu0
    %v1944 = vadd.f32 %v1545, %v1943
    %v1945 = vpop.f32.mrf.mxu0
    %v1946 = vpop.f32.mrf.mxu0
    %v1947 = vadd.f32 %v1545, %v1946
    %v1948 = vpop.f32.mrf.mxu0
    %1949 = vmatprep.mubr.bf16.mxu0 %v1650
    %1950 = vmatmul.mubr.bf16.gmra.mxu0 %v1649
    %v1951 = vpop.f32.mrf.mxu0
    %v1952 = vadd.f32 %v1545, %v1951
    %v1953 = vpop.f32.mrf.mxu0
    %v1954 = vpop.f32.mrf.mxu0
    %v1955 = vadd.f32 %v1545, %v1954
    %v1956 = vpop.f32.mrf.mxu0
    %1957 = vmatprep.mubr.bf16.mxu0 %v1654
    %1958 = vmatmul.mubr.bf16.gmra.mxu0 %v1653
    %v1959 = vpop.f32.mrf.mxu0
    %v1960 = vadd.f32 %v1545, %v1959
    %v1961 = vpop.f32.mrf.mxu0
    %v1962 = vpop.f32.mrf.mxu0
    %v1963 = vadd.f32 %v1545, %v1962
    %v1964 = vpop.f32.mrf.mxu0
    %1965 = vmatprep.mubr.bf16.mxu0 %v1658
    %1966 = vmatmul.mubr.bf16.gmra.mxu0 %v1657
    %v1967 = vpop.f32.mrf.mxu0
    %v1968 = vadd.f32 %v1545, %v1967
    %v1969 = vpop.f32.mrf.mxu0
    %v1970 = vpop.f32.mrf.mxu0
    %v1971 = vadd.f32 %v1545, %v1970
    %v1972 = vpop.f32.mrf.mxu0
    %1973 = vmatprep.mubr.bf16.mxu0 %v1662
    %1974 = vmatmul.mubr.bf16.gmra.mxu0 %v1661
    %v1975 = vpop.f32.mrf.mxu0
    %v1976 = vadd.f32 %v1545, %v1975
    %v1977 = vpop.f32.mrf.mxu0
    %v1978 = vpop.f32.mrf.mxu0
    %v1979 = vadd.f32 %v1545, %v1978
    %v1980 = vpop.f32.mrf.mxu0
    %1981 = vmatprep.mubr.bf16.mxu0 %v1666
    %1982 = vmatmul.mubr.bf16.gmra.mxu0 %v1665
    %v1983 = vpop.f32.mrf.mxu0
    %v1984 = vadd.f32 %v1545, %v1983
    %v1985 = vpop.f32.mrf.mxu0
    %v1986 = vpop.f32.mrf.mxu0
    %v1987 = vpop.f32.mrf.mxu0
    %1988 = vdwg.mxu0
    %1989 = vmatprep.subr.bf16.mxu0 0
    %1990 = vmatpush1.bf16.msra.mxu0 %v1852
    %1991 = vmatprep.subr.bf16.mxu0 0
    %1992 = vmatpush1.bf16.msra.mxu0 %v1851
    %1993 = vmatprep.subr.bf16.mxu0 0
    %1994 = vmatpush1.bf16.msra.mxu0 %v1850
    %1995 = vmatprep.subr.bf16.mxu0 0
    %1996 = vmatpush1.bf16.msra.mxu0 %v1849
    %1997 = vmatprep.subr.bf16.mxu0 0
    %1998 = vmatpush1.bf16.msra.mxu0 %v1848
    %1999 = vmatprep.subr.bf16.mxu0 0
    %2000 = vmatpush1.bf16.msra.mxu0 %v1847
    %2001 = vmatprep.subr.bf16.mxu0 0
    %2002 = vmatpush1.bf16.msra.mxu0 %v1846
    %2003 = vmatprep.subr.bf16.mxu0 0
    %2004 = vmatpush1.bf16.msra.mxu0 %v1845
    %2005 = vmatprep.subr.bf16.mxu0 0
    %2006 = vmatpush2.bf16.msra.mxu0 %v1860
    %2007 = vmatprep.subr.bf16.mxu0 0
    %2008 = vmatpush2.bf16.msra.mxu0 %v1859
    %2009 = vmatprep.subr.bf16.mxu0 0
    %2010 = vmatpush2.bf16.msra.mxu0 %v1858
    %2011 = vmatprep.subr.bf16.mxu0 0
    %2012 = vmatpush2.bf16.msra.mxu0 %v1857
    %2013 = vmatprep.subr.bf16.mxu0 0
    %2014 = vmatpush2.bf16.msra.mxu0 %v1856
    %2015 = vmatprep.subr.bf16.mxu0 0
    %2016 = vmatpush2.bf16.msra.mxu0 %v1855
    %2017 = vmatprep.subr.bf16.mxu0 0
    %2018 = vmatpush2.bf16.msra.mxu0 %v1854
    %2019 = vmatprep.subr.bf16.mxu0 0
    %2020 = vmatpush2.bf16.msra.mxu0 %v1853
    %2021 = vmatprep.mubr.bf16.mxu0 %v1640
    %2022 = vmatmul.mubr.bf16.gmra.mxu0 %v1639
    %v2023 = vpop.f32.mrf.mxu0
    %v2024 = vadd.f32 %v1928, %v2023
    %v2025 = vpop.f32.mrf.mxu0
    %v2026 = vpop.f32.mrf.mxu0
    %v2027 = vadd.f32 %v1931, %v2026
    %v2028 = vpop.f32.mrf.mxu0
    %2029 = vmatprep.mubr.bf16.mxu0 %v1644
    %2030 = vmatmul.mubr.bf16.gmra.mxu0 %v1643
    %v2031 = vpop.f32.mrf.mxu0
    %v2032 = vadd.f32 %v1936, %v2031
    %v2033 = vpop.f32.mrf.mxu0
    %v2034 = vpop.f32.mrf.mxu0
    %v2035 = vadd.f32 %v1939, %v2034
    %v2036 = vpop.f32.mrf.mxu0
    %2037 = vmatprep.mubr.bf16.mxu0 %v1648
    %2038 = vmatmul.mubr.bf16.gmra.mxu0 %v1647
    %v2039 = vpop.f32.mrf.mxu0
    %v2040 = vadd.f32 %v1944, %v2039
    %v2041 = vpop.f32.mrf.mxu0
    %v2042 = vpop.f32.mrf.mxu0
    %v2043 = vadd.f32 %v1947, %v2042
    %v2044 = vpop.f32.mrf.mxu0
    %2045 = vmatprep.mubr.bf16.mxu0 %v1652
    %2046 = vmatmul.mubr.bf16.gmra.mxu0 %v1651
    %v2047 = vpop.f32.mrf.mxu0
    %v2048 = vadd.f32 %v1952, %v2047
    %v2049 = vpop.f32.mrf.mxu0
    %v2050 = vpop.f32.mrf.mxu0
    %v2051 = vadd.f32 %v1955, %v2050
    %v2052 = vpop.f32.mrf.mxu0
    %2053 = vmatprep.mubr.bf16.mxu0 %v1656
    %2054 = vmatmul.mubr.bf16.gmra.mxu0 %v1655
    %v2055 = vpop.f32.mrf.mxu0
    %v2056 = vadd.f32 %v1960, %v2055
    %v2057 = vpop.f32.mrf.mxu0
    %v2058 = vpop.f32.mrf.mxu0
    %v2059 = vadd.f32 %v1963, %v2058
    %v2060 = vpop.f32.mrf.mxu0
    %2061 = vmatprep.mubr.bf16.mxu0 %v1660
    %2062 = vmatmul.mubr.bf16.gmra.mxu0 %v1659
    %v2063 = vpop.f32.mrf.mxu0
    %v2064 = vadd.f32 %v1968, %v2063
    %v2065 = vpop.f32.mrf.mxu0
    %v2066 = vpop.f32.mrf.mxu0
    %v2067 = vadd.f32 %v1971, %v2066
    %v2068 = vpop.f32.mrf.mxu0
    %2069 = vmatprep.mubr.bf16.mxu0 %v1664
    %2070 = vmatmul.mubr.bf16.gmra.mxu0 %v1663
    %v2071 = vpop.f32.mrf.mxu0
    %v2072 = vadd.f32 %v1976, %v2071
    %v2073 = vpop.f32.mrf.mxu0
    %v2074 = vpop.f32.mrf.mxu0
    %v2075 = vadd.f32 %v1979, %v2074
    %v2076 = vpop.f32.mrf.mxu0
    %2077 = vmatprep.mubr.bf16.mxu0 %v1668
    %2078 = vmatmul.mubr.bf16.gmra.mxu0 %v1667
    %v2079 = vpop.f32.mrf.mxu0
    %v2080 = vadd.f32 %v1984, %v2079
    %v2081 = vpop.f32.mrf.mxu0
    %v2082 = vpop.f32.mrf.mxu0
    %v2083 = vpop.f32.mrf.mxu0
    %2084 = vdwg.mxu0
    %v2085 = vld [vmem:[%s2] sm:$0xff]
    %v2086 = vld [vmem:[%s2 + $0x8] sm:$0xff]
    %v2087 = vld [vmem:[%s2 + $0x10] sm:$0xff]
    %v2088 = vld [vmem:[%s2 + $0x18] sm:$0xff]
    %v2089 = vld [vmem:[%s2 + $0x20] sm:$0xff]
    %v2090 = vld [vmem:[%s2 + $0x28] sm:$0xff]
    %v2091 = vld [vmem:[%s2 + $0x30] sm:$0xff]
    %v2092 = vld [vmem:[%s2 + $0x38] sm:$0xff]
    %v2093 = vld [vmem:[%s2 + $0x40] sm:$0xff]
    %v2094 = vld [vmem:[%s2 + $0x48] sm:$0xff]
    %v2095 = vld [vmem:[%s2 + $0x50] sm:$0xff]
    %v2096 = vld [vmem:[%s2 + $0x58] sm:$0xff]
    %v2097 = vld [vmem:[%s2 + $0x60] sm:$0xff]
    %v2098 = vld [vmem:[%s2 + $0x68] sm:$0xff]
    %v2099 = vld [vmem:[%s2 + $0x70] sm:$0xff]
    %v2100 = vld [vmem:[%s2 + $0x78] sm:$0xff]
    %v2101 = vld [vmem:[%s2 + $0x80] sm:$0xff]
    %v2102 = vld [vmem:[%s2 + $0x88] sm:$0xff]
    %v2103 = vld [vmem:[%s2 + $0x90] sm:$0xff]
    %v2104 = vld [vmem:[%s2 + $0x98] sm:$0xff]
    %v2105 = vld [vmem:[%s2 + $0xa0] sm:$0xff]
    %v2106 = vld [vmem:[%s2 + $0xa8] sm:$0xff]
    %v2107 = vld [vmem:[%s2 + $0xb0] sm:$0xff]
    %v2108 = vld [vmem:[%s2 + $0xb8] sm:$0xff]
    %v2109 = vld [vmem:[%s2 + $0xc0] sm:$0xff]
    %v2110 = vld [vmem:[%s2 + $0xc8] sm:$0xff]
    %v2111 = vld [vmem:[%s2 + $0xd0] sm:$0xff]
    %v2112 = vld [vmem:[%s2 + $0xd8] sm:$0xff]
    %v2113 = vld [vmem:[%s2 + $0xe0] sm:$0xff]
    %v2114 = vld [vmem:[%s2 + $0xe8] sm:$0xff]
    %v2115 = vld [vmem:[%s2 + $0xf0] sm:$0xff]
    %v2116 = vld [vmem:[%s2 + $0xf8] sm:$0xff]
    %v2117 = vld [vmem:[%s2 + $0x100] sm:$0xff]
    %v2118 = vld [vmem:[%s2 + $0x108] sm:$0xff]
    %v2119 = vld [vmem:[%s2 + $0x110] sm:$0xff]
    %v2120 = vld [vmem:[%s2 + $0x118] sm:$0xff]
    %v2121 = vld [vmem:[%s2 + $0x120] sm:$0xff]
    %v2122 = vld [vmem:[%s2 + $0x128] sm:$0xff]
    %v2123 = vld [vmem:[%s2 + $0x130] sm:$0xff]
    %v2124 = vld [vmem:[%s2 + $0x138] sm:$0xff]
    %v2125 = vld [vmem:[%s2 + $0x140] sm:$0xff]
    %v2126 = vld [vmem:[%s2 + $0x148] sm:$0xff]
    %v2127 = vld [vmem:[%s2 + $0x150] sm:$0xff]
    %v2128 = vld [vmem:[%s2 + $0x158] sm:$0xff]
    %v2129 = vld [vmem:[%s2 + $0x160] sm:$0xff]
    %v2130 = vld [vmem:[%s2 + $0x168] sm:$0xff]
    %v2131 = vld [vmem:[%s2 + $0x170] sm:$0xff]
    %v2132 = vld [vmem:[%s2 + $0x178] sm:$0xff]
    %v2133 = vld [vmem:[%s2 + $0x180] sm:$0xff]
    %v2134 = vld [vmem:[%s2 + $0x188] sm:$0xff]
    %v2135 = vld [vmem:[%s2 + $0x190] sm:$0xff]
    %v2136 = vld [vmem:[%s2 + $0x198] sm:$0xff]
    %v2137 = vld [vmem:[%s2 + $0x1a0] sm:$0xff]
    %v2138 = vld [vmem:[%s2 + $0x1a8] sm:$0xff]
    %v2139 = vld [vmem:[%s2 + $0x1b0] sm:$0xff]
    %v2140 = vld [vmem:[%s2 + $0x1b8] sm:$0xff]
    %v2141 = vld [vmem:[%s2 + $0x1c0] sm:$0xff]
    %v2142 = vld [vmem:[%s2 + $0x1c8] sm:$0xff]
    %v2143 = vld [vmem:[%s2 + $0x1d0] sm:$0xff]
    %v2144 = vld [vmem:[%s2 + $0x1d8] sm:$0xff]
    %v2145 = vld [vmem:[%s7] sm:$0xf]
    %v2146 = vld [vmem:[%s7 + $0x4] sm:$0xf]
    %v2147 = vld [vmem:[%s7 + $0x8] sm:$0xf]
    %v2148 = vld [vmem:[%s7 + $0xc] sm:$0xf]
    %v2149 = vld [vmem:[%s7 + $0x10] sm:$0xf]
    %v2150 = vld [vmem:[%s7 + $0x14] sm:$0xf]
    %v2151 = vld [vmem:[%s7 + $0x18] sm:$0xf]
    %v2152 = vld [vmem:[%s7 + $0x1c] sm:$0xf]
    %v2153 = vld [vmem:[%s7 + $0x20] sm:$0xf]
    %v2154 = vld [vmem:[%s7 + $0x24] sm:$0xf]
    %v2155 = vld [vmem:[%s7 + $0x28] sm:$0xf]
    %v2156 = vld [vmem:[%s7 + $0x2c] sm:$0xf]
    %v2157 = vld [vmem:[%s7 + $0x30] sm:$0xf]
    %v2158 = vld [vmem:[%s7 + $0x34] sm:$0xf]
    %v2159 = vld [vmem:[%s7 + $0x38] sm:$0xf]
    %v2160 = vld [vmem:[%s7 + $0x3c] sm:$0xf]
    %v2161 = vld [vmem:[%s7 + $0x40] sm:$0xf]
    %v2162 = vld [vmem:[%s7 + $0x44] sm:$0xf]
    %v2163 = vld [vmem:[%s7 + $0x48] sm:$0xf]
    %v2164 = vld [vmem:[%s7 + $0x4c] sm:$0xf]
    %v2165 = vld [vmem:[%s7 + $0x50] sm:$0xf]
    %v2166 = vld [vmem:[%s7 + $0x54] sm:$0xf]
    %v2167 = vld [vmem:[%s7 + $0x58] sm:$0xf]
    %v2168 = vld [vmem:[%s7 + $0x5c] sm:$0xf]
    %v2169 = vld [vmem:[%s7 + $0x60] sm:$0xf]
    %v2170 = vld [vmem:[%s7 + $0x64] sm:$0xf]
    %v2171 = vld [vmem:[%s7 + $0x68] sm:$0xf]
    %v2172 = vld [vmem:[%s7 + $0x6c] sm:$0xf]
    %v2173 = vld [vmem:[%s7 + $0x70] sm:$0xf]
    %v2174 = vld [vmem:[%s7 + $0x74] sm:$0xf]
    %v2175 = vld [vmem:[%s7 + $0x78] sm:$0xf]
    %v2176 = vld [vmem:[%s7 + $0x7c] sm:$0xf]
    %v2177 = vld [vmem:[%s7 + $0x80] sm:$0xf]
    %v2178 = vld [vmem:[%s7 + $0x84] sm:$0xf]
    %v2179 = vld [vmem:[%s7 + $0x88] sm:$0xf]
    %v2180 = vld [vmem:[%s7 + $0x8c] sm:$0xf]
    %v2181 = vld [vmem:[%s7 + $0x90] sm:$0xf]
    %v2182 = vld [vmem:[%s7 + $0x94] sm:$0xf]
    %v2183 = vld [vmem:[%s7 + $0x98] sm:$0xf]
    %v2184 = vld [vmem:[%s7 + $0x9c] sm:$0xf]
    %v2185 = vld [vmem:[%s7 + $0xa0] sm:$0xf]
    %v2186 = vld [vmem:[%s7 + $0xa4] sm:$0xf]
    %v2187 = vld [vmem:[%s7 + $0xa8] sm:$0xf]
    %v2188 = vld [vmem:[%s7 + $0xac] sm:$0xf]
    %v2189 = vld [vmem:[%s7 + $0xb0] sm:$0xf]
    %v2190 = vld [vmem:[%s7 + $0xb4] sm:$0xf]
    %v2191 = vld [vmem:[%s7 + $0xb8] sm:$0xf]
    %v2192 = vld [vmem:[%s7 + $0xbc] sm:$0xf]
    %v2193 = vld [vmem:[%s7 + $0xc0] sm:$0xf]
    %v2194 = vld [vmem:[%s7 + $0xc4] sm:$0xf]
    %v2195 = vld [vmem:[%s7 + $0xc8] sm:$0xf]
    %v2196 = vld [vmem:[%s7 + $0xcc] sm:$0xf]
    %v2197 = vld [vmem:[%s7 + $0xd0] sm:$0xf]
    %v2198 = vld [vmem:[%s7 + $0xd4] sm:$0xf]
    %v2199 = vld [vmem:[%s7 + $0xd8] sm:$0xf]
    %v2200 = vld [vmem:[%s7 + $0xdc] sm:$0xf]
    %v2201 = vld [vmem:[%s7 + $0xe0] sm:$0xf]
    %v2202 = vld [vmem:[%s7 + $0xe4] sm:$0xf]
    %v2203 = vld [vmem:[%s7 + $0xe8] sm:$0xf]
    %v2204 = vld [vmem:[%s7 + $0xec] sm:$0xf]
    %v2205 = vld [vmem:[%s7 + $0xf0] sm:$0xf]
    %v2206 = vld [vmem:[%s7 + $0xf4] sm:$0xf]
    %v2207 = vld [vmem:[%s7 + $0xf8] sm:$0xf]
    %v2208 = vld [vmem:[%s7 + $0xfc] sm:$0xf]
    %v2209 = vld [vmem:[%s7 + $0x100] sm:$0xf]
    %v2210 = vld [vmem:[%s7 + $0x104] sm:$0xf]
    %v2211 = vld [vmem:[%s7 + $0x108] sm:$0xf]
    %v2212 = vld [vmem:[%s7 + $0x10c] sm:$0xf]
    %v2213 = vld [vmem:[%s7 + $0x110] sm:$0xf]
    %v2214 = vld [vmem:[%s7 + $0x114] sm:$0xf]
    %v2215 = vld [vmem:[%s7 + $0x118] sm:$0xf]
    %v2216 = vld [vmem:[%s7 + $0x11c] sm:$0xf]
    %v2217 = vld [vmem:[%s7 + $0x120] sm:$0xf]
    %v2218 = vld [vmem:[%s7 + $0x124] sm:$0xf]
    %v2219 = vld [vmem:[%s7 + $0x128] sm:$0xf]
    %v2220 = vld [vmem:[%s7 + $0x12c] sm:$0xf]
    %v2221 = vld [vmem:[%s7 + $0x130] sm:$0xf]
    %v2222 = vld [vmem:[%s7 + $0x134] sm:$0xf]
    %v2223 = vld [vmem:[%s7 + $0x138] sm:$0xf]
    %v2224 = vld [vmem:[%s7 + $0x13c] sm:$0xf]
    %v2225 = vld [vmem:[%s7 + $0x140] sm:$0xf]
    %v2226 = vld [vmem:[%s7 + $0x144] sm:$0xf]
    %v2227 = vld [vmem:[%s7 + $0x148] sm:$0xf]
    %v2228 = vld [vmem:[%s7 + $0x14c] sm:$0xf]
    %v2229 = vld [vmem:[%s7 + $0x150] sm:$0xf]
    %v2230 = vld [vmem:[%s7 + $0x154] sm:$0xf]
    %v2231 = vld [vmem:[%s7 + $0x158] sm:$0xf]
    %v2232 = vld [vmem:[%s7 + $0x15c] sm:$0xf]
    %v2233 = vld [vmem:[%s7 + $0x160] sm:$0xf]
    %v2234 = vld [vmem:[%s7 + $0x164] sm:$0xf]
    %v2235 = vld [vmem:[%s7 + $0x168] sm:$0xf]
    %v2236 = vld [vmem:[%s7 + $0x16c] sm:$0xf]
    %v2237 = vld [vmem:[%s7 + $0x170] sm:$0xf]
    %v2238 = vld [vmem:[%s7 + $0x174] sm:$0xf]
    %v2239 = vld [vmem:[%s7 + $0x178] sm:$0xf]
    %v2240 = vld [vmem:[%s7 + $0x17c] sm:$0xf]
    %v2241 = vld [vmem:[%s7 + $0x180] sm:$0xf]
    %v2242 = vld [vmem:[%s7 + $0x184] sm:$0xf]
    %v2243 = vld [vmem:[%s7 + $0x188] sm:$0xf]
    %v2244 = vld [vmem:[%s7 + $0x18c] sm:$0xf]
    %v2245 = vld [vmem:[%s7 + $0x190] sm:$0xf]
    %v2246 = vld [vmem:[%s7 + $0x194] sm:$0xf]
    %v2247 = vld [vmem:[%s7 + $0x198] sm:$0xf]
    %v2248 = vld [vmem:[%s7 + $0x19c] sm:$0xf]
    %v2249 = vld [vmem:[%s7 + $0x1a0] sm:$0xf]
    %v2250 = vld [vmem:[%s7 + $0x1a4] sm:$0xf]
    %v2251 = vld [vmem:[%s7 + $0x1a8] sm:$0xf]
    %v2252 = vld [vmem:[%s7 + $0x1ac] sm:$0xf]
    %v2253 = vld [vmem:[%s7 + $0x1b0] sm:$0xf]
    %v2254 = vld [vmem:[%s7 + $0x1b4] sm:$0xf]
    %v2255 = vld [vmem:[%s7 + $0x1b8] sm:$0xf]
    %v2256 = vld [vmem:[%s7 + $0x1bc] sm:$0xf]
    %v2257 = vld [vmem:[%s7 + $0x1c0] sm:$0xf]
    %v2258 = vld [vmem:[%s7 + $0x1c4] sm:$0xf]
    %v2259 = vld [vmem:[%s7 + $0x1c8] sm:$0xf]
    %v2260 = vld [vmem:[%s7 + $0x1cc] sm:$0xf]
    %v2261 = vld [vmem:[%s7 + $0x1d0] sm:$0xf]
    %v2262 = vld [vmem:[%s7 + $0x1d4] sm:$0xf]
    %v2263 = vld [vmem:[%s7 + $0x1d8] sm:$0xf]
    %v2264 = vld [vmem:[%s7 + $0x1dc] sm:$0xf]
    %v2265 = vld [vmem:[%s7 + $0x1e0] sm:$0xf]
    %v2266 = vld [vmem:[%s7 + $0x1e4] sm:$0xf]
    %v2267 = vld [vmem:[%s7 + $0x1e8] sm:$0xf]
    %v2268 = vld [vmem:[%s7 + $0x1ec] sm:$0xf]
    %v2269 = vld [vmem:[%s7 + $0x1f0] sm:$0xf]
    %v2270 = vld [vmem:[%s7 + $0x1f4] sm:$0xf]
    %v2271 = vld [vmem:[%s7 + $0x1f8] sm:$0xf]
    %v2272 = vld [vmem:[%s7 + $0x1fc] sm:$0xf]
    %v2273 = vld [vmem:[#allocation10] sm:$0x1]
    %v2275 = vlaneseq
    %v2276 = vshrl.u32 %v2275, 7
    %v2277 = vsub.s32 0, %v2276
    %v2278 = vrot.slane %v2273, %v2277
    %v2340 = vunpack.c.l.b16 %v2085
    %v2341 = vunpack.c.h.b16 %v2085
    %v2342 = vunpack.c.l.b16 %v2086
    %v2343 = vunpack.c.h.b16 %v2086
    %v2344 = vunpack.c.l.b16 %v2087
    %v2345 = vunpack.c.h.b16 %v2087
    %v2346 = vunpack.c.l.b16 %v2088
    %v2347 = vunpack.c.h.b16 %v2088
    %v2348 = vunpack.c.l.b16 %v2089
    %v2349 = vunpack.c.h.b16 %v2089
    %v2350 = vunpack.c.l.b16 %v2090
    %v2351 = vunpack.c.h.b16 %v2090
    %v2352 = vunpack.c.l.b16 %v2091
    %v2353 = vunpack.c.h.b16 %v2091
    %v2354 = vunpack.c.l.b16 %v2092
    %v2355 = vunpack.c.h.b16 %v2092
    %v2356 = vunpack.c.l.b16 %v2093
    %v2357 = vunpack.c.h.b16 %v2093
    %v2358 = vunpack.c.l.b16 %v2094
    %v2359 = vunpack.c.h.b16 %v2094
    %v2360 = vunpack.c.l.b16 %v2095
    %v2361 = vunpack.c.h.b16 %v2095
    %v2362 = vunpack.c.l.b16 %v2096
    %v2363 = vunpack.c.h.b16 %v2096
    %v2364 = vunpack.c.l.b16 %v2097
    %v2365 = vunpack.c.h.b16 %v2097
    %v2366 = vunpack.c.l.b16 %v2098
    %v2367 = vunpack.c.h.b16 %v2098
    %v2368 = vunpack.c.l.b16 %v2099
    %v2369 = vunpack.c.h.b16 %v2099
    %v2370 = vunpack.c.l.b16 %v2100
    %v2371 = vunpack.c.h.b16 %v2100
    %v2372 = vunpack.c.l.b16 %v2101
    %v2373 = vunpack.c.h.b16 %v2101
    %v2374 = vunpack.c.l.b16 %v2102
    %v2375 = vunpack.c.h.b16 %v2102
    %v2376 = vunpack.c.l.b16 %v2103
    %v2377 = vunpack.c.h.b16 %v2103
    %v2378 = vunpack.c.l.b16 %v2104
    %v2379 = vunpack.c.h.b16 %v2104
    %v2380 = vunpack.c.l.b16 %v2105
    %v2381 = vunpack.c.h.b16 %v2105
    %v2382 = vunpack.c.l.b16 %v2106
    %v2383 = vunpack.c.h.b16 %v2106
    %v2384 = vunpack.c.l.b16 %v2107
    %v2385 = vunpack.c.h.b16 %v2107
    %v2386 = vunpack.c.l.b16 %v2108
    %v2387 = vunpack.c.h.b16 %v2108
    %v2388 = vunpack.c.l.b16 %v2109
    %v2389 = vunpack.c.h.b16 %v2109
    %v2390 = vunpack.c.l.b16 %v2110
    %v2391 = vunpack.c.h.b16 %v2110
    %v2392 = vunpack.c.l.b16 %v2111
    %v2393 = vunpack.c.h.b16 %v2111
    %v2394 = vunpack.c.l.b16 %v2112
    %v2395 = vunpack.c.h.b16 %v2112
    %v2396 = vunpack.c.l.b16 %v2113
    %v2397 = vunpack.c.h.b16 %v2113
    %v2398 = vunpack.c.l.b16 %v2114
    %v2399 = vunpack.c.h.b16 %v2114
    %v2400 = vunpack.c.l.b16 %v2115
    %v2401 = vunpack.c.h.b16 %v2115
    %v2402 = vunpack.c.l.b16 %v2116
    %v2403 = vunpack.c.h.b16 %v2116
    %v2404 = vunpack.c.l.b16 %v2117
    %v2405 = vunpack.c.h.b16 %v2117
    %v2406 = vunpack.c.l.b16 %v2118
    %v2407 = vunpack.c.h.b16 %v2118
    %v2408 = vunpack.c.l.b16 %v2119
    %v2409 = vunpack.c.h.b16 %v2119
    %v2410 = vunpack.c.l.b16 %v2120
    %v2411 = vunpack.c.h.b16 %v2120
    %v2412 = vunpack.c.l.b16 %v2121
    %v2413 = vunpack.c.h.b16 %v2121
    %v2414 = vunpack.c.l.b16 %v2122
    %v2415 = vunpack.c.h.b16 %v2122
    %v2416 = vunpack.c.l.b16 %v2123
    %v2417 = vunpack.c.h.b16 %v2123
    %v2418 = vunpack.c.l.b16 %v2124
    %v2419 = vunpack.c.h.b16 %v2124
    %v2420 = vunpack.c.l.b16 %v2125
    %v2421 = vunpack.c.h.b16 %v2125
    %v2422 = vunpack.c.l.b16 %v2126
    %v2423 = vunpack.c.h.b16 %v2126
    %v2424 = vunpack.c.l.b16 %v2127
    %v2425 = vunpack.c.h.b16 %v2127
    %v2426 = vunpack.c.l.b16 %v2128
    %v2427 = vunpack.c.h.b16 %v2128
    %v2428 = vunpack.c.l.b16 %v2129
    %v2429 = vunpack.c.h.b16 %v2129
    %v2430 = vunpack.c.l.b16 %v2130
    %v2431 = vunpack.c.h.b16 %v2130
    %v2432 = vunpack.c.l.b16 %v2131
    %v2433 = vunpack.c.h.b16 %v2131
    %v2434 = vunpack.c.l.b16 %v2132
    %v2435 = vunpack.c.h.b16 %v2132
    %v2436 = vunpack.c.l.b16 %v2133
    %v2437 = vunpack.c.h.b16 %v2133
    %v2438 = vunpack.c.l.b16 %v2134
    %v2439 = vunpack.c.h.b16 %v2134
    %v2440 = vunpack.c.l.b16 %v2135
    %v2441 = vunpack.c.h.b16 %v2135
    %v2442 = vunpack.c.l.b16 %v2136
    %v2443 = vunpack.c.h.b16 %v2136
    %v2444 = vunpack.c.l.b16 %v2137
    %v2445 = vunpack.c.h.b16 %v2137
    %v2446 = vunpack.c.l.b16 %v2138
    %v2447 = vunpack.c.h.b16 %v2138
    %v2448 = vunpack.c.l.b16 %v2139
    %v2449 = vunpack.c.h.b16 %v2139
    %v2450 = vunpack.c.l.b16 %v2140
    %v2451 = vunpack.c.h.b16 %v2140
    %v2452 = vunpack.c.l.b16 %v2141
    %v2453 = vunpack.c.h.b16 %v2141
    %v2454 = vunpack.c.l.b16 %v2142
    %v2455 = vunpack.c.h.b16 %v2142
    %v2456 = vunpack.c.l.b16 %v2143
    %v2457 = vunpack.c.h.b16 %v2143
    %v2458 = vunpack.c.l.b16 %v2144
    %v2459 = vunpack.c.h.b16 %v2144
    %v2460 = vpack.c.b16 %v2348, %v2340
    %v2461 = vpack.c.b16 %v2349, %v2341
    %v2462 = vpack.c.b16 %v2350, %v2342
    %v2463 = vpack.c.b16 %v2351, %v2343
    %v2464 = vpack.c.b16 %v2352, %v2344
    %v2465 = vpack.c.b16 %v2353, %v2345
    %v2466 = vpack.c.b16 %v2354, %v2346
    %v2467 = vpack.c.b16 %v2355, %v2347
    %v2468 = vpack.c.b16 %v2364, %v2356
    %v2469 = vpack.c.b16 %v2365, %v2357
    %v2470 = vpack.c.b16 %v2366, %v2358
    %v2471 = vpack.c.b16 %v2367, %v2359
    %v2472 = vpack.c.b16 %v2368, %v2360
    %v2473 = vpack.c.b16 %v2369, %v2361
    %v2474 = vpack.c.b16 %v2370, %v2362
    %v2475 = vpack.c.b16 %v2371, %v2363
    %v2476 = vpack.c.b16 %v2380, %v2372
    %v2477 = vpack.c.b16 %v2381, %v2373
    %v2478 = vpack.c.b16 %v2382, %v2374
    %v2479 = vpack.c.b16 %v2383, %v2375
    %v2480 = vpack.c.b16 %v2384, %v2376
    %v2481 = vpack.c.b16 %v2385, %v2377
    %v2482 = vpack.c.b16 %v2386, %v2378
    %v2483 = vpack.c.b16 %v2387, %v2379
    %v2484 = vpack.c.b16 %v2396, %v2388
    %v2485 = vpack.c.b16 %v2397, %v2389
    %v2486 = vpack.c.b16 %v2398, %v2390
    %v2487 = vpack.c.b16 %v2399, %v2391
    %v2488 = vpack.c.b16 %v2400, %v2392
    %v2489 = vpack.c.b16 %v2401, %v2393
    %v2490 = vpack.c.b16 %v2402, %v2394
    %v2491 = vpack.c.b16 %v2403, %v2395
    %v2492 = vpack.c.b16 %v2412, %v2404
    %v2493 = vpack.c.b16 %v2413, %v2405
    %v2494 = vpack.c.b16 %v2414, %v2406
    %v2495 = vpack.c.b16 %v2415, %v2407
    %v2496 = vpack.c.b16 %v2416, %v2408
    %v2497 = vpack.c.b16 %v2417, %v2409
    %v2498 = vpack.c.b16 %v2418, %v2410
    %v2499 = vpack.c.b16 %v2419, %v2411
    %v2500 = vpack.c.b16 %v2428, %v2420
    %v2501 = vpack.c.b16 %v2429, %v2421
    %v2502 = vpack.c.b16 %v2430, %v2422
    %v2503 = vpack.c.b16 %v2431, %v2423
    %v2504 = vpack.c.b16 %v2432, %v2424
    %v2505 = vpack.c.b16 %v2433, %v2425
    %v2506 = vpack.c.b16 %v2434, %v2426
    %v2507 = vpack.c.b16 %v2435, %v2427
    %v2508 = vpack.c.b16 %v2444, %v2436
    %v2509 = vpack.c.b16 %v2445, %v2437
    %v2510 = vpack.c.b16 %v2446, %v2438
    %v2511 = vpack.c.b16 %v2447, %v2439
    %v2512 = vpack.c.b16 %v2448, %v2440
    %v2513 = vpack.c.b16 %v2449, %v2441
    %v2514 = vpack.c.b16 %v2450, %v2442
    %v2515 = vpack.c.b16 %v2451, %v2443
    %v2516 = vpack.c.b16 %v2452, %v2452
    %v2517 = vpack.c.b16 %v2453, %v2453
    %v2518 = vpack.c.b16 %v2454, %v2454
    %v2519 = vpack.c.b16 %v2455, %v2455
    %v2520 = vpack.c.b16 %v2456, %v2456
    %v2521 = vpack.c.b16 %v2457, %v2457
    %v2522 = vpack.c.b16 %v2458, %v2458
    %v2523 = vpack.c.b16 %v2459, %v2459
    %v2716 = vunpack.c.l.b16 %v2145
    %v2717 = vunpack.c.l.b16 %v2146
    %v2718 = vunpack.c.l.b16 %v2147
    %v2719 = vunpack.c.l.b16 %v2148
    %v2720 = vunpack.c.l.b16 %v2149
    %v2721 = vunpack.c.l.b16 %v2150
    %v2722 = vunpack.c.l.b16 %v2151
    %v2723 = vunpack.c.l.b16 %v2152
    %v2724 = vunpack.c.l.b16 %v2153
    %v2725 = vunpack.c.l.b16 %v2154
    %v2726 = vunpack.c.l.b16 %v2155
    %v2727 = vunpack.c.l.b16 %v2156
    %v2728 = vunpack.c.l.b16 %v2157
    %v2729 = vunpack.c.l.b16 %v2158
    %v2730 = vunpack.c.l.b16 %v2159
    %v2731 = vunpack.c.l.b16 %v2160
    %v2732 = vunpack.c.l.b16 %v2161
    %v2733 = vunpack.c.l.b16 %v2162
    %v2734 = vunpack.c.l.b16 %v2163
    %v2735 = vunpack.c.l.b16 %v2164
    %v2736 = vunpack.c.l.b16 %v2165
    %v2737 = vunpack.c.l.b16 %v2166
    %v2738 = vunpack.c.l.b16 %v2167
    %v2739 = vunpack.c.l.b16 %v2168
    %v2740 = vunpack.c.l.b16 %v2169
    %v2741 = vunpack.c.l.b16 %v2170
    %v2742 = vunpack.c.l.b16 %v2171
    %v2743 = vunpack.c.l.b16 %v2172
    %v2744 = vunpack.c.l.b16 %v2173
    %v2745 = vunpack.c.l.b16 %v2174
    %v2746 = vunpack.c.l.b16 %v2175
    %v2747 = vunpack.c.l.b16 %v2176
    %v2748 = vunpack.c.l.b16 %v2177
    %v2749 = vunpack.c.l.b16 %v2178
    %v2750 = vunpack.c.l.b16 %v2179
    %v2751 = vunpack.c.l.b16 %v2180
    %v2752 = vunpack.c.l.b16 %v2181
    %v2753 = vunpack.c.l.b16 %v2182
    %v2754 = vunpack.c.l.b16 %v2183
    %v2755 = vunpack.c.l.b16 %v2184
    %v2756 = vunpack.c.l.b16 %v2185
    %v2757 = vunpack.c.l.b16 %v2186
    %v2758 = vunpack.c.l.b16 %v2187
    %v2759 = vunpack.c.l.b16 %v2188
    %v2760 = vunpack.c.l.b16 %v2189
    %v2761 = vunpack.c.l.b16 %v2190
    %v2762 = vunpack.c.l.b16 %v2191
    %v2763 = vunpack.c.l.b16 %v2192
    %v2764 = vunpack.c.l.b16 %v2193
    %v2765 = vunpack.c.l.b16 %v2194
    %v2766 = vunpack.c.l.b16 %v2195
    %v2767 = vunpack.c.l.b16 %v2196
    %v2768 = vunpack.c.l.b16 %v2197
    %v2769 = vunpack.c.l.b16 %v2198
    %v2770 = vunpack.c.l.b16 %v2199
    %v2771 = vunpack.c.l.b16 %v2200
    %v2772 = vunpack.c.l.b16 %v2201
    %v2773 = vunpack.c.l.b16 %v2202
    %v2774 = vunpack.c.l.b16 %v2203
    %v2775 = vunpack.c.l.b16 %v2204
    %v2776 = vunpack.c.l.b16 %v2205
    %v2777 = vunpack.c.l.b16 %v2206
    %v2778 = vunpack.c.l.b16 %v2207
    %v2779 = vunpack.c.l.b16 %v2208
    %v2780 = vunpack.c.l.b16 %v2209
    %v2781 = vunpack.c.l.b16 %v2210
    %v2782 = vunpack.c.l.b16 %v2211
    %v2783 = vunpack.c.l.b16 %v2212
    %v2784 = vunpack.c.l.b16 %v2213
    %v2785 = vunpack.c.l.b16 %v2214
    %v2786 = vunpack.c.l.b16 %v2215
    %v2787 = vunpack.c.l.b16 %v2216
    %v2788 = vunpack.c.l.b16 %v2217
    %v2789 = vunpack.c.l.b16 %v2218
    %v2790 = vunpack.c.l.b16 %v2219
    %v2791 = vunpack.c.l.b16 %v2220
    %v2792 = vunpack.c.l.b16 %v2221
    %v2793 = vunpack.c.l.b16 %v2222
    %v2794 = vunpack.c.l.b16 %v2223
    %v2795 = vunpack.c.l.b16 %v2224
    %v2796 = vunpack.c.l.b16 %v2225
    %v2797 = vunpack.c.l.b16 %v2226
    %v2798 = vunpack.c.l.b16 %v2227
    %v2799 = vunpack.c.l.b16 %v2228
    %v2800 = vunpack.c.l.b16 %v2229
    %v2801 = vunpack.c.l.b16 %v2230
    %v2802 = vunpack.c.l.b16 %v2231
    %v2803 = vunpack.c.l.b16 %v2232
    %v2804 = vunpack.c.l.b16 %v2233
    %v2805 = vunpack.c.l.b16 %v2234
    %v2806 = vunpack.c.l.b16 %v2235
    %v2807 = vunpack.c.l.b16 %v2236
    %v2808 = vunpack.c.l.b16 %v2237
    %v2809 = vunpack.c.l.b16 %v2238
    %v2810 = vunpack.c.l.b16 %v2239
    %v2811 = vunpack.c.l.b16 %v2240
    %v2812 = vunpack.c.l.b16 %v2241
    %v2813 = vunpack.c.l.b16 %v2242
    %v2814 = vunpack.c.l.b16 %v2243
    %v2815 = vunpack.c.l.b16 %v2244
    %v2816 = vunpack.c.l.b16 %v2245
    %v2817 = vunpack.c.l.b16 %v2246
    %v2818 = vunpack.c.l.b16 %v2247
    %v2819 = vunpack.c.l.b16 %v2248
    %v2820 = vunpack.c.l.b16 %v2249
    %v2821 = vunpack.c.l.b16 %v2250
    %v2822 = vunpack.c.l.b16 %v2251
    %v2823 = vunpack.c.l.b16 %v2252
    %v2824 = vunpack.c.l.b16 %v2253
    %v2825 = vunpack.c.l.b16 %v2254
    %v2826 = vunpack.c.l.b16 %v2255
    %v2827 = vunpack.c.l.b16 %v2256
    %v2828 = vunpack.c.l.b16 %v2257
    %v2829 = vunpack.c.l.b16 %v2258
    %v2830 = vunpack.c.l.b16 %v2259
    %v2831 = vunpack.c.l.b16 %v2260
    %v2832 = vunpack.c.l.b16 %v2261
    %v2833 = vunpack.c.l.b16 %v2262
    %v2834 = vunpack.c.l.b16 %v2263
    %v2835 = vunpack.c.l.b16 %v2264
    %v2836 = vunpack.c.l.b16 %v2265
    %v2837 = vunpack.c.l.b16 %v2266
    %v2838 = vunpack.c.l.b16 %v2267
    %v2839 = vunpack.c.l.b16 %v2268
    %v2840 = vunpack.c.l.b16 %v2269
    %v2841 = vunpack.c.l.b16 %v2270
    %v2842 = vunpack.c.l.b16 %v2271
    %v2843 = vunpack.c.l.b16 %v2272
    %v2844 = vpack.c.b16 %v2717, %v2716
    %v2845 = vpack.c.b16 %v2719, %v2718
    %v2846 = vpack.c.b16 %v2721, %v2720
    %v2847 = vpack.c.b16 %v2723, %v2722
    %v2848 = vpack.c.b16 %v2725, %v2724
    %v2849 = vpack.c.b16 %v2727, %v2726
    %v2850 = vpack.c.b16 %v2729, %v2728
    %v2851 = vpack.c.b16 %v2731, %v2730
    %v2852 = vpack.c.b16 %v2733, %v2732
    %v2853 = vpack.c.b16 %v2735, %v2734
    %v2854 = vpack.c.b16 %v2737, %v2736
    %v2855 = vpack.c.b16 %v2739, %v2738
    %v2856 = vpack.c.b16 %v2741, %v2740
    %v2857 = vpack.c.b16 %v2743, %v2742
    %v2858 = vpack.c.b16 %v2745, %v2744
    %v2859 = vpack.c.b16 %v2747, %v2746
    %v2860 = vpack.c.b16 %v2749, %v2748
    %v2861 = vpack.c.b16 %v2751, %v2750
    %v2862 = vpack.c.b16 %v2753, %v2752
    %v2863 = vpack.c.b16 %v2755, %v2754
    %v2864 = vpack.c.b16 %v2757, %v2756
    %v2865 = vpack.c.b16 %v2759, %v2758
    %v2866 = vpack.c.b16 %v2761, %v2760
    %v2867 = vpack.c.b16 %v2763, %v2762
    %v2868 = vpack.c.b16 %v2765, %v2764
    %v2869 = vpack.c.b16 %v2767, %v2766
    %v2870 = vpack.c.b16 %v2769, %v2768
    %v2871 = vpack.c.b16 %v2771, %v2770
    %v2872 = vpack.c.b16 %v2773, %v2772
    %v2873 = vpack.c.b16 %v2775, %v2774
    %v2874 = vpack.c.b16 %v2777, %v2776
    %v2875 = vpack.c.b16 %v2779, %v2778
    %v2876 = vpack.c.b16 %v2781, %v2780
    %v2877 = vpack.c.b16 %v2783, %v2782
    %v2878 = vpack.c.b16 %v2785, %v2784
    %v2879 = vpack.c.b16 %v2787, %v2786
    %v2880 = vpack.c.b16 %v2789, %v2788
    %v2881 = vpack.c.b16 %v2791, %v2790
    %v2882 = vpack.c.b16 %v2793, %v2792
    %v2883 = vpack.c.b16 %v2795, %v2794
    %v2884 = vpack.c.b16 %v2797, %v2796
    %v2885 = vpack.c.b16 %v2799, %v2798
    %v2886 = vpack.c.b16 %v2801, %v2800
    %v2887 = vpack.c.b16 %v2803, %v2802
    %v2888 = vpack.c.b16 %v2805, %v2804
    %v2889 = vpack.c.b16 %v2807, %v2806
    %v2890 = vpack.c.b16 %v2809, %v2808
    %v2891 = vpack.c.b16 %v2811, %v2810
    %v2892 = vpack.c.b16 %v2813, %v2812
    %v2893 = vpack.c.b16 %v2815, %v2814
    %v2894 = vpack.c.b16 %v2817, %v2816
    %v2895 = vpack.c.b16 %v2819, %v2818
    %v2896 = vpack.c.b16 %v2821, %v2820
    %v2897 = vpack.c.b16 %v2823, %v2822
    %v2898 = vpack.c.b16 %v2825, %v2824
    %v2899 = vpack.c.b16 %v2827, %v2826
    %v2900 = vpack.c.b16 %v2829, %v2828
    %v2901 = vpack.c.b16 %v2831, %v2830
    %v2902 = vpack.c.b16 %v2833, %v2832
    %v2903 = vpack.c.b16 %v2835, %v2834
    %v2904 = vpack.c.b16 %v2837, %v2836
    %v2905 = vpack.c.b16 %v2839, %v2838
    %v2906 = vpack.c.b16 %v2841, %v2840
    %v2907 = vpack.c.b16 %v2843, %v2842
    %2972 = vmatprep.subr.bf16.mxu0 0
    %2973 = vmatpush1.bf16.msra.mxu0 %v2851
    %2974 = vmatprep.subr.bf16.mxu0 0
    %2975 = vmatpush1.bf16.msra.mxu0 %v2850
    %2976 = vmatprep.subr.bf16.mxu0 0
    %2977 = vmatpush1.bf16.msra.mxu0 %v2849
    %2978 = vmatprep.subr.bf16.mxu0 0
    %2979 = vmatpush1.bf16.msra.mxu0 %v2848
    %2980 = vmatprep.subr.bf16.mxu0 0
    %2981 = vmatpush1.bf16.msra.mxu0 %v2847
    %2982 = vmatprep.subr.bf16.mxu0 0
    %2983 = vmatpush1.bf16.msra.mxu0 %v2846
    %2984 = vmatprep.subr.bf16.mxu0 0
    %2985 = vmatpush1.bf16.msra.mxu0 %v2845
    %2986 = vmatprep.subr.bf16.mxu0 0
    %2987 = vmatpush1.bf16.msra.mxu0 %v2844
    %2988 = vmatprep.subr.bf16.mxu0 0
    %2989 = vmatpush2.bf16.msra.mxu0 %v2859
    %2990 = vmatprep.subr.bf16.mxu0 0
    %2991 = vmatpush2.bf16.msra.mxu0 %v2858
    %2992 = vmatprep.subr.bf16.mxu0 0
    %2993 = vmatpush2.bf16.msra.mxu0 %v2857
    %2994 = vmatprep.subr.bf16.mxu0 0
    %2995 = vmatpush2.bf16.msra.mxu0 %v2856
    %2996 = vmatprep.subr.bf16.mxu0 0
    %2997 = vmatpush2.bf16.msra.mxu0 %v2855
    %2998 = vmatprep.subr.bf16.mxu0 0
    %2999 = vmatpush2.bf16.msra.mxu0 %v2854
    %3000 = vmatprep.subr.bf16.mxu0 0
    %3001 = vmatpush2.bf16.msra.mxu0 %v2853
    %3002 = vmatprep.subr.bf16.mxu0 0
    %3003 = vmatpush2.bf16.msra.mxu0 %v2852
    %3004 = vmatprep.mubr.bf16.mxu0 %v2461
    %3005 = vmatmul.mubr.bf16.gmra.mxu0 %v2460
    %v3006 = vpop.f32.mrf.mxu0
    %v3007 = vadd.f32 %v2278, %v3006
    %v3008 = vpop.f32.mrf.mxu0
    %v3009 = vpop.f32.mrf.mxu0
    %v3010 = vadd.f32 %v2278, %v3009
    %v3011 = vpop.f32.mrf.mxu0
    %3012 = vmatprep.mubr.bf16.mxu0 %v2469
    %3013 = vmatmul.mubr.bf16.gmra.mxu0 %v2468
    %v3014 = vpop.f32.mrf.mxu0
    %v3015 = vadd.f32 %v2278, %v3014
    %v3016 = vpop.f32.mrf.mxu0
    %v3017 = vpop.f32.mrf.mxu0
    %v3018 = vadd.f32 %v2278, %v3017
    %v3019 = vpop.f32.mrf.mxu0
    %3020 = vmatprep.mubr.bf16.mxu0 %v2477
    %3021 = vmatmul.mubr.bf16.gmra.mxu0 %v2476
    %v3022 = vpop.f32.mrf.mxu0
    %v3023 = vadd.f32 %v2278, %v3022
    %v3024 = vpop.f32.mrf.mxu0
    %v3025 = vpop.f32.mrf.mxu0
    %v3026 = vadd.f32 %v2278, %v3025
    %v3027 = vpop.f32.mrf.mxu0
    %3028 = vmatprep.mubr.bf16.mxu0 %v2485
    %3029 = vmatmul.mubr.bf16.gmra.mxu0 %v2484
    %v3030 = vpop.f32.mrf.mxu0
    %v3031 = vadd.f32 %v2278, %v3030
    %v3032 = vpop.f32.mrf.mxu0
    %v3033 = vpop.f32.mrf.mxu0
    %v3034 = vadd.f32 %v2278, %v3033
    %v3035 = vpop.f32.mrf.mxu0
    %3036 = vmatprep.mubr.bf16.mxu0 %v2493
    %3037 = vmatmul.mubr.bf16.gmra.mxu0 %v2492
    %v3038 = vpop.f32.mrf.mxu0
    %v3039 = vadd.f32 %v2278, %v3038
    %v3040 = vpop.f32.mrf.mxu0
    %v3041 = vpop.f32.mrf.mxu0
    %v3042 = vadd.f32 %v2278, %v3041
    %v3043 = vpop.f32.mrf.mxu0
    %3044 = vmatprep.mubr.bf16.mxu0 %v2501
    %3045 = vmatmul.mubr.bf16.gmra.mxu0 %v2500
    %v3046 = vpop.f32.mrf.mxu0
    %v3047 = vadd.f32 %v2278, %v3046
    %v3048 = vpop.f32.mrf.mxu0
    %v3049 = vpop.f32.mrf.mxu0
    %v3050 = vadd.f32 %v2278, %v3049
    %v3051 = vpop.f32.mrf.mxu0
    %3052 = vmatprep.mubr.bf16.mxu0 %v2509
    %3053 = vmatmul.mubr.bf16.gmra.mxu0 %v2508
    %v3054 = vpop.f32.mrf.mxu0
    %v3055 = vadd.f32 %v2278, %v3054
    %v3056 = vpop.f32.mrf.mxu0
    %v3057 = vpop.f32.mrf.mxu0
    %v3058 = vadd.f32 %v2278, %v3057
    %v3059 = vpop.f32.mrf.mxu0
    %3060 = vmatprep.mubr.bf16.mxu0 %v2517
    %3061 = vmatmul.mubr.bf16.gmra.mxu0 %v2516
    %v3062 = vpop.f32.mrf.mxu0
    %v3063 = vadd.f32 %v2278, %v3062
    %v3064 = vpop.f32.mrf.mxu0
    %v3065 = vpop.f32.mrf.mxu0
    %v3066 = vpop.f32.mrf.mxu0
    %3067 = vdwg.mxu0
    %3068 = vmatprep.subr.bf16.mxu0 0
    %3069 = vmatpush1.bf16.msra.mxu0 %v2867
    %3070 = vmatprep.subr.bf16.mxu0 0
    %3071 = vmatpush1.bf16.msra.mxu0 %v2866
    %3072 = vmatprep.subr.bf16.mxu0 0
    %3073 = vmatpush1.bf16.msra.mxu0 %v2865
    %3074 = vmatprep.subr.bf16.mxu0 0
    %3075 = vmatpush1.bf16.msra.mxu0 %v2864
    %3076 = vmatprep.subr.bf16.mxu0 0
    %3077 = vmatpush1.bf16.msra.mxu0 %v2863
    %3078 = vmatprep.subr.bf16.mxu0 0
    %3079 = vmatpush1.bf16.msra.mxu0 %v2862
    %3080 = vmatprep.subr.bf16.mxu0 0
    %3081 = vmatpush1.bf16.msra.mxu0 %v2861
    %3082 = vmatprep.subr.bf16.mxu0 0
    %3083 = vmatpush1.bf16.msra.mxu0 %v2860
    %3084 = vmatprep.subr.bf16.mxu0 0
    %3085 = vmatpush2.bf16.msra.mxu0 %v2875
    %3086 = vmatprep.subr.bf16.mxu0 0
    %3087 = vmatpush2.bf16.msra.mxu0 %v2874
    %3088 = vmatprep.subr.bf16.mxu0 0
    %3089 = vmatpush2.bf16.msra.mxu0 %v2873
    %3090 = vmatprep.subr.bf16.mxu0 0
    %3091 = vmatpush2.bf16.msra.mxu0 %v2872
    %3092 = vmatprep.subr.bf16.mxu0 0
    %3093 = vmatpush2.bf16.msra.mxu0 %v2871
    %3094 = vmatprep.subr.bf16.mxu0 0
    %3095 = vmatpush2.bf16.msra.mxu0 %v2870
    %3096 = vmatprep.subr.bf16.mxu0 0
    %3097 = vmatpush2.bf16.msra.mxu0 %v2869
    %3098 = vmatprep.subr.bf16.mxu0 0
    %3099 = vmatpush2.bf16.msra.mxu0 %v2868
    %3100 = vmatprep.mubr.bf16.mxu0 %v2463
    %3101 = vmatmul.mubr.bf16.gmra.mxu0 %v2462
    %v3102 = vpop.f32.mrf.mxu0
    %v3103 = vadd.f32 %v3007, %v3102
    %v3104 = vpop.f32.mrf.mxu0
    %v3105 = vpop.f32.mrf.mxu0
    %v3106 = vadd.f32 %v3010, %v3105
    %v3107 = vpop.f32.mrf.mxu0
    %3108 = vmatprep.mubr.bf16.mxu0 %v2471
    %3109 = vmatmul.mubr.bf16.gmra.mxu0 %v2470
    %v3110 = vpop.f32.mrf.mxu0
    %v3111 = vadd.f32 %v3015, %v3110
    %v3112 = vpop.f32.mrf.mxu0
    %v3113 = vpop.f32.mrf.mxu0
    %v3114 = vadd.f32 %v3018, %v3113
    %v3115 = vpop.f32.mrf.mxu0
    %3116 = vmatprep.mubr.bf16.mxu0 %v2479
    %3117 = vmatmul.mubr.bf16.gmra.mxu0 %v2478
    %v3118 = vpop.f32.mrf.mxu0
    %v3119 = vadd.f32 %v3023, %v3118
    %v3120 = vpop.f32.mrf.mxu0
    %v3121 = vpop.f32.mrf.mxu0
    %v3122 = vadd.f32 %v3026, %v3121
    %v3123 = vpop.f32.mrf.mxu0
    %3124 = vmatprep.mubr.bf16.mxu0 %v2487
    %3125 = vmatmul.mubr.bf16.gmra.mxu0 %v2486
    %v3126 = vpop.f32.mrf.mxu0
    %v3127 = vadd.f32 %v3031, %v3126
    %v3128 = vpop.f32.mrf.mxu0
    %v3129 = vpop.f32.mrf.mxu0
    %v3130 = vadd.f32 %v3034, %v3129
    %v3131 = vpop.f32.mrf.mxu0
    %3132 = vmatprep.mubr.bf16.mxu0 %v2495
    %3133 = vmatmul.mubr.bf16.gmra.mxu0 %v2494
    %v3134 = vpop.f32.mrf.mxu0
    %v3135 = vadd.f32 %v3039, %v3134
    %v3136 = vpop.f32.mrf.mxu0
    %v3137 = vpop.f32.mrf.mxu0
    %v3138 = vadd.f32 %v3042, %v3137
    %v3139 = vpop.f32.mrf.mxu0
    %3140 = vmatprep.mubr.bf16.mxu0 %v2503
    %3141 = vmatmul.mubr.bf16.gmra.mxu0 %v2502
    %v3142 = vpop.f32.mrf.mxu0
    %v3143 = vadd.f32 %v3047, %v3142
    %v3144 = vpop.f32.mrf.mxu0
    %v3145 = vpop.f32.mrf.mxu0
    %v3146 = vadd.f32 %v3050, %v3145
    %v3147 = vpop.f32.mrf.mxu0
    %3148 = vmatprep.mubr.bf16.mxu0 %v2511
    %3149 = vmatmul.mubr.bf16.gmra.mxu0 %v2510
    %v3150 = vpop.f32.mrf.mxu0
    %v3151 = vadd.f32 %v3055, %v3150
    %v3152 = vpop.f32.mrf.mxu0
    %v3153 = vpop.f32.mrf.mxu0
    %v3154 = vadd.f32 %v3058, %v3153
    %v3155 = vpop.f32.mrf.mxu0
    %3156 = vmatprep.mubr.bf16.mxu0 %v2519
    %3157 = vmatmul.mubr.bf16.gmra.mxu0 %v2518
    %v3158 = vpop.f32.mrf.mxu0
    %v3159 = vadd.f32 %v3063, %v3158
    %v3160 = vpop.f32.mrf.mxu0
    %v3161 = vpop.f32.mrf.mxu0
    %v3162 = vpop.f32.mrf.mxu0
    %3163 = vdwg.mxu0
    %3164 = vmatprep.subr.bf16.mxu0 0
    %3165 = vmatpush1.bf16.msra.mxu0 %v2883
    %3166 = vmatprep.subr.bf16.mxu0 0
    %3167 = vmatpush1.bf16.msra.mxu0 %v2882
    %3168 = vmatprep.subr.bf16.mxu0 0
    %3169 = vmatpush1.bf16.msra.mxu0 %v2881
    %3170 = vmatprep.subr.bf16.mxu0 0
    %3171 = vmatpush1.bf16.msra.mxu0 %v2880
    %3172 = vmatprep.subr.bf16.mxu0 0
    %3173 = vmatpush1.bf16.msra.mxu0 %v2879
    %3174 = vmatprep.subr.bf16.mxu0 0
    %3175 = vmatpush1.bf16.msra.mxu0 %v2878
    %3176 = vmatprep.subr.bf16.mxu0 0
    %3177 = vmatpush1.bf16.msra.mxu0 %v2877
    %3178 = vmatprep.subr.bf16.mxu0 0
    %3179 = vmatpush1.bf16.msra.mxu0 %v2876
    %3180 = vmatprep.subr.bf16.mxu0 0
    %3181 = vmatpush2.bf16.msra.mxu0 %v2891
    %3182 = vmatprep.subr.bf16.mxu0 0
    %3183 = vmatpush2.bf16.msra.mxu0 %v2890
    %3184 = vmatprep.subr.bf16.mxu0 0
    %3185 = vmatpush2.bf16.msra.mxu0 %v2889
    %3186 = vmatprep.subr.bf16.mxu0 0
    %3187 = vmatpush2.bf16.msra.mxu0 %v2888
    %3188 = vmatprep.subr.bf16.mxu0 0
    %3189 = vmatpush2.bf16.msra.mxu0 %v2887
    %3190 = vmatprep.subr.bf16.mxu0 0
    %3191 = vmatpush2.bf16.msra.mxu0 %v2886
    %3192 = vmatprep.subr.bf16.mxu0 0
    %3193 = vmatpush2.bf16.msra.mxu0 %v2885
    %3194 = vmatprep.subr.bf16.mxu0 0
    %3195 = vmatpush2.bf16.msra.mxu0 %v2884
    %3196 = vmatprep.mubr.bf16.mxu0 %v2465
    %3197 = vmatmul.mubr.bf16.gmra.mxu0 %v2464
    %v3198 = vpop.f32.mrf.mxu0
    %v3199 = vadd.f32 %v3103, %v3198
    %v3200 = vpop.f32.mrf.mxu0
    %v3201 = vpop.f32.mrf.mxu0
    %v3202 = vadd.f32 %v3106, %v3201
    %v3203 = vpop.f32.mrf.mxu0
    %3204 = vmatprep.mubr.bf16.mxu0 %v2473
    %3205 = vmatmul.mubr.bf16.gmra.mxu0 %v2472
    %v3206 = vpop.f32.mrf.mxu0
    %v3207 = vadd.f32 %v3111, %v3206
    %v3208 = vpop.f32.mrf.mxu0
    %v3209 = vpop.f32.mrf.mxu0
    %v3210 = vadd.f32 %v3114, %v3209
    %v3211 = vpop.f32.mrf.mxu0
    %3212 = vmatprep.mubr.bf16.mxu0 %v2481
    %3213 = vmatmul.mubr.bf16.gmra.mxu0 %v2480
    %v3214 = vpop.f32.mrf.mxu0
    %v3215 = vadd.f32 %v3119, %v3214
    %v3216 = vpop.f32.mrf.mxu0
    %v3217 = vpop.f32.mrf.mxu0
    %v3218 = vadd.f32 %v3122, %v3217
    %v3219 = vpop.f32.mrf.mxu0
    %3220 = vmatprep.mubr.bf16.mxu0 %v2489
    %3221 = vmatmul.mubr.bf16.gmra.mxu0 %v2488
    %v3222 = vpop.f32.mrf.mxu0
    %v3223 = vadd.f32 %v3127, %v3222
    %v3224 = vpop.f32.mrf.mxu0
    %v3225 = vpop.f32.mrf.mxu0
    %v3226 = vadd.f32 %v3130, %v3225
    %v3227 = vpop.f32.mrf.mxu0
    %3228 = vmatprep.mubr.bf16.mxu0 %v2497
    %3229 = vmatmul.mubr.bf16.gmra.mxu0 %v2496
    %v3230 = vpop.f32.mrf.mxu0
    %v3231 = vadd.f32 %v3135, %v3230
    %v3232 = vpop.f32.mrf.mxu0
    %v3233 = vpop.f32.mrf.mxu0
    %v3234 = vadd.f32 %v3138, %v3233
    %v3235 = vpop.f32.mrf.mxu0
    %3236 = vmatprep.mubr.bf16.mxu0 %v2505
    %3237 = vmatmul.mubr.bf16.gmra.mxu0 %v2504
    %v3238 = vpop.f32.mrf.mxu0
    %v3239 = vadd.f32 %v3143, %v3238
    %v3240 = vpop.f32.mrf.mxu0
    %v3241 = vpop.f32.mrf.mxu0
    %v3242 = vadd.f32 %v3146, %v3241
    %v3243 = vpop.f32.mrf.mxu0
    %3244 = vmatprep.mubr.bf16.mxu0 %v2513
    %3245 = vmatmul.mubr.bf16.gmra.mxu0 %v2512
    %v3246 = vpop.f32.mrf.mxu0
    %v3247 = vadd.f32 %v3151, %v3246
    %v3248 = vpop.f32.mrf.mxu0
    %v3249 = vpop.f32.mrf.mxu0
    %v3250 = vadd.f32 %v3154, %v3249
    %v3251 = vpop.f32.mrf.mxu0
    %3252 = vmatprep.mubr.bf16.mxu0 %v2521
    %3253 = vmatmul.mubr.bf16.gmra.mxu0 %v2520
    %v3254 = vpop.f32.mrf.mxu0
    %v3255 = vadd.f32 %v3159, %v3254
    %v3256 = vpop.f32.mrf.mxu0
    %v3257 = vpop.f32.mrf.mxu0
    %v3258 = vpop.f32.mrf.mxu0
    %3259 = vdwg.mxu0
    %3260 = vmatprep.subr.bf16.mxu0 0
    %3261 = vmatpush1.bf16.msra.mxu0 %v2899
    %3262 = vmatprep.subr.bf16.mxu0 0
    %3263 = vmatpush1.bf16.msra.mxu0 %v2898
    %3264 = vmatprep.subr.bf16.mxu0 0
    %3265 = vmatpush1.bf16.msra.mxu0 %v2897
    %3266 = vmatprep.subr.bf16.mxu0 0
    %3267 = vmatpush1.bf16.msra.mxu0 %v2896
    %3268 = vmatprep.subr.bf16.mxu0 0
    %3269 = vmatpush1.bf16.msra.mxu0 %v2895
    %3270 = vmatprep.subr.bf16.mxu0 0
    %3271 = vmatpush1.bf16.msra.mxu0 %v2894
    %3272 = vmatprep.subr.bf16.mxu0 0
    %3273 = vmatpush1.bf16.msra.mxu0 %v2893
    %3274 = vmatprep.subr.bf16.mxu0 0
    %3275 = vmatpush1.bf16.msra.mxu0 %v2892
    %3276 = vmatprep.subr.bf16.mxu0 0
    %3277 = vmatpush2.bf16.msra.mxu0 %v2907
    %3278 = vmatprep.subr.bf16.mxu0 0
    %3279 = vmatpush2.bf16.msra.mxu0 %v2906
    %3280 = vmatprep.subr.bf16.mxu0 0
    %3281 = vmatpush2.bf16.msra.mxu0 %v2905
    %3282 = vmatprep.subr.bf16.mxu0 0
    %3283 = vmatpush2.bf16.msra.mxu0 %v2904
    %3284 = vmatprep.subr.bf16.mxu0 0
    %3285 = vmatpush2.bf16.msra.mxu0 %v2903
    %3286 = vmatprep.subr.bf16.mxu0 0
    %3287 = vmatpush2.bf16.msra.mxu0 %v2902
    %3288 = vmatprep.subr.bf16.mxu0 0
    %3289 = vmatpush2.bf16.msra.mxu0 %v2901
    %3290 = vmatprep.subr.bf16.mxu0 0
    %3291 = vmatpush2.bf16.msra.mxu0 %v2900
    %3292 = vmatprep.mubr.bf16.mxu0 %v2467
    %3293 = vmatmul.mubr.bf16.gmra.mxu0 %v2466
    %v3294 = vpop.f32.mrf.mxu0
    %v3295 = vadd.f32 %v3199, %v3294
    %v3296 = vpop.f32.mrf.mxu0
    %v3297 = vpop.f32.mrf.mxu0
    %v3298 = vadd.f32 %v3202, %v3297
    %v3299 = vpop.f32.mrf.mxu0
    %3300 = vmatprep.mubr.bf16.mxu0 %v2475
    %3301 = vmatmul.mubr.bf16.gmra.mxu0 %v2474
    %v3302 = vpop.f32.mrf.mxu0
    %v3303 = vadd.f32 %v3207, %v3302
    %v3304 = vpop.f32.mrf.mxu0
    %v3305 = vpop.f32.mrf.mxu0
    %v3306 = vadd.f32 %v3210, %v3305
    %v3307 = vpop.f32.mrf.mxu0
    %3308 = vmatprep.mubr.bf16.mxu0 %v2483
    %3309 = vmatmul.mubr.bf16.gmra.mxu0 %v2482
    %v3310 = vpop.f32.mrf.mxu0
    %v3311 = vadd.f32 %v3215, %v3310
    %v3312 = vpop.f32.mrf.mxu0
    %v3313 = vpop.f32.mrf.mxu0
    %v3314 = vadd.f32 %v3218, %v3313
    %v3315 = vpop.f32.mrf.mxu0
    %3316 = vmatprep.mubr.bf16.mxu0 %v2491
    %3317 = vmatmul.mubr.bf16.gmra.mxu0 %v2490
    %v3318 = vpop.f32.mrf.mxu0
    %v3319 = vadd.f32 %v3223, %v3318
    %v3320 = vpop.f32.mrf.mxu0
    %v3321 = vpop.f32.mrf.mxu0
    %v3322 = vadd.f32 %v3226, %v3321
    %v3323 = vpop.f32.mrf.mxu0
    %3324 = vmatprep.mubr.bf16.mxu0 %v2499
    %3325 = vmatmul.mubr.bf16.gmra.mxu0 %v2498
    %v3326 = vpop.f32.mrf.mxu0
    %v3327 = vadd.f32 %v3231, %v3326
    %v3328 = vpop.f32.mrf.mxu0
    %v3329 = vpop.f32.mrf.mxu0
    %v3330 = vadd.f32 %v3234, %v3329
    %v3331 = vpop.f32.mrf.mxu0
    %3332 = vmatprep.mubr.bf16.mxu0 %v2507
    %3333 = vmatmul.mubr.bf16.gmra.mxu0 %v2506
    %v3334 = vpop.f32.mrf.mxu0
    %v3335 = vadd.f32 %v3239, %v3334
    %v3336 = vpop.f32.mrf.mxu0
    %v3337 = vpop.f32.mrf.mxu0
    %v3338 = vadd.f32 %v3242, %v3337
    %v3339 = vpop.f32.mrf.mxu0
    %3340 = vmatprep.mubr.bf16.mxu0 %v2515
    %3341 = vmatmul.mubr.bf16.gmra.mxu0 %v2514
    %v3342 = vpop.f32.mrf.mxu0
    %v3343 = vadd.f32 %v3247, %v3342
    %v3344 = vpop.f32.mrf.mxu0
    %v3345 = vpop.f32.mrf.mxu0
    %v3346 = vadd.f32 %v3250, %v3345
    %v3347 = vpop.f32.mrf.mxu0
    %3348 = vmatprep.mubr.bf16.mxu0 %v2523
    %3349 = vmatmul.mubr.bf16.gmra.mxu0 %v2522
    %v3350 = vpop.f32.mrf.mxu0
    %v3351 = vadd.f32 %v3255, %v3350
    %v3352 = vpop.f32.mrf.mxu0
    %v3353 = vpop.f32.mrf.mxu0
    %v3354 = vpop.f32.mrf.mxu0
    %3355 = vdwg.mxu0
    %3371 = vrot.lane.b32.xlu0 %v2024, 64
    %v3372 = vpop.permute.xlu0 %3371
    %3373 = vrot.lane.b32.xlu0 %v2027, 64
    %v3374 = vpop.permute.xlu0 %3373
    %3375 = vrot.lane.b32.xlu0 %v2032, 64
    %v3376 = vpop.permute.xlu0 %3375
    %3377 = vrot.lane.b32.xlu0 %v2035, 64
    %v3378 = vpop.permute.xlu0 %3377
    %3379 = vrot.lane.b32.xlu0 %v2040, 64
    %v3380 = vpop.permute.xlu0 %3379
    %3381 = vrot.lane.b32.xlu0 %v2043, 64
    %v3382 = vpop.permute.xlu0 %3381
    %3383 = vrot.lane.b32.xlu0 %v2048, 64
    %v3384 = vpop.permute.xlu0 %3383
    %3385 = vrot.lane.b32.xlu0 %v2051, 64
    %v3386 = vpop.permute.xlu0 %3385
    %3387 = vrot.lane.b32.xlu0 %v2056, 64
    %v3388 = vpop.permute.xlu0 %3387
    %3389 = vrot.lane.b32.xlu0 %v2059, 64
    %v3390 = vpop.permute.xlu0 %3389
    %3391 = vrot.lane.b32.xlu0 %v2064, 64
    %v3392 = vpop.permute.xlu0 %3391
    %3393 = vrot.lane.b32.xlu0 %v2067, 64
    %v3394 = vpop.permute.xlu0 %3393
    %3395 = vrot.lane.b32.xlu0 %v2072, 64
    %v3396 = vpop.permute.xlu0 %3395
    %3397 = vrot.lane.b32.xlu0 %v2075, 64
    %v3398 = vpop.permute.xlu0 %3397
    %3399 = vrot.lane.b32.xlu0 %v2080, 64
    %v3400 = vpop.permute.xlu0 %3399
    %vm3416 = vcmask 523264
    %v3417 = vsel %vm3416, %v1385, %v3372
    %v3418 = vsel %vm3416, %v1388, %v3374
    %v3419 = vsel %vm3416, %v1393, %v3376
    %v3420 = vsel %vm3416, %v1396, %v3378
    %v3421 = vsel %vm3416, %v1401, %v3380
    %v3422 = vsel %vm3416, %v1404, %v3382
    %v3423 = vsel %vm3416, %v1409, %v3384
    %v3424 = vsel %vm3416, %v1412, %v3386
    %v3425 = vsel %vm3416, %v1417, %v3388
    %v3426 = vsel %vm3416, %v1420, %v3390
    %v3427 = vsel %vm3416, %v1425, %v3392
    %v3428 = vsel %vm3416, %v1428, %v3394
    %v3429 = vsel %vm3416, %v1433, %v3396
    %v3430 = vsel %vm3416, %v1436, %v3398
    %v3431 = vsel %vm3416, %v1441, %v3400
    %3432 = vst [vmem:[#allocation2] sm:$0xff] %v3417
    %3433 = vst.msk [vmem:[#allocation2 + $0x8] sm:$0xff] %vm3416, %v3295
    %3434 = vst [vmem:[#allocation2 + $0x10] sm:$0xff] %v3418
    %3435 = vst.msk [vmem:[#allocation2 + $0x18] sm:$0xff] %vm3416, %v3298
    %3436 = vst [vmem:[#allocation2 + $0x20] sm:$0xff] %v3419
    %3437 = vst.msk [vmem:[#allocation2 + $0x28] sm:$0xff] %vm3416, %v3303
    %3438 = vst [vmem:[#allocation2 + $0x30] sm:$0xff] %v3420
    %3439 = vst.msk [vmem:[#allocation2 + $0x38] sm:$0xff] %vm3416, %v3306
    %3440 = vst [vmem:[#allocation2 + $0x40] sm:$0xff] %v3421
    %3441 = vst.msk [vmem:[#allocation2 + $0x48] sm:$0xff] %vm3416, %v3311
    %3442 = vst [vmem:[#allocation2 + $0x50] sm:$0xff] %v3422
    %3443 = vst.msk [vmem:[#allocation2 + $0x58] sm:$0xff] %vm3416, %v3314
    %3444 = vst [vmem:[#allocation2 + $0x60] sm:$0xff] %v3423
    %3445 = vst.msk [vmem:[#allocation2 + $0x68] sm:$0xff] %vm3416, %v3319
    %3446 = vst [vmem:[#allocation2 + $0x70] sm:$0xff] %v3424
    %3447 = vst.msk [vmem:[#allocation2 + $0x78] sm:$0xff] %vm3416, %v3322
    %3448 = vst [vmem:[#allocation2 + $0x80] sm:$0xff] %v3425
    %3449 = vst.msk [vmem:[#allocation2 + $0x88] sm:$0xff] %vm3416, %v3327
    %3450 = vst [vmem:[#allocation2 + $0x90] sm:$0xff] %v3426
    %3451 = vst.msk [vmem:[#allocation2 + $0x98] sm:$0xff] %vm3416, %v3330
    %3452 = vst [vmem:[#allocation2 + $0xa0] sm:$0xff] %v3427
    %3453 = vst.msk [vmem:[#allocation2 + $0xa8] sm:$0xff] %vm3416, %v3335
    %3454 = vst [vmem:[#allocation2 + $0xb0] sm:$0xff] %v3428
    %3455 = vst.msk [vmem:[#allocation2 + $0xb8] sm:$0xff] %vm3416, %v3338
    %3456 = vst [vmem:[#allocation2 + $0xc0] sm:$0xff] %v3429
    %3457 = vst.msk [vmem:[#allocation2 + $0xc8] sm:$0xff] %vm3416, %v3343
    %3458 = vst [vmem:[#allocation2 + $0xd0] sm:$0xff] %v3430
    %3459 = vst.msk [vmem:[#allocation2 + $0xd8] sm:$0xff] %vm3416, %v3346
    %3460 = vst [vmem:[#allocation2 + $0xe0] sm:$0xff] %v3431
    %3461 = vst.msk [vmem:[#allocation2 + $0xe8] sm:$0xff] %vm3416, %v3351
    %v3462 = vld [vmem:[%s9] sm:$0xff]
    %v3463 = vld [vmem:[%s9 + $0x8] sm:$0xff]
    %v3464 = vld [vmem:[%s9 + $0x10] sm:$0xff]
    %v3465 = vld [vmem:[%s9 + $0x18] sm:$0xff]
    %v3466 = vld [vmem:[%s9 + $0x20] sm:$0xff]
    %v3467 = vld [vmem:[%s9 + $0x28] sm:$0xff]
    %v3468 = vld [vmem:[%s9 + $0x30] sm:$0xff]
    %v3469 = vld [vmem:[%s9 + $0x38] sm:$0xff]
    %v3470 = vld [vmem:[%s9 + $0x40] sm:$0xff]
    %v3471 = vld [vmem:[%s9 + $0x48] sm:$0xff]
    %v3472 = vld [vmem:[%s9 + $0x50] sm:$0xff]
    %v3473 = vld [vmem:[%s9 + $0x58] sm:$0xff]
    %v3474 = vld [vmem:[%s9 + $0x60] sm:$0xff]
    %v3475 = vld [vmem:[%s9 + $0x68] sm:$0xff]
    %v3476 = vld [vmem:[%s9 + $0x70] sm:$0xff]
    %v3477 = vld [vmem:[%s9 + $0x78] sm:$0xff]
    %v3478 = vld [vmem:[%s9 + $0x80] sm:$0xff]
    %v3479 = vld [vmem:[%s9 + $0x88] sm:$0xff]
    %v3480 = vld [vmem:[%s9 + $0x90] sm:$0xff]
    %v3481 = vld [vmem:[%s9 + $0x98] sm:$0xff]
    %v3482 = vld [vmem:[%s9 + $0xa0] sm:$0xff]
    %v3483 = vld [vmem:[%s9 + $0xa8] sm:$0xff]
    %v3484 = vld [vmem:[%s9 + $0xb0] sm:$0xff]
    %v3485 = vld [vmem:[%s9 + $0xb8] sm:$0xff]
    %v3486 = vld [vmem:[#allocation11] sm:$0x1]
    %v3488 = vlaneseq
    %v3489 = vshrl.u32 %v3488, 7
    %v3490 = vsub.s32 0, %v3489
    %v3491 = vrot.slane %v3486, %v3490
    %v3494 = vsel %vm3416, %v3295, 0
    %v3497 = vsel %vm3416, %v3298, 0
    %v3500 = vsel %vm3416, %v3303, 0
    %v3503 = vsel %vm3416, %v3306, 0
    %v3506 = vsel %vm3416, %v3311, 0
    %v3509 = vsel %vm3416, %v3314, 0
    %v3512 = vsel %vm3416, %v3319, 0
    %v3515 = vsel %vm3416, %v3322, 0
    %v3518 = vsel %vm3416, %v3327, 0
    %v3521 = vsel %vm3416, %v3330, 0
    %v3524 = vsel %vm3416, %v3335, 0
    %v3527 = vsel %vm3416, %v3338, 0
    %v3530 = vsel %vm3416, %v3343, 0
    %v3533 = vsel %vm3416, %v3346, 0
    %v3536 = vsel %vm3416, %v3351, 0
    %3538 = vmatprep.subr.mxu0 0.0
    %3539 = vmatpush1.msra.mxu0 %v3477
    %3540 = vmatprep.subr.mxu0 0.0
    %3541 = vmatpush1.msra.mxu0 %v3476
    %3542 = vmatprep.subr.mxu0 0.0
    %3543 = vmatpush1.msra.mxu0 %v3475
    %3544 = vmatprep.subr.mxu0 0.0
    %3545 = vmatpush1.msra.mxu0 %v3474
    %3546 = vmatprep.subr.mxu0 0.0
    %3547 = vmatpush1.msra.mxu0 %v3473
    %3548 = vmatprep.subr.mxu0 0.0
    %3549 = vmatpush1.msra.mxu0 %v3472
    %3550 = vmatprep.subr.mxu0 0.0
    %3551 = vmatpush1.msra.mxu0 %v3471
    %3552 = vmatprep.subr.mxu0 0.0
    %3553 = vmatpush1.msra.mxu0 %v3470
    %3554 = vmatprep.subr.mxu0 0.0
    %3555 = vmatpush1.msra.mxu0 %v3469
    %3556 = vmatprep.subr.mxu0 0.0
    %3557 = vmatpush1.msra.mxu0 %v3468
    %3558 = vmatprep.subr.mxu0 0.0
    %3559 = vmatpush1.msra.mxu0 %v3467
    %3560 = vmatprep.subr.mxu0 0.0
    %3561 = vmatpush1.msra.mxu0 %v3466
    %3562 = vmatprep.subr.mxu0 0.0
    %3563 = vmatpush1.msra.mxu0 %v3465
    %3564 = vmatprep.subr.mxu0 0.0
    %3565 = vmatpush1.msra.mxu0 %v3464
    %3566 = vmatprep.subr.mxu0 0.0
    %3567 = vmatpush1.msra.mxu0 %v3463
    %3568 = vmatprep.subr.mxu0 0.0
    %3569 = vmatpush1.msra.mxu0 %v3462
    %3570 = vmatprep.subr.mxu0 0.0
    %3571 = vmatpush2.msra.mxu0 0.0
    %3572 = vmatprep.subr.mxu0 0.0
    %3573 = vmatpush2.msra.mxu0 0.0
    %3574 = vmatprep.subr.mxu0 0.0
    %3575 = vmatpush2.msra.mxu0 0.0
    %3576 = vmatprep.subr.mxu0 0.0
    %3577 = vmatpush2.msra.mxu0 0.0
    %3578 = vmatprep.subr.mxu0 0.0
    %3579 = vmatpush2.msra.mxu0 0.0
    %3580 = vmatprep.subr.mxu0 0.0
    %3581 = vmatpush2.msra.mxu0 0.0
    %3582 = vmatprep.subr.mxu0 0.0
    %3583 = vmatpush2.msra.mxu0 0.0
    %3584 = vmatprep.subr.mxu0 0.0
    %3585 = vmatpush2.msra.mxu0 0.0
    %3586 = vmatprep.subr.mxu0 0.0
    %3587 = vmatpush2.msra.mxu0 %v3485
    %3588 = vmatprep.subr.mxu0 0.0
    %3589 = vmatpush2.msra.mxu0 %v3484
    %3590 = vmatprep.subr.mxu0 0.0
    %3591 = vmatpush2.msra.mxu0 %v3483
    %3592 = vmatprep.subr.mxu0 0.0
    %3593 = vmatpush2.msra.mxu0 %v3482
    %3594 = vmatprep.subr.mxu0 0.0
    %3595 = vmatpush2.msra.mxu0 %v3481
    %3596 = vmatprep.subr.mxu0 0.0
    %3597 = vmatpush2.msra.mxu0 %v3480
    %3598 = vmatprep.subr.mxu0 0.0
    %3599 = vmatpush2.msra.mxu0 %v3479
    %3600 = vmatprep.subr.mxu0 0.0
    %3601 = vmatpush2.msra.mxu0 %v3478
    %3602 = vmatprep.mubr.f32.mxu0 %v3494
    %3603 = vmatmul.mubr.f32.gmra.mxu0 %v3417
    %v3604 = vpop.f32.mrf.mxu0
    %v3605 = vadd.f32 %v3491, %v3604
    %v3606 = vpop.f32.mrf.mxu0
    %3607 = vmatprep.mubr.f32.mxu0 %v3497
    %3608 = vmatmul.mubr.f32.gmra.mxu0 %v3418
    %v3609 = vpop.f32.mrf.mxu0
    %v3610 = vadd.f32 %v3491, %v3609
    %v3611 = vpop.f32.mrf.mxu0
    %3612 = vmatprep.mubr.f32.mxu0 %v3500
    %3613 = vmatmul.mubr.f32.gmra.mxu0 %v3419
    %v3614 = vpop.f32.mrf.mxu0
    %v3615 = vadd.f32 %v3491, %v3614
    %v3616 = vpop.f32.mrf.mxu0
    %3617 = vmatprep.mubr.f32.mxu0 %v3503
    %3618 = vmatmul.mubr.f32.gmra.mxu0 %v3420
    %v3619 = vpop.f32.mrf.mxu0
    %v3620 = vadd.f32 %v3491, %v3619
    %v3621 = vpop.f32.mrf.mxu0
    %3622 = vmatprep.mubr.f32.mxu0 %v3506
    %3623 = vmatmul.mubr.f32.gmra.mxu0 %v3421
    %v3624 = vpop.f32.mrf.mxu0
    %v3625 = vadd.f32 %v3491, %v3624
    %v3626 = vpop.f32.mrf.mxu0
    %3627 = vmatprep.mubr.f32.mxu0 %v3509
    %3628 = vmatmul.mubr.f32.gmra.mxu0 %v3422
    %v3629 = vpop.f32.mrf.mxu0
    %v3630 = vadd.f32 %v3491, %v3629
    %v3631 = vpop.f32.mrf.mxu0
    %3632 = vmatprep.mubr.f32.mxu0 %v3512
    %3633 = vmatmul.mubr.f32.gmra.mxu0 %v3423
    %v3634 = vpop.f32.mrf.mxu0
    %v3635 = vadd.f32 %v3491, %v3634
    %v3636 = vpop.f32.mrf.mxu0
    %3637 = vmatprep.mubr.f32.mxu0 %v3515
    %3638 = vmatmul.mubr.f32.gmra.mxu0 %v3424
    %v3639 = vpop.f32.mrf.mxu0
    %v3640 = vadd.f32 %v3491, %v3639
    %v3641 = vpop.f32.mrf.mxu0
    %3642 = vmatprep.mubr.f32.mxu0 %v3518
    %3643 = vmatmul.mubr.f32.gmra.mxu0 %v3425
    %v3644 = vpop.f32.mrf.mxu0
    %v3645 = vadd.f32 %v3491, %v3644
    %v3646 = vpop.f32.mrf.mxu0
    %3647 = vmatprep.mubr.f32.mxu0 %v3521
    %3648 = vmatmul.mubr.f32.gmra.mxu0 %v3426
    %v3649 = vpop.f32.mrf.mxu0
    %v3650 = vadd.f32 %v3491, %v3649
    %v3651 = vpop.f32.mrf.mxu0
    %3652 = vmatprep.mubr.f32.mxu0 %v3524
    %3653 = vmatmul.mubr.f32.gmra.mxu0 %v3427
    %v3654 = vpop.f32.mrf.mxu0
    %v3655 = vadd.f32 %v3491, %v3654
    %v3656 = vpop.f32.mrf.mxu0
    %3657 = vmatprep.mubr.f32.mxu0 %v3527
    %3658 = vmatmul.mubr.f32.gmra.mxu0 %v3428
    %v3659 = vpop.f32.mrf.mxu0
    %v3660 = vadd.f32 %v3491, %v3659
    %v3661 = vpop.f32.mrf.mxu0
    %3662 = vmatprep.mubr.f32.mxu0 %v3530
    %3663 = vmatmul.mubr.f32.gmra.mxu0 %v3429
    %v3664 = vpop.f32.mrf.mxu0
    %v3665 = vadd.f32 %v3491, %v3664
    %v3666 = vpop.f32.mrf.mxu0
    %3667 = vmatprep.mubr.f32.mxu0 %v3533
    %3668 = vmatmul.mubr.f32.gmra.mxu0 %v3430
    %v3669 = vpop.f32.mrf.mxu0
    %v3670 = vadd.f32 %v3491, %v3669
    %v3671 = vpop.f32.mrf.mxu0
    %3672 = vmatprep.mubr.f32.mxu0 %v3536
    %3673 = vmatmul.mubr.f32.gmra.mxu0 %v3431
    %v3674 = vpop.f32.mrf.mxu0
    %v3675 = vadd.f32 %v3491, %v3674
    %v3676 = vpop.f32.mrf.mxu0
    %3677 = vdwg.mxu0
    %v3678 = vld [vmem:[%s13] sm:$0xff]
    %v3679 = vld [vmem:[%s13 + $0x8] sm:$0xff]
    %v3680 = vld [vmem:[%s13 + $0x10] sm:$0xff]
    %v3681 = vld [vmem:[%s13 + $0x18] sm:$0xff]
    %v3682 = vld [vmem:[%s13 + $0x20] sm:$0xff]
    %v3683 = vld [vmem:[%s13 + $0x28] sm:$0xff]
    %v3684 = vld [vmem:[%s13 + $0x30] sm:$0xff]
    %v3685 = vld [vmem:[%s13 + $0x38] sm:$0xff]
    %v3686 = vld [vmem:[%s13 + $0x40] sm:$0xff]
    %v3687 = vld [vmem:[%s13 + $0x48] sm:$0xff]
    %v3688 = vld [vmem:[%s13 + $0x50] sm:$0xff]
    %v3689 = vld [vmem:[%s13 + $0x58] sm:$0xff]
    %v3690 = vld [vmem:[%s13 + $0x60] sm:$0xff]
    %v3691 = vld [vmem:[%s13 + $0x68] sm:$0xff]
    %v3692 = vld [vmem:[%s13 + $0x70] sm:$0xff]
    %vm3693 = vcmask 982016
    %v3695 = vsel %vm3693, %v3678, 0
    %v3698 = vsel %vm3693, %v3679, 0
    %v3701 = vsel %vm3693, %v3680, 0
    %v3704 = vsel %vm3693, %v3681, 0
    %v3707 = vsel %vm3693, %v3682, 0
    %v3710 = vsel %vm3693, %v3683, 0
    %v3713 = vsel %vm3693, %v3684, 0
    %v3716 = vsel %vm3693, %v3685, 0
    %v3719 = vsel %vm3693, %v3686, 0
    %v3722 = vsel %vm3693, %v3687, 0
    %v3725 = vsel %vm3693, %v3688, 0
    %v3728 = vsel %vm3693, %v3689, 0
    %v3731 = vsel %vm3693, %v3690, 0
    %v3734 = vsel %vm3693, %v3691, 0
    %v3737 = vsel %vm3693, %v3692, 0
    %3739 = vmatprep.subr.mxu0 0.0
    %3740 = vmatpush1.msra.mxu0 0.0
    %3741 = vmatprep.subr.mxu0 0.0
    %3742 = vmatpush1.msra.mxu0 %v3675
    %3743 = vmatprep.subr.mxu0 0.0
    %3744 = vmatpush1.msra.mxu0 %v3670
    %3745 = vmatprep.subr.mxu0 0.0
    %3746 = vmatpush1.msra.mxu0 %v3665
    %3747 = vmatprep.subr.mxu0 0.0
    %3748 = vmatpush1.msra.mxu0 %v3660
    %3749 = vmatprep.subr.mxu0 0.0
    %3750 = vmatpush1.msra.mxu0 %v3655
    %3751 = vmatprep.subr.mxu0 0.0
    %3752 = vmatpush1.msra.mxu0 %v3650
    %3753 = vmatprep.subr.mxu0 0.0
    %3754 = vmatpush1.msra.mxu0 %v3645
    %3755 = vmatprep.subr.mxu0 0.0
    %3756 = vmatpush1.msra.mxu0 %v3640
    %3757 = vmatprep.subr.mxu0 0.0
    %3758 = vmatpush1.msra.mxu0 %v3635
    %3759 = vmatprep.subr.mxu0 0.0
    %3760 = vmatpush1.msra.mxu0 %v3630
    %3761 = vmatprep.subr.mxu0 0.0
    %3762 = vmatpush1.msra.mxu0 %v3625
    %3763 = vmatprep.subr.mxu0 0.0
    %3764 = vmatpush1.msra.mxu0 %v3620
    %3765 = vmatprep.subr.mxu0 0.0
    %3766 = vmatpush1.msra.mxu0 %v3615
    %3767 = vmatprep.subr.mxu0 0.0
    %3768 = vmatpush1.msra.mxu0 %v3610
    %3769 = vmatprep.subr.mxu0 0.0
    %3770 = vmatpush1.msra.mxu0 %v3605
    %3771 = vmatprep.subr.mxu0 0.0
    %3772 = vmatpush2.msra.mxu0 0.0
    %3773 = vmatprep.subr.mxu0 0.0
    %3774 = vmatpush2.msra.mxu0 0.0
    %3775 = vmatprep.subr.mxu0 0.0
    %3776 = vmatpush2.msra.mxu0 0.0
    %3777 = vmatprep.subr.mxu0 0.0
    %3778 = vmatpush2.msra.mxu0 0.0
    %3779 = vmatprep.subr.mxu0 0.0
    %3780 = vmatpush2.msra.mxu0 0.0
    %3781 = vmatprep.subr.mxu0 0.0
    %3782 = vmatpush2.msra.mxu0 0.0
    %3783 = vmatprep.subr.mxu0 0.0
    %3784 = vmatpush2.msra.mxu0 0.0
    %3785 = vmatprep.subr.mxu0 0.0
    %3786 = vmatpush2.msra.mxu0 0.0
    %3787 = vmatprep.subr.mxu0 0.0
    %3788 = vmatpush2.msra.mxu0 0.0
    %3789 = vmatprep.subr.mxu0 0.0
    %3790 = vmatpush2.msra.mxu0 0.0
    %3791 = vmatprep.subr.mxu0 0.0
    %3792 = vmatpush2.msra.mxu0 0.0
    %3793 = vmatprep.subr.mxu0 0.0
    %3794 = vmatpush2.msra.mxu0 0.0
    %3795 = vmatprep.subr.mxu0 0.0
    %3796 = vmatpush2.msra.mxu0 0.0
    %3797 = vmatprep.subr.mxu0 0.0
    %3798 = vmatpush2.msra.mxu0 0.0
    %3799 = vmatprep.subr.mxu0 0.0
    %3800 = vmatpush2.msra.mxu0 0.0
    %3801 = vmatprep.subr.mxu0 0.0
    %3802 = vmatpush2.msra.mxu0 0.0
    %3803 = vmatprep.mubr.f32.mxu0 0.0
    %3804 = vmatmul.mubr.f32.gmra.mxu0 %v3695
    %v3805 = vpop.f32.mrf.mxu0
    %v3806 = vadd.f32 0.0, %v3805
    %v3807 = vpop.f32.mrf.mxu0
    %3808 = vmatprep.mubr.f32.mxu0 0.0
    %3809 = vmatmul.mubr.f32.gmra.mxu0 %v3698
    %v3810 = vpop.f32.mrf.mxu0
    %v3811 = vadd.f32 0.0, %v3810
    %v3812 = vpop.f32.mrf.mxu0
    %3813 = vmatprep.mubr.f32.mxu0 0.0
    %3814 = vmatmul.mubr.f32.gmra.mxu0 %v3701
    %v3815 = vpop.f32.mrf.mxu0
    %v3816 = vadd.f32 0.0, %v3815
    %v3817 = vpop.f32.mrf.mxu0
    %3818 = vmatprep.mubr.f32.mxu0 0.0
    %3819 = vmatmul.mubr.f32.gmra.mxu0 %v3704
    %v3820 = vpop.f32.mrf.mxu0
    %v3821 = vadd.f32 0.0, %v3820
    %v3822 = vpop.f32.mrf.mxu0
    %3823 = vmatprep.mubr.f32.mxu0 0.0
    %3824 = vmatmul.mubr.f32.gmra.mxu0 %v3707
    %v3825 = vpop.f32.mrf.mxu0
    %v3826 = vadd.f32 0.0, %v3825
    %v3827 = vpop.f32.mrf.mxu0
    %3828 = vmatprep.mubr.f32.mxu0 0.0
    %3829 = vmatmul.mubr.f32.gmra.mxu0 %v3710
    %v3830 = vpop.f32.mrf.mxu0
    %v3831 = vadd.f32 0.0, %v3830
    %v3832 = vpop.f32.mrf.mxu0
    %3833 = vmatprep.mubr.f32.mxu0 0.0
    %3834 = vmatmul.mubr.f32.gmra.mxu0 %v3713
    %v3835 = vpop.f32.mrf.mxu0
    %v3836 = vadd.f32 0.0, %v3835
    %v3837 = vpop.f32.mrf.mxu0
    %3838 = vmatprep.mubr.f32.mxu0 0.0
    %3839 = vmatmul.mubr.f32.gmra.mxu0 %v3716
    %v3840 = vpop.f32.mrf.mxu0
    %v3841 = vadd.f32 0.0, %v3840
    %v3842 = vpop.f32.mrf.mxu0
    %3843 = vmatprep.mubr.f32.mxu0 0.0
    %3844 = vmatmul.mubr.f32.gmra.mxu0 %v3719
    %v3845 = vpop.f32.mrf.mxu0
    %v3846 = vadd.f32 0.0, %v3845
    %v3847 = vpop.f32.mrf.mxu0
    %3848 = vmatprep.mubr.f32.mxu0 0.0
    %3849 = vmatmul.mubr.f32.gmra.mxu0 %v3722
    %v3850 = vpop.f32.mrf.mxu0
    %v3851 = vadd.f32 0.0, %v3850
    %v3852 = vpop.f32.mrf.mxu0
    %3853 = vmatprep.mubr.f32.mxu0 0.0
    %3854 = vmatmul.mubr.f32.gmra.mxu0 %v3725
    %v3855 = vpop.f32.mrf.mxu0
    %v3856 = vadd.f32 0.0, %v3855
    %v3857 = vpop.f32.mrf.mxu0
    %3858 = vmatprep.mubr.f32.mxu0 0.0
    %3859 = vmatmul.mubr.f32.gmra.mxu0 %v3728
    %v3860 = vpop.f32.mrf.mxu0
    %v3861 = vadd.f32 0.0, %v3860
    %v3862 = vpop.f32.mrf.mxu0
    %3863 = vmatprep.mubr.f32.mxu0 0.0
    %3864 = vmatmul.mubr.f32.gmra.mxu0 %v3731
    %v3865 = vpop.f32.mrf.mxu0
    %v3866 = vadd.f32 0.0, %v3865
    %v3867 = vpop.f32.mrf.mxu0
    %3868 = vmatprep.mubr.f32.mxu0 0.0
    %3869 = vmatmul.mubr.f32.gmra.mxu0 %v3734
    %v3870 = vpop.f32.mrf.mxu0
    %v3871 = vadd.f32 0.0, %v3870
    %v3872 = vpop.f32.mrf.mxu0
    %3873 = vmatprep.mubr.f32.mxu0 0.0
    %3874 = vmatmul.mubr.f32.gmra.mxu0 %v3737
    %v3875 = vpop.f32.mrf.mxu0
    %v3876 = vadd.f32 0.0, %v3875
    %v3877 = vpop.f32.mrf.mxu0
    %3878 = vdwg.mxu0
    %v3879 = vld [vmem:[#allocation13] sm:$0x1]
    %v3880 = vsub.f32 %v3806, %v3605
    %v3881 = vsub.f32 %v3811, %v3610
    %v3882 = vsub.f32 %v3816, %v3615
    %v3883 = vsub.f32 %v3821, %v3620
    %v3884 = vsub.f32 %v3826, %v3625
    %v3885 = vsub.f32 %v3831, %v3630
    %v3886 = vsub.f32 %v3836, %v3635
    %v3887 = vsub.f32 %v3841, %v3640
    %v3888 = vsub.f32 %v3846, %v3645
    %v3889 = vsub.f32 %v3851, %v3650
    %v3890 = vsub.f32 %v3856, %v3655
    %v3891 = vsub.f32 %v3861, %v3660
    %v3892 = vsub.f32 %v3866, %v3665
    %v3893 = vsub.f32 %v3871, %v3670
    %v3894 = vsub.f32 %v3876, %v3675
    %v3896 = vlaneseq
    %v3897 = vshrl.u32 %v3896, 7
    %v3898 = vsub.s32 0, %v3897
    %v3899 = vrot.slane %v3879, %v3898
    %v3901 = vmul.f32 %v3899, %v3880
    %v3902 = vmul.f32 %v3899, %v3881
    %v3903 = vmul.f32 %v3899, %v3882
    %v3904 = vmul.f32 %v3899, %v3883
    %v3905 = vmul.f32 %v3899, %v3884
    %v3906 = vmul.f32 %v3899, %v3885
    %v3907 = vmul.f32 %v3899, %v3886
    %v3908 = vmul.f32 %v3899, %v3887
    %v3909 = vmul.f32 %v3899, %v3888
    %v3910 = vmul.f32 %v3899, %v3889
    %v3911 = vmul.f32 %v3899, %v3890
    %v3912 = vmul.f32 %v3899, %v3891
    %v3913 = vmul.f32 %v3899, %v3892
    %v3914 = vmul.f32 %v3899, %v3893
    %v3915 = vmul.f32 %v3899, %v3894
    %v3916 = vadd.f32 %v3605, %v3901
    %v3917 = vadd.f32 %v3610, %v3902
    %v3918 = vadd.f32 %v3615, %v3903
    %v3919 = vadd.f32 %v3620, %v3904
    %v3920 = vadd.f32 %v3625, %v3905
    %v3921 = vadd.f32 %v3630, %v3906
    %v3922 = vadd.f32 %v3635, %v3907
    %v3923 = vadd.f32 %v3640, %v3908
    %v3924 = vadd.f32 %v3645, %v3909
    %v3925 = vadd.f32 %v3650, %v3910
    %v3926 = vadd.f32 %v3655, %v3911
    %v3927 = vadd.f32 %v3660, %v3912
    %v3928 = vadd.f32 %v3665, %v3913
    %v3929 = vadd.f32 %v3670, %v3914
    %v3930 = vadd.f32 %v3675, %v3915
    %3931 = vst.msk [vmem:[#allocation3] sm:$0xff] %vm3416, %v3916
    %3932 = vst.msk [vmem:[#allocation3 + $0x8] sm:$0xff] %vm3416, %v3917
    %3933 = vst.msk [vmem:[#allocation3 + $0x10] sm:$0xff] %vm3416, %v3918
    %3934 = vst.msk [vmem:[#allocation3 + $0x18] sm:$0xff] %vm3416, %v3919
    %3935 = vst.msk [vmem:[#allocation3 + $0x20] sm:$0xff] %vm3416, %v3920
    %3936 = vst.msk [vmem:[#allocation3 + $0x28] sm:$0xff] %vm3416, %v3921
    %3937 = vst.msk [vmem:[#allocation3 + $0x30] sm:$0xff] %vm3416, %v3922
    %3938 = vst.msk [vmem:[#allocation3 + $0x38] sm:$0xff] %vm3416, %v3923
    %3939 = vst.msk [vmem:[#allocation3 + $0x40] sm:$0xff] %vm3416, %v3924
    %3940 = vst.msk [vmem:[#allocation3 + $0x48] sm:$0xff] %vm3416, %v3925
    %3941 = vst.msk [vmem:[#allocation3 + $0x50] sm:$0xff] %vm3416, %v3926
    %3942 = vst.msk [vmem:[#allocation3 + $0x58] sm:$0xff] %vm3416, %v3927
    %3943 = vst.msk [vmem:[#allocation3 + $0x60] sm:$0xff] %vm3416, %v3928
    %3944 = vst.msk [vmem:[#allocation3 + $0x68] sm:$0xff] %vm3416, %v3929
    %3945 = vst.msk [vmem:[#allocation3 + $0x70] sm:$0xff] %vm3416, %v3930
    %v3946 = vld [vmem:[%s11] sm:$0xff]
    %v3947 = vld [vmem:[%s11 + $0x8] sm:$0xff]
    %v3948 = vld [vmem:[%s15] sm:$0xff]
    %v3949 = vld [vmem:[%s15 + $0x8] sm:$0xff]
    %v3950 = vld [vmem:[%s15 + $0x10] sm:$0xff]
    %v3951 = vld [vmem:[%s15 + $0x18] sm:$0xff]
    %v3952 = vld [vmem:[%s15 + $0x20] sm:$0xff]
    %v3953 = vld [vmem:[%s15 + $0x28] sm:$0xff]
    %v3954 = vld [vmem:[%s15 + $0x30] sm:$0xff]
    %v3955 = vld [vmem:[%s15 + $0x38] sm:$0xff]
    %v3956 = vld [vmem:[%s15 + $0x40] sm:$0xff]
    %v3957 = vld [vmem:[%s15 + $0x48] sm:$0xff]
    %v3958 = vld [vmem:[%s15 + $0x50] sm:$0xff]
    %v3959 = vld [vmem:[%s15 + $0x58] sm:$0xff]
    %v3960 = vld [vmem:[%s15 + $0x60] sm:$0xff]
    %v3961 = vld [vmem:[%s15 + $0x68] sm:$0xff]
    %v3962 = vld [vmem:[%s15 + $0x70] sm:$0xff]
    %v3963 = vld [vmem:[%s15 + $0x78] sm:$0xff]
    %v3964 = vld [vmem:[%s15 + $0x80] sm:$0xff]
    %v3965 = vld [vmem:[%s15 + $0x88] sm:$0xff]
    %v3966 = vld [vmem:[%s15 + $0x90] sm:$0xff]
    %v3967 = vld [vmem:[%s15 + $0x98] sm:$0xff]
    %v3968 = vld [vmem:[%s15 + $0xa0] sm:$0xff]
    %v3969 = vld [vmem:[%s15 + $0xa8] sm:$0xff]
    %v3970 = vld [vmem:[%s15 + $0xb0] sm:$0xff]
    %v3971 = vld [vmem:[%s15 + $0xb8] sm:$0xff]
    %v3972 = vld [vmem:[%s15 + $0xc0] sm:$0xff]
    %v3973 = vld [vmem:[%s15 + $0xc8] sm:$0xff]
    %v3974 = vld [vmem:[%s15 + $0xd0] sm:$0xff]
    %v3975 = vld [vmem:[%s15 + $0xd8] sm:$0xff]
    %v3976 = vld [vmem:[%s15 + $0xe0] sm:$0xff]
    %v3977 = vld [vmem:[%s15 + $0xe8] sm:$0xff]
    %v3978 = vld [vmem:[%s15 + $0xf0] sm:$0xff]
    %v3979 = vld [vmem:[%s15 + $0xf8] sm:$0xff]
    %v3980 = vld [vmem:[%s15 + $0x100] sm:$0xff]
    %v3981 = vld [vmem:[%s15 + $0x108] sm:$0xff]
    %v3982 = vld [vmem:[%s15 + $0x110] sm:$0xff]
    %v3983 = vld [vmem:[%s15 + $0x118] sm:$0xff]
    %v3984 = vld [vmem:[%s15 + $0x120] sm:$0xff]
    %v3985 = vld [vmem:[%s15 + $0x128] sm:$0xff]
    %v3986 = vld [vmem:[%s15 + $0x130] sm:$0xff]
    %v3987 = vld [vmem:[%s15 + $0x138] sm:$0xff]
    %v3988 = vld [vmem:[%s15 + $0x140] sm:$0xff]
    %v3989 = vld [vmem:[%s15 + $0x148] sm:$0xff]
    %v3990 = vld [vmem:[%s15 + $0x150] sm:$0xff]
    %v3991 = vld [vmem:[%s15 + $0x158] sm:$0xff]
    %v3992 = vld [vmem:[%s15 + $0x160] sm:$0xff]
    %v3993 = vld [vmem:[%s15 + $0x168] sm:$0xff]
    %v3994 = vld [vmem:[%s15 + $0x170] sm:$0xff]
    %v3995 = vld [vmem:[%s15 + $0x178] sm:$0xff]
    %v3996 = vld [vmem:[#allocation16] sm:$0x3]
    %v3997 = vld [vmem:[%s17] sm:$0xff]
    %v3998 = vld [vmem:[%s17 + $0x8] sm:$0xff]
    %v3999 = vld [vmem:[%s17 + $0x10] sm:$0xff]
    %v4000 = vld [vmem:[%s17 + $0x18] sm:$0xff]
    %v4001 = vld [vmem:[%s17 + $0x20] sm:$0xff]
    %v4002 = vld [vmem:[%s17 + $0x28] sm:$0xff]
    %v4003 = vld [vmem:[%s17 + $0x30] sm:$0xff]
    %v4004 = vld [vmem:[%s17 + $0x38] sm:$0xff]
    %v4005 = vld [vmem:[%s17 + $0x40] sm:$0xff]
    %v4006 = vld [vmem:[%s17 + $0x48] sm:$0xff]
    %v4007 = vld [vmem:[%s17 + $0x50] sm:$0xff]
    %v4008 = vld [vmem:[%s17 + $0x58] sm:$0xff]
    %v4009 = vld [vmem:[%s17 + $0x60] sm:$0xff]
    %v4010 = vld [vmem:[%s17 + $0x68] sm:$0xff]
    %v4011 = vld [vmem:[%s17 + $0x70] sm:$0xff]
    %v4012 = vld [vmem:[%s17 + $0x78] sm:$0xff]
    %v4013 = vld [vmem:[%s17 + $0x80] sm:$0xff]
    %v4014 = vld [vmem:[%s17 + $0x88] sm:$0xff]
    %v4015 = vld [vmem:[%s17 + $0x90] sm:$0xff]
    %v4016 = vld [vmem:[%s17 + $0x98] sm:$0xff]
    %v4017 = vld [vmem:[%s17 + $0xa0] sm:$0xff]
    %v4018 = vld [vmem:[%s17 + $0xa8] sm:$0xff]
    %v4019 = vld [vmem:[%s17 + $0xb0] sm:$0xff]
    %v4020 = vld [vmem:[%s17 + $0xb8] sm:$0xff]
    %v4021 = vld [vmem:[#allocation17] sm:$0x1]
    loop: start=0, step=1, limit=15
    $region122: #{_gat_fp_pallas.1} parent=1 // loop_pre_header
      _
    $region123: #{_gat_fp_pallas.1} parent=1 // loop_header
      %s4023 = sphi 0, %s4027
      %p4024 = scmp.ge.s32.totalorder %s4023, 15
      %v4028 = vphi 0.0, %v5169
      %v4029 = vphi 0.0, %v5163
    $region124: #{_gat_fp_pallas.1} parent=1 // loop_header_branch
      %4026 = sbr.rel (%p4024) target = $region128
    $region125: #{_gat_fp_pallas.1} parent=1 // loop_body
      %s4030 = smul.u32 %s4023, 8
      %s4031 = scalar_lea.vmem [#allocation14], %s4030
      %v4032 = vld [vmem:[%s4031] sm:$0xff]
      %v4033 = vld [vmem:[#allocation2] sm:$0xff]
      %v4034 = vld [vmem:[#allocation2 + $0x8] sm:$0xff]
      %v4035 = vld [vmem:[#allocation2 + $0x10] sm:$0xff]
      %v4036 = vld [vmem:[#allocation2 + $0x18] sm:$0xff]
      %v4037 = vld [vmem:[#allocation2 + $0x20] sm:$0xff]
      %v4038 = vld [vmem:[#allocation2 + $0x28] sm:$0xff]
      %v4039 = vld [vmem:[#allocation2 + $0x30] sm:$0xff]
      %v4040 = vld [vmem:[#allocation2 + $0x38] sm:$0xff]
      %v4041 = vld [vmem:[#allocation2 + $0x40] sm:$0xff]
      %v4042 = vld [vmem:[#allocation2 + $0x48] sm:$0xff]
      %v4043 = vld [vmem:[#allocation2 + $0x50] sm:$0xff]
      %v4044 = vld [vmem:[#allocation2 + $0x58] sm:$0xff]
      %v4045 = vld [vmem:[#allocation2 + $0x60] sm:$0xff]
      %v4046 = vld [vmem:[#allocation2 + $0x68] sm:$0xff]
      %v4047 = vld [vmem:[#allocation2 + $0x70] sm:$0xff]
      %v4048 = vld [vmem:[#allocation2 + $0x78] sm:$0xff]
      %v4049 = vld [vmem:[#allocation2 + $0x80] sm:$0xff]
      %v4050 = vld [vmem:[#allocation2 + $0x88] sm:$0xff]
      %v4051 = vld [vmem:[#allocation2 + $0x90] sm:$0xff]
      %v4052 = vld [vmem:[#allocation2 + $0x98] sm:$0xff]
      %v4053 = vld [vmem:[#allocation2 + $0xa0] sm:$0xff]
      %v4054 = vld [vmem:[#allocation2 + $0xa8] sm:$0xff]
      %v4055 = vld [vmem:[#allocation2 + $0xb0] sm:$0xff]
      %v4056 = vld [vmem:[#allocation2 + $0xb8] sm:$0xff]
      %v4057 = vld [vmem:[#allocation2 + $0xc0] sm:$0xff]
      %v4058 = vld [vmem:[#allocation2 + $0xc8] sm:$0xff]
      %v4059 = vld [vmem:[#allocation2 + $0xd0] sm:$0xff]
      %v4060 = vld [vmem:[#allocation2 + $0xd8] sm:$0xff]
      %v4061 = vld [vmem:[#allocation2 + $0xe0] sm:$0xff]
      %v4062 = vld [vmem:[#allocation2 + $0xe8] sm:$0xff]
      %v4064 = vsel %vm3693, %v4032, 0
      %4066 = vmatprep.subr.mxu0 0.0
      %4067 = vmatpush1.msra.mxu0 0.0
      %4068 = vmatprep.subr.mxu0 %v4062
      %4069 = vmatpush1.msra.mxu0 %v4061
      %4070 = vmatprep.subr.mxu0 %v4060
      %4071 = vmatpush1.msra.mxu0 %v4059
      %4072 = vmatprep.subr.mxu0 %v4058
      %4073 = vmatpush1.msra.mxu0 %v4057
      %4074 = vmatprep.subr.mxu0 %v4056
      %4075 = vmatpush1.msra.mxu0 %v4055
      %4076 = vmatprep.subr.mxu0 %v4054
      %4077 = vmatpush1.msra.mxu0 %v4053
      %4078 = vmatprep.subr.mxu0 %v4052
      %4079 = vmatpush1.msra.mxu0 %v4051
      %4080 = vmatprep.subr.mxu0 %v4050
      %4081 = vmatpush1.msra.mxu0 %v4049
      %4082 = vmatprep.subr.mxu0 %v4048
      %4083 = vmatpush1.msra.mxu0 %v4047
      %4084 = vmatprep.subr.mxu0 %v4046
      %4085 = vmatpush1.msra.mxu0 %v4045
      %4086 = vmatprep.subr.mxu0 %v4044
      %4087 = vmatpush1.msra.mxu0 %v4043
      %4088 = vmatprep.subr.mxu0 %v4042
      %4089 = vmatpush1.msra.mxu0 %v4041
      %4090 = vmatprep.subr.mxu0 %v4040
      %4091 = vmatpush1.msra.mxu0 %v4039
      %4092 = vmatprep.subr.mxu0 %v4038
      %4093 = vmatpush1.msra.mxu0 %v4037
      %4094 = vmatprep.subr.mxu0 %v4036
      %4095 = vmatpush1.msra.mxu0 %v4035
      %4096 = vmatprep.subr.mxu0 %v4034
      %4097 = vmatpush1.msra.mxu0 %v4033
      %4098 = vmatprep.subr.mxu0 0.0
      %4099 = vmatpush2.msra.mxu0 0.0
      %4100 = vmatprep.subr.mxu0 0.0
      %4101 = vmatpush2.msra.mxu0 0.0
      %4102 = vmatprep.subr.mxu0 0.0
      %4103 = vmatpush2.msra.mxu0 0.0
      %4104 = vmatprep.subr.mxu0 0.0
      %4105 = vmatpush2.msra.mxu0 0.0
      %4106 = vmatprep.subr.mxu0 0.0
      %4107 = vmatpush2.msra.mxu0 0.0
      %4108 = vmatprep.subr.mxu0 0.0
      %4109 = vmatpush2.msra.mxu0 0.0
      %4110 = vmatprep.subr.mxu0 0.0
      %4111 = vmatpush2.msra.mxu0 0.0
      %4112 = vmatprep.subr.mxu0 0.0
      %4113 = vmatpush2.msra.mxu0 0.0
      %4114 = vmatprep.subr.mxu0 0.0
      %4115 = vmatpush2.msra.mxu0 0.0
      %4116 = vmatprep.subr.mxu0 0.0
      %4117 = vmatpush2.msra.mxu0 0.0
      %4118 = vmatprep.subr.mxu0 0.0
      %4119 = vmatpush2.msra.mxu0 0.0
      %4120 = vmatprep.subr.mxu0 0.0
      %4121 = vmatpush2.msra.mxu0 0.0
      %4122 = vmatprep.subr.mxu0 0.0
      %4123 = vmatpush2.msra.mxu0 0.0
      %4124 = vmatprep.subr.mxu0 0.0
      %4125 = vmatpush2.msra.mxu0 0.0
      %4126 = vmatprep.subr.mxu0 0.0
      %4127 = vmatpush2.msra.mxu0 0.0
      %4128 = vmatprep.subr.mxu0 0.0
      %4129 = vmatpush2.msra.mxu0 0.0
      %4130 = vmatprep.mubr.f32.mxu0 0.0
      %4131 = vmatmul.mubr.f32.gmra.mxu0 %v4064
      %v4132 = vpop.f32.mrf.mxu0
      %v4133 = vadd.f32 0.0, %v4132
      %v4134 = vpop.f32.mrf.mxu0
      %v4135 = vadd.f32 0.0, %v4134
      %4136 = vdwg.mxu0
      %v4138 = vlaneseq
      %v4139 = vshrl.u32 %v4138, 7
      %v4140 = vsub.s32 0, %v4139
      %v4141 = vrot.slane %v3996, %v4140
      %v4142 = vlaneseq
      %v4143 = vshrl.u32 %v4142, 7
      %v4144 = vsub.s32 1, %v4143
      %v4145 = vrot.slane %v3996, %v4144
      %v4149 = vsel %vm3416, %v4135, 0
      %4151 = vmatprep.subr.mxu0 %v3979
      %4152 = vmatpush1.msra.mxu0 %v3978
      %4153 = vmatprep.subr.mxu0 %v3977
      %4154 = vmatpush1.msra.mxu0 %v3976
      %4155 = vmatprep.subr.mxu0 %v3975
      %4156 = vmatpush1.msra.mxu0 %v3974
      %4157 = vmatprep.subr.mxu0 %v3973
      %4158 = vmatpush1.msra.mxu0 %v3972
      %4159 = vmatprep.subr.mxu0 %v3971
      %4160 = vmatpush1.msra.mxu0 %v3970
      %4161 = vmatprep.subr.mxu0 %v3969
      %4162 = vmatpush1.msra.mxu0 %v3968
      %4163 = vmatprep.subr.mxu0 %v3967
      %4164 = vmatpush1.msra.mxu0 %v3966
      %4165 = vmatprep.subr.mxu0 %v3965
      %4166 = vmatpush1.msra.mxu0 %v3964
      %4167 = vmatprep.subr.mxu0 %v3963
      %4168 = vmatpush1.msra.mxu0 %v3962
      %4169 = vmatprep.subr.mxu0 %v3961
      %4170 = vmatpush1.msra.mxu0 %v3960
      %4171 = vmatprep.subr.mxu0 %v3959
      %4172 = vmatpush1.msra.mxu0 %v3958
      %4173 = vmatprep.subr.mxu0 %v3957
      %4174 = vmatpush1.msra.mxu0 %v3956
      %4175 = vmatprep.subr.mxu0 %v3955
      %4176 = vmatpush1.msra.mxu0 %v3954
      %4177 = vmatprep.subr.mxu0 %v3953
      %4178 = vmatpush1.msra.mxu0 %v3952
      %4179 = vmatprep.subr.mxu0 %v3951
      %4180 = vmatpush1.msra.mxu0 %v3950
      %4181 = vmatprep.subr.mxu0 %v3949
      %4182 = vmatpush1.msra.mxu0 %v3948
      %4183 = vmatprep.subr.mxu0 0.0
      %4184 = vmatpush2.msra.mxu0 0.0
      %4185 = vmatprep.subr.mxu0 0.0
      %4186 = vmatpush2.msra.mxu0 0.0
      %4187 = vmatprep.subr.mxu0 0.0
      %4188 = vmatpush2.msra.mxu0 0.0
      %4189 = vmatprep.subr.mxu0 0.0
      %4190 = vmatpush2.msra.mxu0 0.0
      %4191 = vmatprep.subr.mxu0 0.0
      %4192 = vmatpush2.msra.mxu0 0.0
      %4193 = vmatprep.subr.mxu0 0.0
      %4194 = vmatpush2.msra.mxu0 0.0
      %4195 = vmatprep.subr.mxu0 0.0
      %4196 = vmatpush2.msra.mxu0 0.0
      %4197 = vmatprep.subr.mxu0 0.0
      %4198 = vmatpush2.msra.mxu0 0.0
      %4199 = vmatprep.subr.mxu0 %v3995
      %4200 = vmatpush2.msra.mxu0 %v3994
      %4201 = vmatprep.subr.mxu0 %v3993
      %4202 = vmatpush2.msra.mxu0 %v3992
      %4203 = vmatprep.subr.mxu0 %v3991
      %4204 = vmatpush2.msra.mxu0 %v3990
      %4205 = vmatprep.subr.mxu0 %v3989
      %4206 = vmatpush2.msra.mxu0 %v3988
      %4207 = vmatprep.subr.mxu0 %v3987
      %4208 = vmatpush2.msra.mxu0 %v3986
      %4209 = vmatprep.subr.mxu0 %v3985
      %4210 = vmatpush2.msra.mxu0 %v3984
      %4211 = vmatprep.subr.mxu0 %v3983
      %4212 = vmatpush2.msra.mxu0 %v3982
      %4213 = vmatprep.subr.mxu0 %v3981
      %4214 = vmatpush2.msra.mxu0 %v3980
      %4215 = vmatprep.mubr.f32.mxu0 %v4149
      %4216 = vmatmul.mubr.f32.gmra.mxu0 %v4133
      %v4217 = vpop.f32.mrf.mxu0
      %v4218 = vadd.f32 %v4141, %v4217
      %v4219 = vpop.f32.mrf.mxu0
      %v4220 = vadd.f32 %v4145, %v4219
      %4221 = vdwg.mxu0
      %s4222 = sshra.s32 %s4030, 3
      %s4223 = sand.u32 %s4030, 7
      %s4224 = smul.u32 %s4222, 2
      %s4225 = smul.addr %s4224, 8
      %s4226 = scalar_lea.vmem [#allocation2], %s4225
      %v4227 = vld [vmem:[%s4226] sm:$0xff]
      %v4228 = vld [vmem:[%s4226 + $0x8] sm:$0xff]
      %v4229 = vadd.f32 %v4227, %v4218
      %v4230 = vadd.f32 %v4228, %v4220
      %v4231 = vmul.f32 %v4229, 0.5
      %v4232 = vmul.f32 %v4230, 0.5
      %v4233 = vand.u32 2147483647, %v4231
      %v4234 = vand.u32 2147483647, %v4232
      %v4235 = vsel %vm3416, %v4234, 0.0
      %v4236 = vadd.f32 %v4233, %v4235
      %4237 = vadd.xlane.f32.xlu0 %v4236
      %v4238 = vpop.xlane.xlu0 %4237
      %v4239 = vmax.f32 %v4238, 1e-12
      %v4240 = vrcp.pop %v4239
      %v4241 = vmul.f32 %v4231, %v4240
      %v4242 = vmul.f32 %v4232, %v4240
      %v4244 = vlaneseq
      %v4245 = vshrl.u32 %v4244, 7
      %v4246 = vsub.s32 0, %v4245
      %v4247 = vrot.slane %v4021, %v4246
      %v4250 = vsel %vm3416, %v4242, 0
      %4252 = vmatprep.subr.mxu0 0.0
      %4253 = vmatpush1.msra.mxu0 %v4012
      %4254 = vmatprep.subr.mxu0 0.0
      %4255 = vmatpush1.msra.mxu0 %v4011
      %4256 = vmatprep.subr.mxu0 0.0
      %4257 = vmatpush1.msra.mxu0 %v4010
      %4258 = vmatprep.subr.mxu0 0.0
      %4259 = vmatpush1.msra.mxu0 %v4009
      %4260 = vmatprep.subr.mxu0 0.0
      %4261 = vmatpush1.msra.mxu0 %v4008
      %4262 = vmatprep.subr.mxu0 0.0
      %4263 = vmatpush1.msra.mxu0 %v4007
      %4264 = vmatprep.subr.mxu0 0.0
      %4265 = vmatpush1.msra.mxu0 %v4006
      %4266 = vmatprep.subr.mxu0 0.0
      %4267 = vmatpush1.msra.mxu0 %v4005
      %4268 = vmatprep.subr.mxu0 0.0
      %4269 = vmatpush1.msra.mxu0 %v4004
      %4270 = vmatprep.subr.mxu0 0.0
      %4271 = vmatpush1.msra.mxu0 %v4003
      %4272 = vmatprep.subr.mxu0 0.0
      %4273 = vmatpush1.msra.mxu0 %v4002
      %4274 = vmatprep.subr.mxu0 0.0
      %4275 = vmatpush1.msra.mxu0 %v4001
      %4276 = vmatprep.subr.mxu0 0.0
      %4277 = vmatpush1.msra.mxu0 %v4000
      %4278 = vmatprep.subr.mxu0 0.0
      %4279 = vmatpush1.msra.mxu0 %v3999
      %4280 = vmatprep.subr.mxu0 0.0
      %4281 = vmatpush1.msra.mxu0 %v3998
      %4282 = vmatprep.subr.mxu0 0.0
      %4283 = vmatpush1.msra.mxu0 %v3997
      %4284 = vmatprep.subr.mxu0 0.0
      %4285 = vmatpush2.msra.mxu0 0.0
      %4286 = vmatprep.subr.mxu0 0.0
      %4287 = vmatpush2.msra.mxu0 0.0
      %4288 = vmatprep.subr.mxu0 0.0
      %4289 = vmatpush2.msra.mxu0 0.0
      %4290 = vmatprep.subr.mxu0 0.0
      %4291 = vmatpush2.msra.mxu0 0.0
      %4292 = vmatprep.subr.mxu0 0.0
      %4293 = vmatpush2.msra.mxu0 0.0
      %4294 = vmatprep.subr.mxu0 0.0
      %4295 = vmatpush2.msra.mxu0 0.0
      %4296 = vmatprep.subr.mxu0 0.0
      %4297 = vmatpush2.msra.mxu0 0.0
      %4298 = vmatprep.subr.mxu0 0.0
      %4299 = vmatpush2.msra.mxu0 0.0
      %4300 = vmatprep.subr.mxu0 0.0
      %4301 = vmatpush2.msra.mxu0 %v4020
      %4302 = vmatprep.subr.mxu0 0.0
      %4303 = vmatpush2.msra.mxu0 %v4019
      %4304 = vmatprep.subr.mxu0 0.0
      %4305 = vmatpush2.msra.mxu0 %v4018
      %4306 = vmatprep.subr.mxu0 0.0
      %4307 = vmatpush2.msra.mxu0 %v4017
      %4308 = vmatprep.subr.mxu0 0.0
      %4309 = vmatpush2.msra.mxu0 %v4016
      %4310 = vmatprep.subr.mxu0 0.0
      %4311 = vmatpush2.msra.mxu0 %v4015
      %4312 = vmatprep.subr.mxu0 0.0
      %4313 = vmatpush2.msra.mxu0 %v4014
      %4314 = vmatprep.subr.mxu0 0.0
      %4315 = vmatpush2.msra.mxu0 %v4013
      %4316 = vmatprep.mubr.f32.mxu0 %v4250
      %4317 = vmatmul.mubr.f32.gmra.mxu0 %v4241
      %v4318 = vpop.f32.mrf.mxu0
      %v4319 = vadd.f32 %v4247, %v4318
      %v4320 = vpop.f32.mrf.mxu0
      %4321 = vdwg.mxu0
      %s4322 = scalar_lea.vmem [#allocation5], %s4030
      %vm4323 = vcmask 130048
      %4324 = vst.msk [vmem:[%s4322] sm:$0xff] %vm4323, %v4319
      %s4325 = scalar_lea.vmem [#allocation3], %s4030
      %v4326 = vld [vmem:[%s4325] sm:$0x1]
      %4328 = vrot.lane.b32.xlu0 %v4028, 96
      %v4329 = vpop.permute.xlu0 %4328
      %v4330 = vsel %vm4323, %v4329, 0
      %4332 = vmatprep.subr.mxu0 0.0
      %4333 = vmatpush1.msra.mxu0 0.0
      %4334 = vmatprep.subr.mxu0 0.0
      %4335 = vmatpush1.msra.mxu0 0.0
      %4336 = vmatprep.subr.mxu0 0.0
      %4337 = vmatpush1.msra.mxu0 0.0
      %4338 = vmatprep.subr.mxu0 0.0
      %4339 = vmatpush1.msra.mxu0 0.0
      %4340 = vmatprep.subr.mxu0 0.0
      %4341 = vmatpush1.msra.mxu0 0.0
      %4342 = vmatprep.subr.mxu0 0.0
      %4343 = vmatpush1.msra.mxu0 0.0
      %4344 = vmatprep.subr.mxu0 0.0
      %4345 = vmatpush1.msra.mxu0 0.0
      %4346 = vmatprep.subr.mxu0 0.0
      %4347 = vmatpush1.msra.mxu0 0.0
      %4348 = vmatprep.subr.mxu0 0.0
      %4349 = vmatpush1.msra.mxu0 0.0
      %4350 = vmatprep.subr.mxu0 0.0
      %4351 = vmatpush1.msra.mxu0 0.0
      %4352 = vmatprep.subr.mxu0 0.0
      %4353 = vmatpush1.msra.mxu0 0.0
      %4354 = vmatprep.subr.mxu0 0.0
      %4355 = vmatpush1.msra.mxu0 0.0
      %4356 = vmatprep.subr.mxu0 0.0
      %4357 = vmatpush1.msra.mxu0 0.0
      %4358 = vmatprep.subr.mxu0 0.0
      %4359 = vmatpush1.msra.mxu0 0.0
      %4360 = vmatprep.subr.mxu0 0.0
      %4361 = vmatpush1.msra.mxu0 %v3947
      %4362 = vmatprep.subr.mxu0 0.0
      %4363 = vmatpush1.msra.mxu0 %v3946
      %4364 = vmatprep.subr.mxu0 0.0
      %4365 = vmatpush2.msra.mxu0 0.0
      %4366 = vmatprep.subr.mxu0 0.0
      %4367 = vmatpush2.msra.mxu0 0.0
      %4368 = vmatprep.subr.mxu0 0.0
      %4369 = vmatpush2.msra.mxu0 0.0
      %4370 = vmatprep.subr.mxu0 0.0
      %4371 = vmatpush2.msra.mxu0 0.0
      %4372 = vmatprep.subr.mxu0 0.0
      %4373 = vmatpush2.msra.mxu0 0.0
      %4374 = vmatprep.subr.mxu0 0.0
      %4375 = vmatpush2.msra.mxu0 0.0
      %4376 = vmatprep.subr.mxu0 0.0
      %4377 = vmatpush2.msra.mxu0 0.0
      %4378 = vmatprep.subr.mxu0 0.0
      %4379 = vmatpush2.msra.mxu0 0.0
      %4380 = vmatprep.subr.mxu0 0.0
      %4381 = vmatpush2.msra.mxu0 0.0
      %4382 = vmatprep.subr.mxu0 0.0
      %4383 = vmatpush2.msra.mxu0 0.0
      %4384 = vmatprep.subr.mxu0 0.0
      %4385 = vmatpush2.msra.mxu0 0.0
      %4386 = vmatprep.subr.mxu0 0.0
      %4387 = vmatpush2.msra.mxu0 0.0
      %4388 = vmatprep.subr.mxu0 0.0
      %4389 = vmatpush2.msra.mxu0 0.0
      %4390 = vmatprep.subr.mxu0 0.0
      %4391 = vmatpush2.msra.mxu0 0.0
      %4392 = vmatprep.subr.mxu0 0.0
      %4393 = vmatpush2.msra.mxu0 0.0
      %4394 = vmatprep.subr.mxu0 0.0
      %4395 = vmatpush2.msra.mxu0 0.0
      %4396 = vmatprep.mubr.f32.mxu0 0.0
      %4397 = vmatmul.mubr.f32.gmra.mxu0 %v4330
      %v4398 = vpop.f32.mrf.mxu0
      %v4399 = vadd.f32 0.0, %v4398
      %v4400 = vpop.f32.mrf.mxu0
      %4401 = vdwg.mxu0
      %v4402 = vadd.f32 %v4326, %v4399
      %v4403 = vxor.u32 %v4402, 2147483648
      %v4404 = vmul.f32 %v4403, 1.442695
      %v4405 = vpow.pop %v4404
      %v4406 = vadd.f32 %v4405, 1.0
      %v4407 = vrcp.pop %v4406
      %v4408 = vmul.f32 1.0, %v4407
      %v4409 = vtanh.pop %v4402
      %v4410 = vmul.f32 %v4408, %v4029
      %4412 = vrot.lane.b32.xlu0 %v4409, 80
      %v4413 = vpop.permute.xlu0 %4412
      %v4415 = vmul.f32 %v4408, %v4413
      %4417 = vrot.lane.b32.xlu0 %v4415, 16
      %v4418 = vpop.permute.xlu0 %4417
      %v4420 = vadd.f32 %v4410, %v4418
      %v4421 = vtanh.pop %v4420
      %4423 = vrot.lane.b32.xlu0 %v4421, 16
      %v4424 = vpop.permute.xlu0 %4423
      %v4426 = vmul.f32 %v4408, %v4424
      %4428 = vrot.lane.b32.xlu0 %v4426, 96
      %v4429 = vpop.permute.xlu0 %4428
      %s4431 = scalar_lea.vmem [#allocation4], %s4030
      %vm4432 = vcmask 122880
      %4433 = vst.msk [vmem:[%s4431] sm:$0x1] %vm4432, %v4429
      %s4434 = sadd.s32 %s4030, 1
      %s4435 = scalar_lea.vmem [#allocation3], %s4434
      %v4436 = vld [vmem:[%s4435] sm:$0x1]
      %v4437 = vsel %vm4323, %v4429, 0
      %4439 = vmatprep.subr.mxu0 0.0
      %4440 = vmatpush1.msra.mxu0 0.0
      %4441 = vmatprep.subr.mxu0 0.0
      %4442 = vmatpush1.msra.mxu0 0.0
      %4443 = vmatprep.subr.mxu0 0.0
      %4444 = vmatpush1.msra.mxu0 0.0
      %4445 = vmatprep.subr.mxu0 0.0
      %4446 = vmatpush1.msra.mxu0 0.0
      %4447 = vmatprep.subr.mxu0 0.0
      %4448 = vmatpush1.msra.mxu0 0.0
      %4449 = vmatprep.subr.mxu0 0.0
      %4450 = vmatpush1.msra.mxu0 0.0
      %4451 = vmatprep.subr.mxu0 0.0
      %4452 = vmatpush1.msra.mxu0 0.0
      %4453 = vmatprep.subr.mxu0 0.0
      %4454 = vmatpush1.msra.mxu0 0.0
      %4455 = vmatprep.subr.mxu0 0.0
      %4456 = vmatpush1.msra.mxu0 0.0
      %4457 = vmatprep.subr.mxu0 0.0
      %4458 = vmatpush1.msra.mxu0 0.0
      %4459 = vmatprep.subr.mxu0 0.0
      %4460 = vmatpush1.msra.mxu0 0.0
      %4461 = vmatprep.subr.mxu0 0.0
      %4462 = vmatpush1.msra.mxu0 0.0
      %4463 = vmatprep.subr.mxu0 0.0
      %4464 = vmatpush1.msra.mxu0 0.0
      %4465 = vmatprep.subr.mxu0 0.0
      %4466 = vmatpush1.msra.mxu0 0.0
      %4467 = vmatprep.subr.mxu0 0.0
      %4468 = vmatpush1.msra.mxu0 %v3947
      %4469 = vmatprep.subr.mxu0 0.0
      %4470 = vmatpush1.msra.mxu0 %v3946
      %4471 = vmatprep.subr.mxu0 0.0
      %4472 = vmatpush2.msra.mxu0 0.0
      %4473 = vmatprep.subr.mxu0 0.0
      %4474 = vmatpush2.msra.mxu0 0.0
      %4475 = vmatprep.subr.mxu0 0.0
      %4476 = vmatpush2.msra.mxu0 0.0
      %4477 = vmatprep.subr.mxu0 0.0
      %4478 = vmatpush2.msra.mxu0 0.0
      %4479 = vmatprep.subr.mxu0 0.0
      %4480 = vmatpush2.msra.mxu0 0.0
      %4481 = vmatprep.subr.mxu0 0.0
      %4482 = vmatpush2.msra.mxu0 0.0
      %4483 = vmatprep.subr.mxu0 0.0
      %4484 = vmatpush2.msra.mxu0 0.0
      %4485 = vmatprep.subr.mxu0 0.0
      %4486 = vmatpush2.msra.mxu0 0.0
      %4487 = vmatprep.subr.mxu0 0.0
      %4488 = vmatpush2.msra.mxu0 0.0
      %4489 = vmatprep.subr.mxu0 0.0
      %4490 = vmatpush2.msra.mxu0 0.0
      %4491 = vmatprep.subr.mxu0 0.0
      %4492 = vmatpush2.msra.mxu0 0.0
      %4493 = vmatprep.subr.mxu0 0.0
      %4494 = vmatpush2.msra.mxu0 0.0
      %4495 = vmatprep.subr.mxu0 0.0
      %4496 = vmatpush2.msra.mxu0 0.0
      %4497 = vmatprep.subr.mxu0 0.0
      %4498 = vmatpush2.msra.mxu0 0.0
      %4499 = vmatprep.subr.mxu0 0.0
      %4500 = vmatpush2.msra.mxu0 0.0
      %4501 = vmatprep.subr.mxu0 0.0
      %4502 = vmatpush2.msra.mxu0 0.0
      %4503 = vmatprep.mubr.f32.mxu0 0.0
      %4504 = vmatmul.mubr.f32.gmra.mxu0 %v4437
      %v4505 = vpop.f32.mrf.mxu0
      %v4506 = vadd.f32 0.0, %v4505
      %v4507 = vpop.f32.mrf.mxu0
      %4508 = vdwg.mxu0
      %v4509 = vadd.f32 %v4436, %v4506
      %v4510 = vxor.u32 %v4509, 2147483648
      %v4511 = vmul.f32 %v4510, 1.442695
      %v4512 = vpow.pop %v4511
      %v4513 = vadd.f32 %v4512, 1.0
      %v4514 = vrcp.pop %v4513
      %v4515 = vmul.f32 1.0, %v4514
      %v4516 = vtanh.pop %v4509
      %v4517 = vmul.f32 %v4515, %v4420
      %4519 = vrot.lane.b32.xlu0 %v4516, 80
      %v4520 = vpop.permute.xlu0 %4519
      %v4522 = vmul.f32 %v4515, %v4520
      %4524 = vrot.lane.b32.xlu0 %v4522, 16
      %v4525 = vpop.permute.xlu0 %4524
      %v4527 = vadd.f32 %v4517, %v4525
      %v4528 = vtanh.pop %v4527
      %4530 = vrot.lane.b32.xlu0 %v4528, 16
      %v4531 = vpop.permute.xlu0 %4530
      %v4533 = vmul.f32 %v4515, %v4531
      %4535 = vrot.lane.b32.xlu0 %v4533, 96
      %v4536 = vpop.permute.xlu0 %4535
      %s4538 = scalar_lea.vmem [#allocation4], %s4434
      %4539 = vst.msk [vmem:[%s4538] sm:$0x1] %vm4432, %v4536
      %s4540 = sadd.s32 %s4030, 2
      %s4541 = scalar_lea.vmem [#allocation3], %s4540
      %v4542 = vld [vmem:[%s4541] sm:$0x1]
      %v4543 = vsel %vm4323, %v4536, 0
      %4545 = vmatprep.subr.mxu0 0.0
      %4546 = vmatpush1.msra.mxu0 0.0
      %4547 = vmatprep.subr.mxu0 0.0
      %4548 = vmatpush1.msra.mxu0 0.0
      %4549 = vmatprep.subr.mxu0 0.0
      %4550 = vmatpush1.msra.mxu0 0.0
      %4551 = vmatprep.subr.mxu0 0.0
      %4552 = vmatpush1.msra.mxu0 0.0
      %4553 = vmatprep.subr.mxu0 0.0
      %4554 = vmatpush1.msra.mxu0 0.0
      %4555 = vmatprep.subr.mxu0 0.0
      %4556 = vmatpush1.msra.mxu0 0.0
      %4557 = vmatprep.subr.mxu0 0.0
      %4558 = vmatpush1.msra.mxu0 0.0
      %4559 = vmatprep.subr.mxu0 0.0
      %4560 = vmatpush1.msra.mxu0 0.0
      %4561 = vmatprep.subr.mxu0 0.0
      %4562 = vmatpush1.msra.mxu0 0.0
      %4563 = vmatprep.subr.mxu0 0.0
      %4564 = vmatpush1.msra.mxu0 0.0
      %4565 = vmatprep.subr.mxu0 0.0
      %4566 = vmatpush1.msra.mxu0 0.0
      %4567 = vmatprep.subr.mxu0 0.0
      %4568 = vmatpush1.msra.mxu0 0.0
      %4569 = vmatprep.subr.mxu0 0.0
      %4570 = vmatpush1.msra.mxu0 0.0
      %4571 = vmatprep.subr.mxu0 0.0
      %4572 = vmatpush1.msra.mxu0 0.0
      %4573 = vmatprep.subr.mxu0 0.0
      %4574 = vmatpush1.msra.mxu0 %v3947
      %4575 = vmatprep.subr.mxu0 0.0
      %4576 = vmatpush1.msra.mxu0 %v3946
      %4577 = vmatprep.subr.mxu0 0.0
      %4578 = vmatpush2.msra.mxu0 0.0
      %4579 = vmatprep.subr.mxu0 0.0
      %4580 = vmatpush2.msra.mxu0 0.0
      %4581 = vmatprep.subr.mxu0 0.0
      %4582 = vmatpush2.msra.mxu0 0.0
      %4583 = vmatprep.subr.mxu0 0.0
      %4584 = vmatpush2.msra.mxu0 0.0
      %4585 = vmatprep.subr.mxu0 0.0
      %4586 = vmatpush2.msra.mxu0 0.0
      %4587 = vmatprep.subr.mxu0 0.0
      %4588 = vmatpush2.msra.mxu0 0.0
      %4589 = vmatprep.subr.mxu0 0.0
      %4590 = vmatpush2.msra.mxu0 0.0
      %4591 = vmatprep.subr.mxu0 0.0
      %4592 = vmatpush2.msra.mxu0 0.0
      %4593 = vmatprep.subr.mxu0 0.0
      %4594 = vmatpush2.msra.mxu0 0.0
      %4595 = vmatprep.subr.mxu0 0.0
      %4596 = vmatpush2.msra.mxu0 0.0
      %4597 = vmatprep.subr.mxu0 0.0
      %4598 = vmatpush2.msra.mxu0 0.0
      %4599 = vmatprep.subr.mxu0 0.0
      %4600 = vmatpush2.msra.mxu0 0.0
      %4601 = vmatprep.subr.mxu0 0.0
      %4602 = vmatpush2.msra.mxu0 0.0
      %4603 = vmatprep.subr.mxu0 0.0
      %4604 = vmatpush2.msra.mxu0 0.0
      %4605 = vmatprep.subr.mxu0 0.0
      %4606 = vmatpush2.msra.mxu0 0.0
      %4607 = vmatprep.subr.mxu0 0.0
      %4608 = vmatpush2.msra.mxu0 0.0
      %4609 = vmatprep.mubr.f32.mxu0 0.0
      %4610 = vmatmul.mubr.f32.gmra.mxu0 %v4543
      %v4611 = vpop.f32.mrf.mxu0
      %v4612 = vadd.f32 0.0, %v4611
      %v4613 = vpop.f32.mrf.mxu0
      %4614 = vdwg.mxu0
      %v4615 = vadd.f32 %v4542, %v4612
      %v4616 = vxor.u32 %v4615, 2147483648
      %v4617 = vmul.f32 %v4616, 1.442695
      %v4618 = vpow.pop %v4617
      %v4619 = vadd.f32 %v4618, 1.0
      %v4620 = vrcp.pop %v4619
      %v4621 = vmul.f32 1.0, %v4620
      %v4622 = vtanh.pop %v4615
      %v4623 = vmul.f32 %v4621, %v4527
      %4625 = vrot.lane.b32.xlu0 %v4622, 80
      %v4626 = vpop.permute.xlu0 %4625
      %v4628 = vmul.f32 %v4621, %v4626
      %4630 = vrot.lane.b32.xlu0 %v4628, 16
      %v4631 = vpop.permute.xlu0 %4630
      %v4633 = vadd.f32 %v4623, %v4631
      %v4634 = vtanh.pop %v4633
      %4636 = vrot.lane.b32.xlu0 %v4634, 16
      %v4637 = vpop.permute.xlu0 %4636
      %v4639 = vmul.f32 %v4621, %v4637
      %4641 = vrot.lane.b32.xlu0 %v4639, 96
      %v4642 = vpop.permute.xlu0 %4641
      %s4644 = scalar_lea.vmem [#allocation4], %s4540
      %4645 = vst.msk [vmem:[%s4644] sm:$0x1] %vm4432, %v4642
      %s4646 = sadd.s32 %s4030, 3
      %s4647 = scalar_lea.vmem [#allocation3], %s4646
      %v4648 = vld [vmem:[%s4647] sm:$0x1]
      %v4649 = vsel %vm4323, %v4642, 0
      %4651 = vmatprep.subr.mxu0 0.0
      %4652 = vmatpush1.msra.mxu0 0.0
      %4653 = vmatprep.subr.mxu0 0.0
      %4654 = vmatpush1.msra.mxu0 0.0
      %4655 = vmatprep.subr.mxu0 0.0
      %4656 = vmatpush1.msra.mxu0 0.0
      %4657 = vmatprep.subr.mxu0 0.0
      %4658 = vmatpush1.msra.mxu0 0.0
      %4659 = vmatprep.subr.mxu0 0.0
      %4660 = vmatpush1.msra.mxu0 0.0
      %4661 = vmatprep.subr.mxu0 0.0
      %4662 = vmatpush1.msra.mxu0 0.0
      %4663 = vmatprep.subr.mxu0 0.0
      %4664 = vmatpush1.msra.mxu0 0.0
      %4665 = vmatprep.subr.mxu0 0.0
      %4666 = vmatpush1.msra.mxu0 0.0
      %4667 = vmatprep.subr.mxu0 0.0
      %4668 = vmatpush1.msra.mxu0 0.0
      %4669 = vmatprep.subr.mxu0 0.0
      %4670 = vmatpush1.msra.mxu0 0.0
      %4671 = vmatprep.subr.mxu0 0.0
      %4672 = vmatpush1.msra.mxu0 0.0
      %4673 = vmatprep.subr.mxu0 0.0
      %4674 = vmatpush1.msra.mxu0 0.0
      %4675 = vmatprep.subr.mxu0 0.0
      %4676 = vmatpush1.msra.mxu0 0.0
      %4677 = vmatprep.subr.mxu0 0.0
      %4678 = vmatpush1.msra.mxu0 0.0
      %4679 = vmatprep.subr.mxu0 0.0
      %4680 = vmatpush1.msra.mxu0 %v3947
      %4681 = vmatprep.subr.mxu0 0.0
      %4682 = vmatpush1.msra.mxu0 %v3946
      %4683 = vmatprep.subr.mxu0 0.0
      %4684 = vmatpush2.msra.mxu0 0.0
      %4685 = vmatprep.subr.mxu0 0.0
      %4686 = vmatpush2.msra.mxu0 0.0
      %4687 = vmatprep.subr.mxu0 0.0
      %4688 = vmatpush2.msra.mxu0 0.0
      %4689 = vmatprep.subr.mxu0 0.0
      %4690 = vmatpush2.msra.mxu0 0.0
      %4691 = vmatprep.subr.mxu0 0.0
      %4692 = vmatpush2.msra.mxu0 0.0
      %4693 = vmatprep.subr.mxu0 0.0
      %4694 = vmatpush2.msra.mxu0 0.0
      %4695 = vmatprep.subr.mxu0 0.0
      %4696 = vmatpush2.msra.mxu0 0.0
      %4697 = vmatprep.subr.mxu0 0.0
      %4698 = vmatpush2.msra.mxu0 0.0
      %4699 = vmatprep.subr.mxu0 0.0
      %4700 = vmatpush2.msra.mxu0 0.0
      %4701 = vmatprep.subr.mxu0 0.0
      %4702 = vmatpush2.msra.mxu0 0.0
      %4703 = vmatprep.subr.mxu0 0.0
      %4704 = vmatpush2.msra.mxu0 0.0
      %4705 = vmatprep.subr.mxu0 0.0
      %4706 = vmatpush2.msra.mxu0 0.0
      %4707 = vmatprep.subr.mxu0 0.0
      %4708 = vmatpush2.msra.mxu0 0.0
      %4709 = vmatprep.subr.mxu0 0.0
      %4710 = vmatpush2.msra.mxu0 0.0
      %4711 = vmatprep.subr.mxu0 0.0
      %4712 = vmatpush2.msra.mxu0 0.0
      %4713 = vmatprep.subr.mxu0 0.0
      %4714 = vmatpush2.msra.mxu0 0.0
      %4715 = vmatprep.mubr.f32.mxu0 0.0
      %4716 = vmatmul.mubr.f32.gmra.mxu0 %v4649
      %v4717 = vpop.f32.mrf.mxu0
      %v4718 = vadd.f32 0.0, %v4717
      %v4719 = vpop.f32.mrf.mxu0
      %4720 = vdwg.mxu0
      %v4721 = vadd.f32 %v4648, %v4718
      %v4722 = vxor.u32 %v4721, 2147483648
      %v4723 = vmul.f32 %v4722, 1.442695
      %v4724 = vpow.pop %v4723
      %v4725 = vadd.f32 %v4724, 1.0
      %v4726 = vrcp.pop %v4725
      %v4727 = vmul.f32 1.0, %v4726
      %v4728 = vtanh.pop %v4721
      %v4729 = vmul.f32 %v4727, %v4633
      %4731 = vrot.lane.b32.xlu0 %v4728, 80
      %v4732 = vpop.permute.xlu0 %4731
      %v4734 = vmul.f32 %v4727, %v4732
      %4736 = vrot.lane.b32.xlu0 %v4734, 16
      %v4737 = vpop.permute.xlu0 %4736
      %v4739 = vadd.f32 %v4729, %v4737
      %v4740 = vtanh.pop %v4739
      %4742 = vrot.lane.b32.xlu0 %v4740, 16
      %v4743 = vpop.permute.xlu0 %4742
      %v4745 = vmul.f32 %v4727, %v4743
      %4747 = vrot.lane.b32.xlu0 %v4745, 96
      %v4748 = vpop.permute.xlu0 %4747
      %s4750 = scalar_lea.vmem [#allocation4], %s4646
      %4751 = vst.msk [vmem:[%s4750] sm:$0x1] %vm4432, %v4748
      %s4752 = sadd.s32 %s4030, 4
      %s4753 = scalar_lea.vmem [#allocation3], %s4752
      %v4754 = vld [vmem:[%s4753] sm:$0x1]
      %v4755 = vsel %vm4323, %v4748, 0
      %4757 = vmatprep.subr.mxu0 0.0
      %4758 = vmatpush1.msra.mxu0 0.0
      %4759 = vmatprep.subr.mxu0 0.0
      %4760 = vmatpush1.msra.mxu0 0.0
      %4761 = vmatprep.subr.mxu0 0.0
      %4762 = vmatpush1.msra.mxu0 0.0
      %4763 = vmatprep.subr.mxu0 0.0
      %4764 = vmatpush1.msra.mxu0 0.0
      %4765 = vmatprep.subr.mxu0 0.0
      %4766 = vmatpush1.msra.mxu0 0.0
      %4767 = vmatprep.subr.mxu0 0.0
      %4768 = vmatpush1.msra.mxu0 0.0
      %4769 = vmatprep.subr.mxu0 0.0
      %4770 = vmatpush1.msra.mxu0 0.0
      %4771 = vmatprep.subr.mxu0 0.0
      %4772 = vmatpush1.msra.mxu0 0.0
      %4773 = vmatprep.subr.mxu0 0.0
      %4774 = vmatpush1.msra.mxu0 0.0
      %4775 = vmatprep.subr.mxu0 0.0
      %4776 = vmatpush1.msra.mxu0 0.0
      %4777 = vmatprep.subr.mxu0 0.0
      %4778 = vmatpush1.msra.mxu0 0.0
      %4779 = vmatprep.subr.mxu0 0.0
      %4780 = vmatpush1.msra.mxu0 0.0
      %4781 = vmatprep.subr.mxu0 0.0
      %4782 = vmatpush1.msra.mxu0 0.0
      %4783 = vmatprep.subr.mxu0 0.0
      %4784 = vmatpush1.msra.mxu0 0.0
      %4785 = vmatprep.subr.mxu0 0.0
      %4786 = vmatpush1.msra.mxu0 %v3947
      %4787 = vmatprep.subr.mxu0 0.0
      %4788 = vmatpush1.msra.mxu0 %v3946
      %4789 = vmatprep.subr.mxu0 0.0
      %4790 = vmatpush2.msra.mxu0 0.0
      %4791 = vmatprep.subr.mxu0 0.0
      %4792 = vmatpush2.msra.mxu0 0.0
      %4793 = vmatprep.subr.mxu0 0.0
      %4794 = vmatpush2.msra.mxu0 0.0
      %4795 = vmatprep.subr.mxu0 0.0
      %4796 = vmatpush2.msra.mxu0 0.0
      %4797 = vmatprep.subr.mxu0 0.0
      %4798 = vmatpush2.msra.mxu0 0.0
      %4799 = vmatprep.subr.mxu0 0.0
      %4800 = vmatpush2.msra.mxu0 0.0
      %4801 = vmatprep.subr.mxu0 0.0
      %4802 = vmatpush2.msra.mxu0 0.0
      %4803 = vmatprep.subr.mxu0 0.0
      %4804 = vmatpush2.msra.mxu0 0.0
      %4805 = vmatprep.subr.mxu0 0.0
      %4806 = vmatpush2.msra.mxu0 0.0
      %4807 = vmatprep.subr.mxu0 0.0
      %4808 = vmatpush2.msra.mxu0 0.0
      %4809 = vmatprep.subr.mxu0 0.0
      %4810 = vmatpush2.msra.mxu0 0.0
      %4811 = vmatprep.subr.mxu0 0.0
      %4812 = vmatpush2.msra.mxu0 0.0
      %4813 = vmatprep.subr.mxu0 0.0
      %4814 = vmatpush2.msra.mxu0 0.0
      %4815 = vmatprep.subr.mxu0 0.0
      %4816 = vmatpush2.msra.mxu0 0.0
      %4817 = vmatprep.subr.mxu0 0.0
      %4818 = vmatpush2.msra.mxu0 0.0
      %4819 = vmatprep.subr.mxu0 0.0
      %4820 = vmatpush2.msra.mxu0 0.0
      %4821 = vmatprep.mubr.f32.mxu0 0.0
      %4822 = vmatmul.mubr.f32.gmra.mxu0 %v4755
      %v4823 = vpop.f32.mrf.mxu0
      %v4824 = vadd.f32 0.0, %v4823
      %v4825 = vpop.f32.mrf.mxu0
      %4826 = vdwg.mxu0
      %v4827 = vadd.f32 %v4754, %v4824
      %v4828 = vxor.u32 %v4827, 2147483648
      %v4829 = vmul.f32 %v4828, 1.442695
      %v4830 = vpow.pop %v4829
      %v4831 = vadd.f32 %v4830, 1.0
      %v4832 = vrcp.pop %v4831
      %v4833 = vmul.f32 1.0, %v4832
      %v4834 = vtanh.pop %v4827
      %v4835 = vmul.f32 %v4833, %v4739
      %4837 = vrot.lane.b32.xlu0 %v4834, 80
      %v4838 = vpop.permute.xlu0 %4837
      %v4840 = vmul.f32 %v4833, %v4838
      %4842 = vrot.lane.b32.xlu0 %v4840, 16
      %v4843 = vpop.permute.xlu0 %4842
      %v4845 = vadd.f32 %v4835, %v4843
      %v4846 = vtanh.pop %v4845
      %4848 = vrot.lane.b32.xlu0 %v4846, 16
      %v4849 = vpop.permute.xlu0 %4848
      %v4851 = vmul.f32 %v4833, %v4849
      %4853 = vrot.lane.b32.xlu0 %v4851, 96
      %v4854 = vpop.permute.xlu0 %4853
      %s4856 = scalar_lea.vmem [#allocation4], %s4752
      %4857 = vst.msk [vmem:[%s4856] sm:$0x1] %vm4432, %v4854
      %s4858 = sadd.s32 %s4030, 5
      %s4859 = scalar_lea.vmem [#allocation3], %s4858
      %v4860 = vld [vmem:[%s4859] sm:$0x1]
      %v4861 = vsel %vm4323, %v4854, 0
      %4863 = vmatprep.subr.mxu0 0.0
      %4864 = vmatpush1.msra.mxu0 0.0
      %4865 = vmatprep.subr.mxu0 0.0
      %4866 = vmatpush1.msra.mxu0 0.0
      %4867 = vmatprep.subr.mxu0 0.0
      %4868 = vmatpush1.msra.mxu0 0.0
      %4869 = vmatprep.subr.mxu0 0.0
      %4870 = vmatpush1.msra.mxu0 0.0
      %4871 = vmatprep.subr.mxu0 0.0
      %4872 = vmatpush1.msra.mxu0 0.0
      %4873 = vmatprep.subr.mxu0 0.0
      %4874 = vmatpush1.msra.mxu0 0.0
      %4875 = vmatprep.subr.mxu0 0.0
      %4876 = vmatpush1.msra.mxu0 0.0
      %4877 = vmatprep.subr.mxu0 0.0
      %4878 = vmatpush1.msra.mxu0 0.0
      %4879 = vmatprep.subr.mxu0 0.0
      %4880 = vmatpush1.msra.mxu0 0.0
      %4881 = vmatprep.subr.mxu0 0.0
      %4882 = vmatpush1.msra.mxu0 0.0
      %4883 = vmatprep.subr.mxu0 0.0
      %4884 = vmatpush1.msra.mxu0 0.0
      %4885 = vmatprep.subr.mxu0 0.0
      %4886 = vmatpush1.msra.mxu0 0.0
      %4887 = vmatprep.subr.mxu0 0.0
      %4888 = vmatpush1.msra.mxu0 0.0
      %4889 = vmatprep.subr.mxu0 0.0
      %4890 = vmatpush1.msra.mxu0 0.0
      %4891 = vmatprep.subr.mxu0 0.0
      %4892 = vmatpush1.msra.mxu0 %v3947
      %4893 = vmatprep.subr.mxu0 0.0
      %4894 = vmatpush1.msra.mxu0 %v3946
      %4895 = vmatprep.subr.mxu0 0.0
      %4896 = vmatpush2.msra.mxu0 0.0
      %4897 = vmatprep.subr.mxu0 0.0
      %4898 = vmatpush2.msra.mxu0 0.0
      %4899 = vmatprep.subr.mxu0 0.0
      %4900 = vmatpush2.msra.mxu0 0.0
      %4901 = vmatprep.subr.mxu0 0.0
      %4902 = vmatpush2.msra.mxu0 0.0
      %4903 = vmatprep.subr.mxu0 0.0
      %4904 = vmatpush2.msra.mxu0 0.0
      %4905 = vmatprep.subr.mxu0 0.0
      %4906 = vmatpush2.msra.mxu0 0.0
      %4907 = vmatprep.subr.mxu0 0.0
      %4908 = vmatpush2.msra.mxu0 0.0
      %4909 = vmatprep.subr.mxu0 0.0
      %4910 = vmatpush2.msra.mxu0 0.0
      %4911 = vmatprep.subr.mxu0 0.0
      %4912 = vmatpush2.msra.mxu0 0.0
      %4913 = vmatprep.subr.mxu0 0.0
      %4914 = vmatpush2.msra.mxu0 0.0
      %4915 = vmatprep.subr.mxu0 0.0
      %4916 = vmatpush2.msra.mxu0 0.0
      %4917 = vmatprep.subr.mxu0 0.0
      %4918 = vmatpush2.msra.mxu0 0.0
      %4919 = vmatprep.subr.mxu0 0.0
      %4920 = vmatpush2.msra.mxu0 0.0
      %4921 = vmatprep.subr.mxu0 0.0
      %4922 = vmatpush2.msra.mxu0 0.0
      %4923 = vmatprep.subr.mxu0 0.0
      %4924 = vmatpush2.msra.mxu0 0.0
      %4925 = vmatprep.subr.mxu0 0.0
      %4926 = vmatpush2.msra.mxu0 0.0
      %4927 = vmatprep.mubr.f32.mxu0 0.0
      %4928 = vmatmul.mubr.f32.gmra.mxu0 %v4861
      %v4929 = vpop.f32.mrf.mxu0
      %v4930 = vadd.f32 0.0, %v4929
      %v4931 = vpop.f32.mrf.mxu0
      %4932 = vdwg.mxu0
      %v4933 = vadd.f32 %v4860, %v4930
      %v4934 = vxor.u32 %v4933, 2147483648
      %v4935 = vmul.f32 %v4934, 1.442695
      %v4936 = vpow.pop %v4935
      %v4937 = vadd.f32 %v4936, 1.0
      %v4938 = vrcp.pop %v4937
      %v4939 = vmul.f32 1.0, %v4938
      %v4940 = vtanh.pop %v4933
      %v4941 = vmul.f32 %v4939, %v4845
      %4943 = vrot.lane.b32.xlu0 %v4940, 80
      %v4944 = vpop.permute.xlu0 %4943
      %v4946 = vmul.f32 %v4939, %v4944
      %4948 = vrot.lane.b32.xlu0 %v4946, 16
      %v4949 = vpop.permute.xlu0 %4948
      %v4951 = vadd.f32 %v4941, %v4949
      %v4952 = vtanh.pop %v4951
      %4954 = vrot.lane.b32.xlu0 %v4952, 16
      %v4955 = vpop.permute.xlu0 %4954
      %v4957 = vmul.f32 %v4939, %v4955
      %4959 = vrot.lane.b32.xlu0 %v4957, 96
      %v4960 = vpop.permute.xlu0 %4959
      %s4962 = scalar_lea.vmem [#allocation4], %s4858
      %4963 = vst.msk [vmem:[%s4962] sm:$0x1] %vm4432, %v4960
      %s4964 = sadd.s32 %s4030, 6
      %s4965 = scalar_lea.vmem [#allocation3], %s4964
      %v4966 = vld [vmem:[%s4965] sm:$0x1]
      %v4967 = vsel %vm4323, %v4960, 0
      %4969 = vmatprep.subr.mxu0 0.0
      %4970 = vmatpush1.msra.mxu0 0.0
      %4971 = vmatprep.subr.mxu0 0.0
      %4972 = vmatpush1.msra.mxu0 0.0
      %4973 = vmatprep.subr.mxu0 0.0
      %4974 = vmatpush1.msra.mxu0 0.0
      %4975 = vmatprep.subr.mxu0 0.0
      %4976 = vmatpush1.msra.mxu0 0.0
      %4977 = vmatprep.subr.mxu0 0.0
      %4978 = vmatpush1.msra.mxu0 0.0
      %4979 = vmatprep.subr.mxu0 0.0
      %4980 = vmatpush1.msra.mxu0 0.0
      %4981 = vmatprep.subr.mxu0 0.0
      %4982 = vmatpush1.msra.mxu0 0.0
      %4983 = vmatprep.subr.mxu0 0.0
      %4984 = vmatpush1.msra.mxu0 0.0
      %4985 = vmatprep.subr.mxu0 0.0
      %4986 = vmatpush1.msra.mxu0 0.0
      %4987 = vmatprep.subr.mxu0 0.0
      %4988 = vmatpush1.msra.mxu0 0.0
      %4989 = vmatprep.subr.mxu0 0.0
      %4990 = vmatpush1.msra.mxu0 0.0
      %4991 = vmatprep.subr.mxu0 0.0
      %4992 = vmatpush1.msra.mxu0 0.0
      %4993 = vmatprep.subr.mxu0 0.0
      %4994 = vmatpush1.msra.mxu0 0.0
      %4995 = vmatprep.subr.mxu0 0.0
      %4996 = vmatpush1.msra.mxu0 0.0
      %4997 = vmatprep.subr.mxu0 0.0
      %4998 = vmatpush1.msra.mxu0 %v3947
      %4999 = vmatprep.subr.mxu0 0.0
      %5000 = vmatpush1.msra.mxu0 %v3946
      %5001 = vmatprep.subr.mxu0 0.0
      %5002 = vmatpush2.msra.mxu0 0.0
      %5003 = vmatprep.subr.mxu0 0.0
      %5004 = vmatpush2.msra.mxu0 0.0
      %5005 = vmatprep.subr.mxu0 0.0
      %5006 = vmatpush2.msra.mxu0 0.0
      %5007 = vmatprep.subr.mxu0 0.0
      %5008 = vmatpush2.msra.mxu0 0.0
      %5009 = vmatprep.subr.mxu0 0.0
      %5010 = vmatpush2.msra.mxu0 0.0
      %5011 = vmatprep.subr.mxu0 0.0
      %5012 = vmatpush2.msra.mxu0 0.0
      %5013 = vmatprep.subr.mxu0 0.0
      %5014 = vmatpush2.msra.mxu0 0.0
      %5015 = vmatprep.subr.mxu0 0.0
      %5016 = vmatpush2.msra.mxu0 0.0
      %5017 = vmatprep.subr.mxu0 0.0
      %5018 = vmatpush2.msra.mxu0 0.0
      %5019 = vmatprep.subr.mxu0 0.0
      %5020 = vmatpush2.msra.mxu0 0.0
      %5021 = vmatprep.subr.mxu0 0.0
      %5022 = vmatpush2.msra.mxu0 0.0
      %5023 = vmatprep.subr.mxu0 0.0
      %5024 = vmatpush2.msra.mxu0 0.0
      %5025 = vmatprep.subr.mxu0 0.0
      %5026 = vmatpush2.msra.mxu0 0.0
      %5027 = vmatprep.subr.mxu0 0.0
      %5028 = vmatpush2.msra.mxu0 0.0
      %5029 = vmatprep.subr.mxu0 0.0
      %5030 = vmatpush2.msra.mxu0 0.0
      %5031 = vmatprep.subr.mxu0 0.0
      %5032 = vmatpush2.msra.mxu0 0.0
      %5033 = vmatprep.mubr.f32.mxu0 0.0
      %5034 = vmatmul.mubr.f32.gmra.mxu0 %v4967
      %v5035 = vpop.f32.mrf.mxu0
      %v5036 = vadd.f32 0.0, %v5035
      %v5037 = vpop.f32.mrf.mxu0
      %5038 = vdwg.mxu0
      %v5039 = vadd.f32 %v4966, %v5036
      %v5040 = vxor.u32 %v5039, 2147483648
      %v5041 = vmul.f32 %v5040, 1.442695
      %v5042 = vpow.pop %v5041
      %v5043 = vadd.f32 %v5042, 1.0
      %v5044 = vrcp.pop %v5043
      %v5045 = vmul.f32 1.0, %v5044
      %v5046 = vtanh.pop %v5039
      %v5047 = vmul.f32 %v5045, %v4951
      %5049 = vrot.lane.b32.xlu0 %v5046, 80
      %v5050 = vpop.permute.xlu0 %5049
      %v5052 = vmul.f32 %v5045, %v5050
      %5054 = vrot.lane.b32.xlu0 %v5052, 16
      %v5055 = vpop.permute.xlu0 %5054
      %v5057 = vadd.f32 %v5047, %v5055
      %v5058 = vtanh.pop %v5057
      %5060 = vrot.lane.b32.xlu0 %v5058, 16
      %v5061 = vpop.permute.xlu0 %5060
      %v5063 = vmul.f32 %v5045, %v5061
      %5065 = vrot.lane.b32.xlu0 %v5063, 96
      %v5066 = vpop.permute.xlu0 %5065
      %s5068 = scalar_lea.vmem [#allocation4], %s4964
      %5069 = vst.msk [vmem:[%s5068] sm:$0x1] %vm4432, %v5066
      %s5070 = sadd.s32 %s4030, 7
      %s5071 = scalar_lea.vmem [#allocation3], %s5070
      %v5072 = vld [vmem:[%s5071] sm:$0x1]
      %v5073 = vsel %vm4323, %v5066, 0
      %5075 = vmatprep.subr.mxu0 0.0
      %5076 = vmatpush1.msra.mxu0 0.0
      %5077 = vmatprep.subr.mxu0 0.0
      %5078 = vmatpush1.msra.mxu0 0.0
      %5079 = vmatprep.subr.mxu0 0.0
      %5080 = vmatpush1.msra.mxu0 0.0
      %5081 = vmatprep.subr.mxu0 0.0
      %5082 = vmatpush1.msra.mxu0 0.0
      %5083 = vmatprep.subr.mxu0 0.0
      %5084 = vmatpush1.msra.mxu0 0.0
      %5085 = vmatprep.subr.mxu0 0.0
      %5086 = vmatpush1.msra.mxu0 0.0
      %5087 = vmatprep.subr.mxu0 0.0
      %5088 = vmatpush1.msra.mxu0 0.0
      %5089 = vmatprep.subr.mxu0 0.0
      %5090 = vmatpush1.msra.mxu0 0.0
      %5091 = vmatprep.subr.mxu0 0.0
      %5092 = vmatpush1.msra.mxu0 0.0
      %5093 = vmatprep.subr.mxu0 0.0
      %5094 = vmatpush1.msra.mxu0 0.0
      %5095 = vmatprep.subr.mxu0 0.0
      %5096 = vmatpush1.msra.mxu0 0.0
      %5097 = vmatprep.subr.mxu0 0.0
      %5098 = vmatpush1.msra.mxu0 0.0
      %5099 = vmatprep.subr.mxu0 0.0
      %5100 = vmatpush1.msra.mxu0 0.0
      %5101 = vmatprep.subr.mxu0 0.0
      %5102 = vmatpush1.msra.mxu0 0.0
      %5103 = vmatprep.subr.mxu0 0.0
      %5104 = vmatpush1.msra.mxu0 %v3947
      %5105 = vmatprep.subr.mxu0 0.0
      %5106 = vmatpush1.msra.mxu0 %v3946
      %5107 = vmatprep.subr.mxu0 0.0
      %5108 = vmatpush2.msra.mxu0 0.0
      %5109 = vmatprep.subr.mxu0 0.0
      %5110 = vmatpush2.msra.mxu0 0.0
      %5111 = vmatprep.subr.mxu0 0.0
      %5112 = vmatpush2.msra.mxu0 0.0
      %5113 = vmatprep.subr.mxu0 0.0
      %5114 = vmatpush2.msra.mxu0 0.0
      %5115 = vmatprep.subr.mxu0 0.0
      %5116 = vmatpush2.msra.mxu0 0.0
      %5117 = vmatprep.subr.mxu0 0.0
      %5118 = vmatpush2.msra.mxu0 0.0
      %5119 = vmatprep.subr.mxu0 0.0
      %5120 = vmatpush2.msra.mxu0 0.0
      %5121 = vmatprep.subr.mxu0 0.0
      %5122 = vmatpush2.msra.mxu0 0.0
      %5123 = vmatprep.subr.mxu0 0.0
      %5124 = vmatpush2.msra.mxu0 0.0
      %5125 = vmatprep.subr.mxu0 0.0
      %5126 = vmatpush2.msra.mxu0 0.0
      %5127 = vmatprep.subr.mxu0 0.0
      %5128 = vmatpush2.msra.mxu0 0.0
      %5129 = vmatprep.subr.mxu0 0.0
      %5130 = vmatpush2.msra.mxu0 0.0
      %5131 = vmatprep.subr.mxu0 0.0
      %5132 = vmatpush2.msra.mxu0 0.0
      %5133 = vmatprep.subr.mxu0 0.0
      %5134 = vmatpush2.msra.mxu0 0.0
      %5135 = vmatprep.subr.mxu0 0.0
      %5136 = vmatpush2.msra.mxu0 0.0
      %5137 = vmatprep.subr.mxu0 0.0
      %5138 = vmatpush2.msra.mxu0 0.0
      %5139 = vmatprep.mubr.f32.mxu0 0.0
      %5140 = vmatmul.mubr.f32.gmra.mxu0 %v5073
      %v5141 = vpop.f32.mrf.mxu0
      %v5142 = vadd.f32 0.0, %v5141
      %v5143 = vpop.f32.mrf.mxu0
      %5144 = vdwg.mxu0
      %v5145 = vadd.f32 %v5072, %v5142
      %v5146 = vxor.u32 %v5145, 2147483648
      %v5147 = vmul.f32 %v5146, 1.442695
      %v5148 = vpow.pop %v5147
      %v5149 = vadd.f32 %v5148, 1.0
      %v5150 = vrcp.pop %v5149
      %v5151 = vmul.f32 1.0, %v5150
      %v5152 = vtanh.pop %v5145
      %v5153 = vmul.f32 %v5151, %v5057
      %5155 = vrot.lane.b32.xlu0 %v5152, 80
      %v5156 = vpop.permute.xlu0 %5155
      %v5158 = vmul.f32 %v5151, %v5156
      %5160 = vrot.lane.b32.xlu0 %v5158, 16
      %v5161 = vpop.permute.xlu0 %5160
      %v5163 = vadd.f32 %v5153, %v5161
      %v5164 = vtanh.pop %v5163
      %5166 = vrot.lane.b32.xlu0 %v5164, 16
      %v5167 = vpop.permute.xlu0 %5166
      %v5169 = vmul.f32 %v5151, %v5167
      %5171 = vrot.lane.b32.xlu0 %v5169, 96
      %v5172 = vpop.permute.xlu0 %5171
      %s5174 = scalar_lea.vmem [#allocation4], %s5070
      %5175 = vst.msk [vmem:[%s5174] sm:$0x1] %vm4432, %v5172
    $region126: #{_gat_fp_pallas.1} parent=1 // loop_footer
      %s4027 = sadd.s32 1, %s4023
    $region127: #{_gat_fp_pallas.1} parent=1 // loop_footer_branch
      %4022 = sbr.rel target = $region123
    $region128: #{_gat_fp_pallas.1} parent=1 // loop_exit
      _
    %v5176 = vld [vmem:[#allocation4] sm:$0xff]
    %v5177 = vld [vmem:[#allocation4 + $0x8] sm:$0xff]
    %v5178 = vld [vmem:[#allocation4 + $0x10] sm:$0xff]
    %v5179 = vld [vmem:[#allocation4 + $0x18] sm:$0xff]
    %v5180 = vld [vmem:[#allocation4 + $0x20] sm:$0xff]
    %v5181 = vld [vmem:[#allocation4 + $0x28] sm:$0xff]
    %v5182 = vld [vmem:[#allocation4 + $0x30] sm:$0xff]
    %v5183 = vld [vmem:[#allocation4 + $0x38] sm:$0xff]
    %v5184 = vld [vmem:[#allocation4 + $0x40] sm:$0xff]
    %v5185 = vld [vmem:[#allocation4 + $0x48] sm:$0xff]
    %v5186 = vld [vmem:[#allocation4 + $0x50] sm:$0xff]
    %v5187 = vld [vmem:[#allocation4 + $0x58] sm:$0xff]
    %v5188 = vld [vmem:[#allocation4 + $0x60] sm:$0xff]
    %v5189 = vld [vmem:[#allocation4 + $0x68] sm:$0xff]
    %v5190 = vld [vmem:[#allocation4 + $0x70] sm:$0xff]
    %v5191 = vld [vmem:[%s13] sm:$0xff]
    %v5192 = vld [vmem:[%s13 + $0x8] sm:$0xff]
    %v5193 = vld [vmem:[%s13 + $0x10] sm:$0xff]
    %v5194 = vld [vmem:[%s13 + $0x18] sm:$0xff]
    %v5195 = vld [vmem:[%s13 + $0x20] sm:$0xff]
    %v5196 = vld [vmem:[%s13 + $0x28] sm:$0xff]
    %v5197 = vld [vmem:[%s13 + $0x30] sm:$0xff]
    %v5198 = vld [vmem:[%s13 + $0x38] sm:$0xff]
    %v5199 = vld [vmem:[%s13 + $0x40] sm:$0xff]
    %v5200 = vld [vmem:[%s13 + $0x48] sm:$0xff]
    %v5201 = vld [vmem:[%s13 + $0x50] sm:$0xff]
    %v5202 = vld [vmem:[%s13 + $0x58] sm:$0xff]
    %v5203 = vld [vmem:[%s13 + $0x60] sm:$0xff]
    %v5204 = vld [vmem:[%s13 + $0x68] sm:$0xff]
    %v5205 = vld [vmem:[%s13 + $0x70] sm:$0xff]
    %v5207 = vsel %vm3693, %v5191, 0
    %v5210 = vsel %vm3693, %v5192, 0
    %v5213 = vsel %vm3693, %v5193, 0
    %v5216 = vsel %vm3693, %v5194, 0
    %v5219 = vsel %vm3693, %v5195, 0
    %v5222 = vsel %vm3693, %v5196, 0
    %v5225 = vsel %vm3693, %v5197, 0
    %v5228 = vsel %vm3693, %v5198, 0
    %v5231 = vsel %vm3693, %v5199, 0
    %v5234 = vsel %vm3693, %v5200, 0
    %v5237 = vsel %vm3693, %v5201, 0
    %v5240 = vsel %vm3693, %v5202, 0
    %v5243 = vsel %vm3693, %v5203, 0
    %v5246 = vsel %vm3693, %v5204, 0
    %v5249 = vsel %vm3693, %v5205, 0
    %5251 = vmatprep.subr.mxu0 0.0
    %5252 = vmatpush1.msra.mxu0 0.0
    %5253 = vmatprep.subr.mxu0 0.0
    %5254 = vmatpush1.msra.mxu0 %v5190
    %5255 = vmatprep.subr.mxu0 0.0
    %5256 = vmatpush1.msra.mxu0 %v5189
    %5257 = vmatprep.subr.mxu0 0.0
    %5258 = vmatpush1.msra.mxu0 %v5188
    %5259 = vmatprep.subr.mxu0 0.0
    %5260 = vmatpush1.msra.mxu0 %v5187
    %5261 = vmatprep.subr.mxu0 0.0
    %5262 = vmatpush1.msra.mxu0 %v5186
    %5263 = vmatprep.subr.mxu0 0.0
    %5264 = vmatpush1.msra.mxu0 %v5185
    %5265 = vmatprep.subr.mxu0 0.0
    %5266 = vmatpush1.msra.mxu0 %v5184
    %5267 = vmatprep.subr.mxu0 0.0
    %5268 = vmatpush1.msra.mxu0 %v5183
    %5269 = vmatprep.subr.mxu0 0.0
    %5270 = vmatpush1.msra.mxu0 %v5182
    %5271 = vmatprep.subr.mxu0 0.0
    %5272 = vmatpush1.msra.mxu0 %v5181
    %5273 = vmatprep.subr.mxu0 0.0
    %5274 = vmatpush1.msra.mxu0 %v5180
    %5275 = vmatprep.subr.mxu0 0.0
    %5276 = vmatpush1.msra.mxu0 %v5179
    %5277 = vmatprep.subr.mxu0 0.0
    %5278 = vmatpush1.msra.mxu0 %v5178
    %5279 = vmatprep.subr.mxu0 0.0
    %5280 = vmatpush1.msra.mxu0 %v5177
    %5281 = vmatprep.subr.mxu0 0.0
    %5282 = vmatpush1.msra.mxu0 %v5176
    %5283 = vmatprep.subr.mxu0 0.0
    %5284 = vmatpush2.msra.mxu0 0.0
    %5285 = vmatprep.subr.mxu0 0.0
    %5286 = vmatpush2.msra.mxu0 0.0
    %5287 = vmatprep.subr.mxu0 0.0
    %5288 = vmatpush2.msra.mxu0 0.0
    %5289 = vmatprep.subr.mxu0 0.0
    %5290 = vmatpush2.msra.mxu0 0.0
    %5291 = vmatprep.subr.mxu0 0.0
    %5292 = vmatpush2.msra.mxu0 0.0
    %5293 = vmatprep.subr.mxu0 0.0
    %5294 = vmatpush2.msra.mxu0 0.0
    %5295 = vmatprep.subr.mxu0 0.0
    %5296 = vmatpush2.msra.mxu0 0.0
    %5297 = vmatprep.subr.mxu0 0.0
    %5298 = vmatpush2.msra.mxu0 0.0
    %5299 = vmatprep.subr.mxu0 0.0
    %5300 = vmatpush2.msra.mxu0 0.0
    %5301 = vmatprep.subr.mxu0 0.0
    %5302 = vmatpush2.msra.mxu0 0.0
    %5303 = vmatprep.subr.mxu0 0.0
    %5304 = vmatpush2.msra.mxu0 0.0
    %5305 = vmatprep.subr.mxu0 0.0
    %5306 = vmatpush2.msra.mxu0 0.0
    %5307 = vmatprep.subr.mxu0 0.0
    %5308 = vmatpush2.msra.mxu0 0.0
    %5309 = vmatprep.subr.mxu0 0.0
    %5310 = vmatpush2.msra.mxu0 0.0
    %5311 = vmatprep.subr.mxu0 0.0
    %5312 = vmatpush2.msra.mxu0 0.0
    %5313 = vmatprep.subr.mxu0 0.0
    %5314 = vmatpush2.msra.mxu0 0.0
    %5315 = vmatprep.mubr.f32.mxu0 0.0
    %5316 = vmatmul.mubr.f32.gmra.mxu0 %v5207
    %v5317 = vpop.f32.mrf.mxu0
    %v5318 = vadd.f32 0.0, %v5317
    %v5319 = vpop.f32.mrf.mxu0
    %5320 = vmatprep.mubr.f32.mxu0 0.0
    %5321 = vmatmul.mubr.f32.gmra.mxu0 %v5210
    %v5322 = vpop.f32.mrf.mxu0
    %v5323 = vadd.f32 0.0, %v5322
    %v5324 = vpop.f32.mrf.mxu0
    %5325 = vmatprep.mubr.f32.mxu0 0.0
    %5326 = vmatmul.mubr.f32.gmra.mxu0 %v5213
    %v5327 = vpop.f32.mrf.mxu0
    %v5328 = vadd.f32 0.0, %v5327
    %v5329 = vpop.f32.mrf.mxu0
    %5330 = vmatprep.mubr.f32.mxu0 0.0
    %5331 = vmatmul.mubr.f32.gmra.mxu0 %v5216
    %v5332 = vpop.f32.mrf.mxu0
    %v5333 = vadd.f32 0.0, %v5332
    %v5334 = vpop.f32.mrf.mxu0
    %5335 = vmatprep.mubr.f32.mxu0 0.0
    %5336 = vmatmul.mubr.f32.gmra.mxu0 %v5219
    %v5337 = vpop.f32.mrf.mxu0
    %v5338 = vadd.f32 0.0, %v5337
    %v5339 = vpop.f32.mrf.mxu0
    %5340 = vmatprep.mubr.f32.mxu0 0.0
    %5341 = vmatmul.mubr.f32.gmra.mxu0 %v5222
    %v5342 = vpop.f32.mrf.mxu0
    %v5343 = vadd.f32 0.0, %v5342
    %v5344 = vpop.f32.mrf.mxu0
    %5345 = vmatprep.mubr.f32.mxu0 0.0
    %5346 = vmatmul.mubr.f32.gmra.mxu0 %v5225
    %v5347 = vpop.f32.mrf.mxu0
    %v5348 = vadd.f32 0.0, %v5347
    %v5349 = vpop.f32.mrf.mxu0
    %5350 = vmatprep.mubr.f32.mxu0 0.0
    %5351 = vmatmul.mubr.f32.gmra.mxu0 %v5228
    %v5352 = vpop.f32.mrf.mxu0
    %v5353 = vadd.f32 0.0, %v5352
    %v5354 = vpop.f32.mrf.mxu0
    %5355 = vmatprep.mubr.f32.mxu0 0.0
    %5356 = vmatmul.mubr.f32.gmra.mxu0 %v5231
    %v5357 = vpop.f32.mrf.mxu0
    %v5358 = vadd.f32 0.0, %v5357
    %v5359 = vpop.f32.mrf.mxu0
    %5360 = vmatprep.mubr.f32.mxu0 0.0
    %5361 = vmatmul.mubr.f32.gmra.mxu0 %v5234
    %v5362 = vpop.f32.mrf.mxu0
    %v5363 = vadd.f32 0.0, %v5362
    %v5364 = vpop.f32.mrf.mxu0
    %5365 = vmatprep.mubr.f32.mxu0 0.0
    %5366 = vmatmul.mubr.f32.gmra.mxu0 %v5237
    %v5367 = vpop.f32.mrf.mxu0
    %v5368 = vadd.f32 0.0, %v5367
    %v5369 = vpop.f32.mrf.mxu0
    %5370 = vmatprep.mubr.f32.mxu0 0.0
    %5371 = vmatmul.mubr.f32.gmra.mxu0 %v5240
    %v5372 = vpop.f32.mrf.mxu0
    %v5373 = vadd.f32 0.0, %v5372
    %v5374 = vpop.f32.mrf.mxu0
    %5375 = vmatprep.mubr.f32.mxu0 0.0
    %5376 = vmatmul.mubr.f32.gmra.mxu0 %v5243
    %v5377 = vpop.f32.mrf.mxu0
    %v5378 = vadd.f32 0.0, %v5377
    %v5379 = vpop.f32.mrf.mxu0
    %5380 = vmatprep.mubr.f32.mxu0 0.0
    %5381 = vmatmul.mubr.f32.gmra.mxu0 %v5246
    %v5382 = vpop.f32.mrf.mxu0
    %v5383 = vadd.f32 0.0, %v5382
    %v5384 = vpop.f32.mrf.mxu0
    %5385 = vmatprep.mubr.f32.mxu0 0.0
    %5386 = vmatmul.mubr.f32.gmra.mxu0 %v5249
    %v5387 = vpop.f32.mrf.mxu0
    %v5388 = vadd.f32 0.0, %v5387
    %v5389 = vpop.f32.mrf.mxu0
    %5390 = vdwg.mxu0
    %v5391 = vld [vmem:[#allocation5] sm:$0xff]
    %v5392 = vld [vmem:[#allocation5 + $0x8] sm:$0xff]
    %v5393 = vld [vmem:[#allocation5 + $0x10] sm:$0xff]
    %v5394 = vld [vmem:[#allocation5 + $0x18] sm:$0xff]
    %v5395 = vld [vmem:[#allocation5 + $0x20] sm:$0xff]
    %v5396 = vld [vmem:[#allocation5 + $0x28] sm:$0xff]
    %v5397 = vld [vmem:[#allocation5 + $0x30] sm:$0xff]
    %v5398 = vld [vmem:[#allocation5 + $0x38] sm:$0xff]
    %v5399 = vld [vmem:[#allocation5 + $0x40] sm:$0xff]
    %v5400 = vld [vmem:[#allocation5 + $0x48] sm:$0xff]
    %v5401 = vld [vmem:[#allocation5 + $0x50] sm:$0xff]
    %v5402 = vld [vmem:[#allocation5 + $0x58] sm:$0xff]
    %v5403 = vld [vmem:[#allocation5 + $0x60] sm:$0xff]
    %v5404 = vld [vmem:[#allocation5 + $0x68] sm:$0xff]
    %v5405 = vld [vmem:[#allocation5 + $0x70] sm:$0xff]
    %v5406 = vld [vmem:[%s19] sm:$0xff]
    %v5407 = vld [vmem:[%s19 + $0x8] sm:$0xff]
    %v5408 = vld [vmem:[%s19 + $0x10] sm:$0xff]
    %vm5409 = vcmask 64512
    %v5411 = vsel %vm5409, %v5176, 0
    %v5414 = vsel %vm5409, %v5177, 0
    %v5417 = vsel %vm5409, %v5178, 0
    %v5420 = vsel %vm5409, %v5179, 0
    %v5423 = vsel %vm5409, %v5180, 0
    %v5426 = vsel %vm5409, %v5181, 0
    %v5429 = vsel %vm5409, %v5182, 0
    %v5432 = vsel %vm5409, %v5183, 0
    %v5435 = vsel %vm5409, %v5184, 0
    %v5438 = vsel %vm5409, %v5185, 0
    %v5441 = vsel %vm5409, %v5186, 0
    %v5444 = vsel %vm5409, %v5187, 0
    %v5447 = vsel %vm5409, %v5188, 0
    %v5450 = vsel %vm5409, %v5189, 0
    %v5453 = vsel %vm5409, %v5190, 0
    %5455 = vmatprep.subr.mxu0 0.0
    %5456 = vmatpush1.msra.mxu0 0.0
    %5457 = vmatprep.subr.mxu0 0.0
    %5458 = vmatpush1.msra.mxu0 0.0
    %5459 = vmatprep.subr.mxu0 0.0
    %5460 = vmatpush1.msra.mxu0 0.0
    %5461 = vmatprep.subr.mxu0 0.0
    %5462 = vmatpush1.msra.mxu0 0.0
    %5463 = vmatprep.subr.mxu0 0.0
    %5464 = vmatpush1.msra.mxu0 0.0
    %5465 = vmatprep.subr.mxu0 0.0
    %5466 = vmatpush1.msra.mxu0 0.0
    %5467 = vmatprep.subr.mxu0 0.0
    %5468 = vmatpush1.msra.mxu0 0.0
    %5469 = vmatprep.subr.mxu0 0.0
    %5470 = vmatpush1.msra.mxu0 0.0
    %5471 = vmatprep.subr.mxu0 0.0
    %5472 = vmatpush1.msra.mxu0 0.0
    %5473 = vmatprep.subr.mxu0 0.0
    %5474 = vmatpush1.msra.mxu0 0.0
    %5475 = vmatprep.subr.mxu0 0.0
    %5476 = vmatpush1.msra.mxu0 0.0
    %5477 = vmatprep.subr.mxu0 0.0
    %5478 = vmatpush1.msra.mxu0 0.0
    %5479 = vmatprep.subr.mxu0 0.0
    %5480 = vmatpush1.msra.mxu0 0.0
    %5481 = vmatprep.subr.mxu0 0.0
    %5482 = vmatpush1.msra.mxu0 0.0
    %5483 = vmatprep.subr.mxu0 0.0
    %5484 = vmatpush1.msra.mxu0 0.0
    %5485 = vmatprep.subr.mxu0 0.0
    %5486 = vmatpush1.msra.mxu0 %v5408
    %5487 = vmatprep.subr.mxu0 0.0
    %5488 = vmatpush2.msra.mxu0 0.0
    %5489 = vmatprep.subr.mxu0 0.0
    %5490 = vmatpush2.msra.mxu0 0.0
    %5491 = vmatprep.subr.mxu0 0.0
    %5492 = vmatpush2.msra.mxu0 0.0
    %5493 = vmatprep.subr.mxu0 0.0
    %5494 = vmatpush2.msra.mxu0 0.0
    %5495 = vmatprep.subr.mxu0 0.0
    %5496 = vmatpush2.msra.mxu0 0.0
    %5497 = vmatprep.subr.mxu0 0.0
    %5498 = vmatpush2.msra.mxu0 0.0
    %5499 = vmatprep.subr.mxu0 0.0
    %5500 = vmatpush2.msra.mxu0 0.0
    %5501 = vmatprep.subr.mxu0 0.0
    %5502 = vmatpush2.msra.mxu0 0.0
    %5503 = vmatprep.subr.mxu0 0.0
    %5504 = vmatpush2.msra.mxu0 0.0
    %5505 = vmatprep.subr.mxu0 0.0
    %5506 = vmatpush2.msra.mxu0 0.0
    %5507 = vmatprep.subr.mxu0 0.0
    %5508 = vmatpush2.msra.mxu0 0.0
    %5509 = vmatprep.subr.mxu0 0.0
    %5510 = vmatpush2.msra.mxu0 0.0
    %5511 = vmatprep.subr.mxu0 0.0
    %5512 = vmatpush2.msra.mxu0 0.0
    %5513 = vmatprep.subr.mxu0 0.0
    %5514 = vmatpush2.msra.mxu0 0.0
    %5515 = vmatprep.subr.mxu0 0.0
    %5516 = vmatpush2.msra.mxu0 0.0
    %5517 = vmatprep.subr.mxu0 0.0
    %5518 = vmatpush2.msra.mxu0 0.0
    %5519 = vmatprep.mubr.f32.mxu0 0.0
    %5520 = vmatmul.mubr.f32.gmra.mxu0 %v5411
    %v5521 = vpop.f32.mrf.mxu0
    %v5522 = vadd.f32 0.0, %v5521
    %v5523 = vpop.f32.mrf.mxu0
    %5524 = vmatprep.mubr.f32.mxu0 0.0
    %5525 = vmatmul.mubr.f32.gmra.mxu0 %v5414
    %v5526 = vpop.f32.mrf.mxu0
    %v5527 = vadd.f32 0.0, %v5526
    %v5528 = vpop.f32.mrf.mxu0
    %5529 = vmatprep.mubr.f32.mxu0 0.0
    %5530 = vmatmul.mubr.f32.gmra.mxu0 %v5417
    %v5531 = vpop.f32.mrf.mxu0
    %v5532 = vadd.f32 0.0, %v5531
    %v5533 = vpop.f32.mrf.mxu0
    %5534 = vmatprep.mubr.f32.mxu0 0.0
    %5535 = vmatmul.mubr.f32.gmra.mxu0 %v5420
    %v5536 = vpop.f32.mrf.mxu0
    %v5537 = vadd.f32 0.0, %v5536
    %v5538 = vpop.f32.mrf.mxu0
    %5539 = vmatprep.mubr.f32.mxu0 0.0
    %5540 = vmatmul.mubr.f32.gmra.mxu0 %v5423
    %v5541 = vpop.f32.mrf.mxu0
    %v5542 = vadd.f32 0.0, %v5541
    %v5543 = vpop.f32.mrf.mxu0
    %5544 = vmatprep.mubr.f32.mxu0 0.0
    %5545 = vmatmul.mubr.f32.gmra.mxu0 %v5426
    %v5546 = vpop.f32.mrf.mxu0
    %v5547 = vadd.f32 0.0, %v5546
    %v5548 = vpop.f32.mrf.mxu0
    %5549 = vmatprep.mubr.f32.mxu0 0.0
    %5550 = vmatmul.mubr.f32.gmra.mxu0 %v5429
    %v5551 = vpop.f32.mrf.mxu0
    %v5552 = vadd.f32 0.0, %v5551
    %v5553 = vpop.f32.mrf.mxu0
    %5554 = vmatprep.mubr.f32.mxu0 0.0
    %5555 = vmatmul.mubr.f32.gmra.mxu0 %v5432
    %v5556 = vpop.f32.mrf.mxu0
    %v5557 = vadd.f32 0.0, %v5556
    %v5558 = vpop.f32.mrf.mxu0
    %5559 = vmatprep.mubr.f32.mxu0 0.0
    %5560 = vmatmul.mubr.f32.gmra.mxu0 %v5435
    %v5561 = vpop.f32.mrf.mxu0
    %v5562 = vadd.f32 0.0, %v5561
    %v5563 = vpop.f32.mrf.mxu0
    %5564 = vmatprep.mubr.f32.mxu0 0.0
    %5565 = vmatmul.mubr.f32.gmra.mxu0 %v5438
    %v5566 = vpop.f32.mrf.mxu0
    %v5567 = vadd.f32 0.0, %v5566
    %v5568 = vpop.f32.mrf.mxu0
    %5569 = vmatprep.mubr.f32.mxu0 0.0
    %5570 = vmatmul.mubr.f32.gmra.mxu0 %v5441
    %v5571 = vpop.f32.mrf.mxu0
    %v5572 = vadd.f32 0.0, %v5571
    %v5573 = vpop.f32.mrf.mxu0
    %5574 = vmatprep.mubr.f32.mxu0 0.0
    %5575 = vmatmul.mubr.f32.gmra.mxu0 %v5444
    %v5576 = vpop.f32.mrf.mxu0
    %v5577 = vadd.f32 0.0, %v5576
    %v5578 = vpop.f32.mrf.mxu0
    %5579 = vmatprep.mubr.f32.mxu0 0.0
    %5580 = vmatmul.mubr.f32.gmra.mxu0 %v5447
    %v5581 = vpop.f32.mrf.mxu0
    %v5582 = vadd.f32 0.0, %v5581
    %v5583 = vpop.f32.mrf.mxu0
    %5584 = vmatprep.mubr.f32.mxu0 0.0
    %5585 = vmatmul.mubr.f32.gmra.mxu0 %v5450
    %v5586 = vpop.f32.mrf.mxu0
    %v5587 = vadd.f32 0.0, %v5586
    %v5588 = vpop.f32.mrf.mxu0
    %5589 = vmatprep.mubr.f32.mxu0 0.0
    %5590 = vmatmul.mubr.f32.gmra.mxu0 %v5453
    %v5591 = vpop.f32.mrf.mxu0
    %v5592 = vadd.f32 0.0, %v5591
    %v5593 = vpop.f32.mrf.mxu0
    %5594 = vdwg.mxu0
    %vm5595 = vcmask 130048
    %v5597 = vsel %vm5595, %v5391, 0
    %v5600 = vsel %vm5595, %v5392, 0
    %v5603 = vsel %vm5595, %v5393, 0
    %v5606 = vsel %vm5595, %v5394, 0
    %v5609 = vsel %vm5595, %v5395, 0
    %v5612 = vsel %vm5595, %v5396, 0
    %v5615 = vsel %vm5595, %v5397, 0
    %v5618 = vsel %vm5595, %v5398, 0
    %v5621 = vsel %vm5595, %v5399, 0
    %v5624 = vsel %vm5595, %v5400, 0
    %v5627 = vsel %vm5595, %v5401, 0
    %v5630 = vsel %vm5595, %v5402, 0
    %v5633 = vsel %vm5595, %v5403, 0
    %v5636 = vsel %vm5595, %v5404, 0
    %v5639 = vsel %vm5595, %v5405, 0
    %5641 = vmatprep.subr.mxu0 0.0
    %5642 = vmatpush1.msra.mxu0 0.0
    %5643 = vmatprep.subr.mxu0 0.0
    %5644 = vmatpush1.msra.mxu0 0.0
    %5645 = vmatprep.subr.mxu0 0.0
    %5646 = vmatpush1.msra.mxu0 0.0
    %5647 = vmatprep.subr.mxu0 0.0
    %5648 = vmatpush1.msra.mxu0 0.0
    %5649 = vmatprep.subr.mxu0 0.0
    %5650 = vmatpush1.msra.mxu0 0.0
    %5651 = vmatprep.subr.mxu0 0.0
    %5652 = vmatpush1.msra.mxu0 0.0
    %5653 = vmatprep.subr.mxu0 0.0
    %5654 = vmatpush1.msra.mxu0 0.0
    %5655 = vmatprep.subr.mxu0 0.0
    %5656 = vmatpush1.msra.mxu0 0.0
    %5657 = vmatprep.subr.mxu0 0.0
    %5658 = vmatpush1.msra.mxu0 0.0
    %5659 = vmatprep.subr.mxu0 0.0
    %5660 = vmatpush1.msra.mxu0 0.0
    %5661 = vmatprep.subr.mxu0 0.0
    %5662 = vmatpush1.msra.mxu0 0.0
    %5663 = vmatprep.subr.mxu0 0.0
    %5664 = vmatpush1.msra.mxu0 0.0
    %5665 = vmatprep.subr.mxu0 0.0
    %5666 = vmatpush1.msra.mxu0 0.0
    %5667 = vmatprep.subr.mxu0 0.0
    %5668 = vmatpush1.msra.mxu0 0.0
    %5669 = vmatprep.subr.mxu0 0.0
    %5670 = vmatpush1.msra.mxu0 %v5407
    %5671 = vmatprep.subr.mxu0 0.0
    %5672 = vmatpush1.msra.mxu0 %v5406
    %5673 = vmatprep.subr.mxu0 0.0
    %5674 = vmatpush2.msra.mxu0 0.0
    %5675 = vmatprep.subr.mxu0 0.0
    %5676 = vmatpush2.msra.mxu0 0.0
    %5677 = vmatprep.subr.mxu0 0.0
    %5678 = vmatpush2.msra.mxu0 0.0
    %5679 = vmatprep.subr.mxu0 0.0
    %5680 = vmatpush2.msra.mxu0 0.0
    %5681 = vmatprep.subr.mxu0 0.0
    %5682 = vmatpush2.msra.mxu0 0.0
    %5683 = vmatprep.subr.mxu0 0.0
    %5684 = vmatpush2.msra.mxu0 0.0
    %5685 = vmatprep.subr.mxu0 0.0
    %5686 = vmatpush2.msra.mxu0 0.0
    %5687 = vmatprep.subr.mxu0 0.0
    %5688 = vmatpush2.msra.mxu0 0.0
    %5689 = vmatprep.subr.mxu0 0.0
    %5690 = vmatpush2.msra.mxu0 0.0
    %5691 = vmatprep.subr.mxu0 0.0
    %5692 = vmatpush2.msra.mxu0 0.0
    %5693 = vmatprep.subr.mxu0 0.0
    %5694 = vmatpush2.msra.mxu0 0.0
    %5695 = vmatprep.subr.mxu0 0.0
    %5696 = vmatpush2.msra.mxu0 0.0
    %5697 = vmatprep.subr.mxu0 0.0
    %5698 = vmatpush2.msra.mxu0 0.0
    %5699 = vmatprep.subr.mxu0 0.0
    %5700 = vmatpush2.msra.mxu0 0.0
    %5701 = vmatprep.subr.mxu0 0.0
    %5702 = vmatpush2.msra.mxu0 0.0
    %5703 = vmatprep.subr.mxu0 0.0
    %5704 = vmatpush2.msra.mxu0 0.0
    %5705 = vmatprep.mubr.f32.mxu0 0.0
    %5706 = vmatmul.mubr.f32.gmra.mxu0 %v5597
    %v5707 = vpop.f32.mrf.mxu0
    %v5708 = vadd.f32 %v5522, %v5707
    %v5709 = vpop.f32.mrf.mxu0
    %5710 = vmatprep.mubr.f32.mxu0 0.0
    %5711 = vmatmul.mubr.f32.gmra.mxu0 %v5600
    %v5712 = vpop.f32.mrf.mxu0
    %v5713 = vadd.f32 %v5527, %v5712
    %v5714 = vpop.f32.mrf.mxu0
    %5715 = vmatprep.mubr.f32.mxu0 0.0
    %5716 = vmatmul.mubr.f32.gmra.mxu0 %v5603
    %v5717 = vpop.f32.mrf.mxu0
    %v5718 = vadd.f32 %v5532, %v5717
    %v5719 = vpop.f32.mrf.mxu0
    %5720 = vmatprep.mubr.f32.mxu0 0.0
    %5721 = vmatmul.mubr.f32.gmra.mxu0 %v5606
    %v5722 = vpop.f32.mrf.mxu0
    %v5723 = vadd.f32 %v5537, %v5722
    %v5724 = vpop.f32.mrf.mxu0
    %5725 = vmatprep.mubr.f32.mxu0 0.0
    %5726 = vmatmul.mubr.f32.gmra.mxu0 %v5609
    %v5727 = vpop.f32.mrf.mxu0
    %v5728 = vadd.f32 %v5542, %v5727
    %v5729 = vpop.f32.mrf.mxu0
    %5730 = vmatprep.mubr.f32.mxu0 0.0
    %5731 = vmatmul.mubr.f32.gmra.mxu0 %v5612
    %v5732 = vpop.f32.mrf.mxu0
    %v5733 = vadd.f32 %v5547, %v5732
    %v5734 = vpop.f32.mrf.mxu0
    %5735 = vmatprep.mubr.f32.mxu0 0.0
    %5736 = vmatmul.mubr.f32.gmra.mxu0 %v5615
    %v5737 = vpop.f32.mrf.mxu0
    %v5738 = vadd.f32 %v5552, %v5737
    %v5739 = vpop.f32.mrf.mxu0
    %5740 = vmatprep.mubr.f32.mxu0 0.0
    %5741 = vmatmul.mubr.f32.gmra.mxu0 %v5618
    %v5742 = vpop.f32.mrf.mxu0
    %v5743 = vadd.f32 %v5557, %v5742
    %v5744 = vpop.f32.mrf.mxu0
    %5745 = vmatprep.mubr.f32.mxu0 0.0
    %5746 = vmatmul.mubr.f32.gmra.mxu0 %v5621
    %v5747 = vpop.f32.mrf.mxu0
    %v5748 = vadd.f32 %v5562, %v5747
    %v5749 = vpop.f32.mrf.mxu0
    %5750 = vmatprep.mubr.f32.mxu0 0.0
    %5751 = vmatmul.mubr.f32.gmra.mxu0 %v5624
    %v5752 = vpop.f32.mrf.mxu0
    %v5753 = vadd.f32 %v5567, %v5752
    %v5754 = vpop.f32.mrf.mxu0
    %5755 = vmatprep.mubr.f32.mxu0 0.0
    %5756 = vmatmul.mubr.f32.gmra.mxu0 %v5627
    %v5757 = vpop.f32.mrf.mxu0
    %v5758 = vadd.f32 %v5572, %v5757
    %v5759 = vpop.f32.mrf.mxu0
    %5760 = vmatprep.mubr.f32.mxu0 0.0
    %5761 = vmatmul.mubr.f32.gmra.mxu0 %v5630
    %v5762 = vpop.f32.mrf.mxu0
    %v5763 = vadd.f32 %v5577, %v5762
    %v5764 = vpop.f32.mrf.mxu0
    %5765 = vmatprep.mubr.f32.mxu0 0.0
    %5766 = vmatmul.mubr.f32.gmra.mxu0 %v5633
    %v5767 = vpop.f32.mrf.mxu0
    %v5768 = vadd.f32 %v5582, %v5767
    %v5769 = vpop.f32.mrf.mxu0
    %5770 = vmatprep.mubr.f32.mxu0 0.0
    %5771 = vmatmul.mubr.f32.gmra.mxu0 %v5636
    %v5772 = vpop.f32.mrf.mxu0
    %v5773 = vadd.f32 %v5587, %v5772
    %v5774 = vpop.f32.mrf.mxu0
    %5775 = vmatprep.mubr.f32.mxu0 0.0
    %5776 = vmatmul.mubr.f32.gmra.mxu0 %v5639
    %v5777 = vpop.f32.mrf.mxu0
    %v5778 = vadd.f32 %v5592, %v5777
    %v5779 = vpop.f32.mrf.mxu0
    %5780 = vdwg.mxu0
    %v5781 = vld [vmem:[%s19 + $0x18] sm:$0xff]
    %5797 = vrot.lane.b32.xlu0 %v5318, 120
    %v5798 = vpop.permute.xlu0 %5797
    %5799 = vrot.lane.b32.xlu0 %v5323, 120
    %v5800 = vpop.permute.xlu0 %5799
    %5801 = vrot.lane.b32.xlu0 %v5328, 120
    %v5802 = vpop.permute.xlu0 %5801
    %5803 = vrot.lane.b32.xlu0 %v5333, 120
    %v5804 = vpop.permute.xlu0 %5803
    %5805 = vrot.lane.b32.xlu0 %v5338, 120
    %v5806 = vpop.permute.xlu0 %5805
    %5807 = vrot.lane.b32.xlu0 %v5343, 120
    %v5808 = vpop.permute.xlu0 %5807
    %5809 = vrot.lane.b32.xlu0 %v5348, 120
    %v5810 = vpop.permute.xlu0 %5809
    %5811 = vrot.lane.b32.xlu0 %v5353, 120
    %v5812 = vpop.permute.xlu0 %5811
    %5813 = vrot.lane.b32.xlu0 %v5358, 120
    %v5814 = vpop.permute.xlu0 %5813
    %5815 = vrot.lane.b32.xlu0 %v5363, 120
    %v5816 = vpop.permute.xlu0 %5815
    %5817 = vrot.lane.b32.xlu0 %v5368, 120
    %v5818 = vpop.permute.xlu0 %5817
    %5819 = vrot.lane.b32.xlu0 %v5373, 120
    %v5820 = vpop.permute.xlu0 %5819
    %5821 = vrot.lane.b32.xlu0 %v5378, 120
    %v5822 = vpop.permute.xlu0 %5821
    %5823 = vrot.lane.b32.xlu0 %v5383, 120
    %v5824 = vpop.permute.xlu0 %5823
    %5825 = vrot.lane.b32.xlu0 %v5388, 120
    %v5826 = vpop.permute.xlu0 %5825
    %v5827 = vsel %vm5409, %v5798, 0
    %v5829 = vsel %vm5409, %v5800, 0
    %v5831 = vsel %vm5409, %v5802, 0
    %v5833 = vsel %vm5409, %v5804, 0
    %v5835 = vsel %vm5409, %v5806, 0
    %v5837 = vsel %vm5409, %v5808, 0
    %v5839 = vsel %vm5409, %v5810, 0
    %v5841 = vsel %vm5409, %v5812, 0
    %v5843 = vsel %vm5409, %v5814, 0
    %v5845 = vsel %vm5409, %v5816, 0
    %v5847 = vsel %vm5409, %v5818, 0
    %v5849 = vsel %vm5409, %v5820, 0
    %v5851 = vsel %vm5409, %v5822, 0
    %v5853 = vsel %vm5409, %v5824, 0
    %v5855 = vsel %vm5409, %v5826, 0
    %5857 = vmatprep.subr.mxu0 0.0
    %5858 = vmatpush1.msra.mxu0 0.0
    %5859 = vmatprep.subr.mxu0 0.0
    %5860 = vmatpush1.msra.mxu0 0.0
    %5861 = vmatprep.subr.mxu0 0.0
    %5862 = vmatpush1.msra.mxu0 0.0
    %5863 = vmatprep.subr.mxu0 0.0
    %5864 = vmatpush1.msra.mxu0 0.0
    %5865 = vmatprep.subr.mxu0 0.0
    %5866 = vmatpush1.msra.mxu0 0.0
    %5867 = vmatprep.subr.mxu0 0.0
    %5868 = vmatpush1.msra.mxu0 0.0
    %5869 = vmatprep.subr.mxu0 0.0
    %5870 = vmatpush1.msra.mxu0 0.0
    %5871 = vmatprep.subr.mxu0 0.0
    %5872 = vmatpush1.msra.mxu0 0.0
    %5873 = vmatprep.subr.mxu0 0.0
    %5874 = vmatpush1.msra.mxu0 0.0
    %5875 = vmatprep.subr.mxu0 0.0
    %5876 = vmatpush1.msra.mxu0 0.0
    %5877 = vmatprep.subr.mxu0 0.0
    %5878 = vmatpush1.msra.mxu0 0.0
    %5879 = vmatprep.subr.mxu0 0.0
    %5880 = vmatpush1.msra.mxu0 0.0
    %5881 = vmatprep.subr.mxu0 0.0
    %5882 = vmatpush1.msra.mxu0 0.0
    %5883 = vmatprep.subr.mxu0 0.0
    %5884 = vmatpush1.msra.mxu0 0.0
    %5885 = vmatprep.subr.mxu0 0.0
    %5886 = vmatpush1.msra.mxu0 0.0
    %5887 = vmatprep.subr.mxu0 0.0
    %5888 = vmatpush1.msra.mxu0 %v5781
    %5889 = vmatprep.subr.mxu0 0.0
    %5890 = vmatpush2.msra.mxu0 0.0
    %5891 = vmatprep.subr.mxu0 0.0
    %5892 = vmatpush2.msra.mxu0 0.0
    %5893 = vmatprep.subr.mxu0 0.0
    %5894 = vmatpush2.msra.mxu0 0.0
    %5895 = vmatprep.subr.mxu0 0.0
    %5896 = vmatpush2.msra.mxu0 0.0
    %5897 = vmatprep.subr.mxu0 0.0
    %5898 = vmatpush2.msra.mxu0 0.0
    %5899 = vmatprep.subr.mxu0 0.0
    %5900 = vmatpush2.msra.mxu0 0.0
    %5901 = vmatprep.subr.mxu0 0.0
    %5902 = vmatpush2.msra.mxu0 0.0
    %5903 = vmatprep.subr.mxu0 0.0
    %5904 = vmatpush2.msra.mxu0 0.0
    %5905 = vmatprep.subr.mxu0 0.0
    %5906 = vmatpush2.msra.mxu0 0.0
    %5907 = vmatprep.subr.mxu0 0.0
    %5908 = vmatpush2.msra.mxu0 0.0
    %5909 = vmatprep.subr.mxu0 0.0
    %5910 = vmatpush2.msra.mxu0 0.0
    %5911 = vmatprep.subr.mxu0 0.0
    %5912 = vmatpush2.msra.mxu0 0.0
    %5913 = vmatprep.subr.mxu0 0.0
    %5914 = vmatpush2.msra.mxu0 0.0
    %5915 = vmatprep.subr.mxu0 0.0
    %5916 = vmatpush2.msra.mxu0 0.0
    %5917 = vmatprep.subr.mxu0 0.0
    %5918 = vmatpush2.msra.mxu0 0.0
    %5919 = vmatprep.subr.mxu0 0.0
    %5920 = vmatpush2.msra.mxu0 0.0
    %5921 = vmatprep.mubr.f32.mxu0 0.0
    %5922 = vmatmul.mubr.f32.gmra.mxu0 %v5827
    %v5923 = vpop.f32.mrf.mxu0
    %v5924 = vadd.f32 0.0, %v5923
    %v5925 = vpop.f32.mrf.mxu0
    %5926 = vmatprep.mubr.f32.mxu0 0.0
    %5927 = vmatmul.mubr.f32.gmra.mxu0 %v5829
    %v5928 = vpop.f32.mrf.mxu0
    %v5929 = vadd.f32 0.0, %v5928
    %v5930 = vpop.f32.mrf.mxu0
    %5931 = vmatprep.mubr.f32.mxu0 0.0
    %5932 = vmatmul.mubr.f32.gmra.mxu0 %v5831
    %v5933 = vpop.f32.mrf.mxu0
    %v5934 = vadd.f32 0.0, %v5933
    %v5935 = vpop.f32.mrf.mxu0
    %5936 = vmatprep.mubr.f32.mxu0 0.0
    %5937 = vmatmul.mubr.f32.gmra.mxu0 %v5833
    %v5938 = vpop.f32.mrf.mxu0
    %v5939 = vadd.f32 0.0, %v5938
    %v5940 = vpop.f32.mrf.mxu0
    %5941 = vmatprep.mubr.f32.mxu0 0.0
    %5942 = vmatmul.mubr.f32.gmra.mxu0 %v5835
    %v5943 = vpop.f32.mrf.mxu0
    %v5944 = vadd.f32 0.0, %v5943
    %v5945 = vpop.f32.mrf.mxu0
    %5946 = vmatprep.mubr.f32.mxu0 0.0
    %5947 = vmatmul.mubr.f32.gmra.mxu0 %v5837
    %v5948 = vpop.f32.mrf.mxu0
    %v5949 = vadd.f32 0.0, %v5948
    %v5950 = vpop.f32.mrf.mxu0
    %5951 = vmatprep.mubr.f32.mxu0 0.0
    %5952 = vmatmul.mubr.f32.gmra.mxu0 %v5839
    %v5953 = vpop.f32.mrf.mxu0
    %v5954 = vadd.f32 0.0, %v5953
    %v5955 = vpop.f32.mrf.mxu0
    %5956 = vmatprep.mubr.f32.mxu0 0.0
    %5957 = vmatmul.mubr.f32.gmra.mxu0 %v5841
    %v5958 = vpop.f32.mrf.mxu0
    %v5959 = vadd.f32 0.0, %v5958
    %v5960 = vpop.f32.mrf.mxu0
    %5961 = vmatprep.mubr.f32.mxu0 0.0
    %5962 = vmatmul.mubr.f32.gmra.mxu0 %v5843
    %v5963 = vpop.f32.mrf.mxu0
    %v5964 = vadd.f32 0.0, %v5963
    %v5965 = vpop.f32.mrf.mxu0
    %5966 = vmatprep.mubr.f32.mxu0 0.0
    %5967 = vmatmul.mubr.f32.gmra.mxu0 %v5845
    %v5968 = vpop.f32.mrf.mxu0
    %v5969 = vadd.f32 0.0, %v5968
    %v5970 = vpop.f32.mrf.mxu0
    %5971 = vmatprep.mubr.f32.mxu0 0.0
    %5972 = vmatmul.mubr.f32.gmra.mxu0 %v5847
    %v5973 = vpop.f32.mrf.mxu0
    %v5974 = vadd.f32 0.0, %v5973
    %v5975 = vpop.f32.mrf.mxu0
    %5976 = vmatprep.mubr.f32.mxu0 0.0
    %5977 = vmatmul.mubr.f32.gmra.mxu0 %v5849
    %v5978 = vpop.f32.mrf.mxu0
    %v5979 = vadd.f32 0.0, %v5978
    %v5980 = vpop.f32.mrf.mxu0
    %5981 = vmatprep.mubr.f32.mxu0 0.0
    %5982 = vmatmul.mubr.f32.gmra.mxu0 %v5851
    %v5983 = vpop.f32.mrf.mxu0
    %v5984 = vadd.f32 0.0, %v5983
    %v5985 = vpop.f32.mrf.mxu0
    %5986 = vmatprep.mubr.f32.mxu0 0.0
    %5987 = vmatmul.mubr.f32.gmra.mxu0 %v5853
    %v5988 = vpop.f32.mrf.mxu0
    %v5989 = vadd.f32 0.0, %v5988
    %v5990 = vpop.f32.mrf.mxu0
    %5991 = vmatprep.mubr.f32.mxu0 0.0
    %5992 = vmatmul.mubr.f32.gmra.mxu0 %v5855
    %v5993 = vpop.f32.mrf.mxu0
    %v5994 = vadd.f32 0.0, %v5993
    %v5995 = vpop.f32.mrf.mxu0
    %5996 = vdwg.mxu0
    %v5997 = vadd.f32 %v5708, %v5924
    %v5998 = vadd.f32 %v5713, %v5929
    %v5999 = vadd.f32 %v5718, %v5934
    %v6000 = vadd.f32 %v5723, %v5939
    %v6001 = vadd.f32 %v5728, %v5944
    %v6002 = vadd.f32 %v5733, %v5949
    %v6003 = vadd.f32 %v5738, %v5954
    %v6004 = vadd.f32 %v5743, %v5959
    %v6005 = vadd.f32 %v5748, %v5964
    %v6006 = vadd.f32 %v5753, %v5969
    %v6007 = vadd.f32 %v5758, %v5974
    %v6008 = vadd.f32 %v5763, %v5979
    %v6009 = vadd.f32 %v5768, %v5984
    %v6010 = vadd.f32 %v5773, %v5989
    %v6011 = vadd.f32 %v5778, %v5994
    %v6012 = vld [vmem:[#allocation19] sm:$0x1]
    %v6014 = vlaneseq
    %v6015 = vshrl.u32 %v6014, 7
    %v6016 = vsub.s32 0, %v6015
    %v6017 = vrot.slane %v6012, %v6016
    %v6019 = vadd.f32 %v5997, %v6017
    %v6020 = vadd.f32 %v5998, %v6017
    %v6021 = vadd.f32 %v5999, %v6017
    %v6022 = vadd.f32 %v6000, %v6017
    %v6023 = vadd.f32 %v6001, %v6017
    %v6024 = vadd.f32 %v6002, %v6017
    %v6025 = vadd.f32 %v6003, %v6017
    %v6026 = vadd.f32 %v6004, %v6017
    %v6027 = vadd.f32 %v6005, %v6017
    %v6028 = vadd.f32 %v6006, %v6017
    %v6029 = vadd.f32 %v6007, %v6017
    %v6030 = vadd.f32 %v6008, %v6017
    %v6031 = vadd.f32 %v6009, %v6017
    %v6032 = vadd.f32 %v6010, %v6017
    %v6033 = vadd.f32 %v6011, %v6017
    %vm6034 = vcmask 48128
    %6035 = vst.msk [vmem:[%s21] sm:$0xff] %vm6034, %v6019
    %6036 = vst.msk [vmem:[%s21 + $0x8] sm:$0xff] %vm6034, %v6020
    %6037 = vst.msk [vmem:[%s21 + $0x10] sm:$0xff] %vm6034, %v6021
    %6038 = vst.msk [vmem:[%s21 + $0x18] sm:$0xff] %vm6034, %v6022
    %6039 = vst.msk [vmem:[%s21 + $0x20] sm:$0xff] %vm6034, %v6023
    %6040 = vst.msk [vmem:[%s21 + $0x28] sm:$0xff] %vm6034, %v6024
    %6041 = vst.msk [vmem:[%s21 + $0x30] sm:$0xff] %vm6034, %v6025
    %6042 = vst.msk [vmem:[%s21 + $0x38] sm:$0xff] %vm6034, %v6026
    %6043 = vst.msk [vmem:[%s21 + $0x40] sm:$0xff] %vm6034, %v6027
    %6044 = vst.msk [vmem:[%s21 + $0x48] sm:$0xff] %vm6034, %v6028
    %6045 = vst.msk [vmem:[%s21 + $0x50] sm:$0xff] %vm6034, %v6029
    %6046 = vst.msk [vmem:[%s21 + $0x58] sm:$0xff] %vm6034, %v6030
    %6047 = vst.msk [vmem:[%s21 + $0x60] sm:$0xff] %vm6034, %v6031
    %6048 = vst.msk [vmem:[%s21 + $0x68] sm:$0xff] %vm6034, %v6032
    %6049 = vst.msk [vmem:[%s21 + $0x70] sm:$0xff] %vm6034, %v6033
    // Predicated region
    $region129: #{_gat_fp_pallas.1} parent=1 // pred_check
      _
    $region130: #{_gat_fp_pallas.1} parent=1 // pred_check_branch
      %6051 = sbr.rel (0) target = $region132
    $region131: #{_gat_fp_pallas.1} parent=1 // pred_region
      _
    $region132: #{_gat_fp_pallas.1} parent=1 // pred_fallthru
      _
    // Predicated region
    $region133: #{_gat_fp_pallas.1} parent=1 // pred_check
      _
    $region134: #{_gat_fp_pallas.1} parent=1 // pred_check_branch
      %6053 = sbr.rel (0) target = $region136
    $region135: #{_gat_fp_pallas.1} parent=1 // pred_region
      _
    $region136: #{_gat_fp_pallas.1} parent=1 // pred_fallthru
      _
    %6054 = vsyncpa [#allocation7], 1
    %6055 = vsyncpa [#allocation9], 1
    %6056 = vsyncpa [#allocation12], 1
    %6057 = vsyncpa [#allocation15], 1
    %6058 = vsyncpa [#allocation18], 1

</llo_original>
